<compile_context>
chip_gen: v7x
topology: tpu7x:2x2x1
jax: 0.10.0
libtpu: 0.0.40
codegen_flags: <defaults>
</compile_context>

<pallas_src>
import jax
import jax.numpy as jnp
import numpy as np
from jax import lax
from jax.experimental import pallas as pl
from jax.experimental.pallas import tpu as pltpu

DIM = 6                       # channels inside the attention block
H_IN, W_IN = 32, 32           # MyNet input spatial size (1 input channel)
H1, W1 = H_IN - 1, W_IN - 1   # 31, 31 after the 2x2 valid conv
FC1_OUT, FC2_OUT = 16, 6


def _mynet_kernel(
    x_ref,
    # -- SMEM scalar weights (all channel mixing) --
    c1w_ref, c1b_ref,          # conv1 (2x2, 1->6): (6,4), (6,)
    bw1_ref, bb1_ref,          # block conv1 (1x1, 6->6)
    bw2_ref, bb2_ref,          # block conv2 (1x1, 6->6)
    caw1_ref, cab1_ref,        # CALayer 1x1 #1 (6->6)
    caw2_ref, cab2_ref,        # CALayer 1x1 #2 (6->6)
    paw1_ref, pab1_ref,        # PALayer 1x1 #1 (6->6)
    paw2_ref, pab2_ref,        # PALayer 1x1 #2 (6->1): (6,), (1,)
    c3w_ref, c3b_ref,          # conv3 (1x1, 6->1): (6,), (1,)
    # -- VMEM matrices (FC tail) --
    fc1w_ref, fc1b_ref,        # (31,16), (1,16)
    fc2w_ref, fc2b_ref,        # (16,6), (1,6)
    fc3w_ref, fc3b_ref,        # (1,6), (1,1)
    out_ref):
  x = x_ref[0]                                        # (32, 32), 1 input chan

  # ---- conv1: 2x2 valid conv, 1 -> 6 channels, + ReLU -------------------
  # 4 shifted taps shared by all output channels; each output channel is
  # 4 scalar-broadcast FMAs on the VPU.
  taps = (x[0:H1, 0:W1], x[0:H1, 1:W_IN],             # (kh,kw)=(0,0),(0,1)
          x[1:H_IN, 0:W1], x[1:H_IN, 1:W_IN])         #         (1,0),(1,1)
  feat = []
  for o in range(DIM):
    acc = c1w_ref[o, 0] * taps[0]
    for t in range(1, 4):
      acc = acc + c1w_ref[o, t] * taps[t]
    feat.append(jnp.maximum(acc + c1b_ref[o], 0.0))   # (31, 31)

  def mix1x1(chans, w_ref, b_ref, n_out):
    # 1x1 conv over a python list of equally shaped slabs (VPU broadcast-FMA,
    # scalar weights from SMEM). Works for (31,31) slabs and (1,1) pooled vals.
    outs = []
    for o in range(n_out):
      acc = w_ref[o, 0] * chans[0]
      for c in range(1, len(chans)):
        acc = acc + w_ref[o, c] * chans[c]
      outs.append(acc + b_ref[o])
    return outs

  # ---- AttentionBlock (dim=6, all convs 1x1) ----------------------------
  res = [jnp.maximum(v, 0.0) + f
         for v, f in zip(mix1x1(feat, bw1_ref, bb1_ref, DIM), feat)]
  res = mix1x1(res, bw2_ref, bb2_ref, DIM)

  # CALayer: global average pool -> 1x1 -> relu -> 1x1 -> sigmoid -> scale.
  inv_hw = 1.0 / float(H1 * W1)
  pool = [jnp.sum(r, keepdims=True) * inv_hw for r in res]     # (1,1) each
  hid = [jnp.maximum(v, 0.0) for v in mix1x1(pool, caw1_ref, cab1_ref, DIM)]
  att = [jax.nn.sigmoid(v) for v in mix1x1(hid, caw2_ref, cab2_ref, DIM)]
  res = [r * a for r, a in zip(res, att)]

  # PALayer: 1x1 -> relu -> 1x1 (6->1) -> sigmoid -> per-pixel scale.
  pa_h = [jnp.maximum(v, 0.0) for v in mix1x1(res, paw1_ref, pab1_ref, DIM)]
  acc = paw2_ref[0] * pa_h[0]
  for c in range(1, DIM):
    acc = acc + paw2_ref[c] * pa_h[c]
  pa_map = jax.nn.sigmoid(acc + pab2_ref[0])                   # (31, 31)
  res = [r * pa_map for r in res]

  # Residual (block output) + outer ReLU:  x = relu(block(x))
  y = [jnp.maximum(r + f, 0.0) for r, f in zip(res, feat)]

  # ---- conv3: 1x1, 6 -> 1, + ReLU ----------------------------------------
  acc = c3w_ref[0] * y[0]
  for c in range(1, DIM):
    acc = acc + c3w_ref[c] * y[c]
  v = jnp.maximum(acc + c3b_ref[0], 0.0)                       # (31, 31)

  # ---- FC tail (acts on the 31-wide rows) --------------------------------
  h = jnp.dot(v, fc1w_ref[...], preferred_element_type=jnp.float32) + fc1b_ref[...]
  h = jnp.dot(h, fc2w_ref[...], preferred_element_type=jnp.float32) + fc2b_ref[...]
  # fc3 has a single output unit: VPU multiply + lane-reduce instead of an
  # N=1 MXU matmul (which would produce a masked 1-lane result).
  logits = jnp.sum(h * fc3w_ref[...], axis=1, keepdims=True) + fc3b_ref[...]
  out_ref[0] = jax.nn.sigmoid(logits)                          # (31, 1)


def mynet_forward(x, p):
  """x: (B, 32, 32) float32 (the single input channel, squeezed)."""
  B = x.shape[0]
  smem = pl.BlockSpec(memory_space=pltpu.MemorySpace.SMEM)

  def full2d(shape):
    return pl.BlockSpec(shape, lambda b: (0, 0))

  return pl.pallas_call(
      _mynet_kernel,
      out_shape=jax.ShapeDtypeStruct((B, H1, 1), jnp.float32),
      grid=(B,),
      in_specs=[pl.BlockSpec((1, H_IN, W_IN), lambda b: (b, 0, 0))]
               + [smem] * 16
               + [full2d((H1, FC1_OUT)), full2d((1, FC1_OUT)),
                  full2d((FC1_OUT, FC2_OUT)), full2d((1, FC2_OUT)),
                  full2d((1, FC2_OUT)), full2d((1, 1))],
      out_specs=pl.BlockSpec((1, H1, 1), lambda b: (b, 0, 0)),
      compiler_params=pltpu.CompilerParams(
          dimension_semantics=("parallel",)),
  )(x,
    p["c1_w"], p["c1_b"],
    p["bw1"], p["bb1"], p["bw2"], p["bb2"],
    p["caw1"], p["cab1"], p["caw2"], p["cab2"],
    p["paw1"], p["pab1"], p["paw2"], p["pab2"],
    p["c3_w"], p["c3_b"],
    p["fc1_w"], p["fc1_b"], p["fc2_w"], p["fc2_b"], p["fc3_w"], p["fc3_b"])


def init_params(key):
  ks = jax.random.split(key, 22)
  n = lambda k, s, sc=0.2: (sc * jax.random.normal(k, s)).astype(jnp.float32)
  return {
      # conv1 (2x2, 1->6): taps flattened as kh*2+kw
      "c1_w": n(ks[0], (DIM, 4), 0.3), "c1_b": n(ks[1], (DIM,), 0.05),
      # attention block 1x1 convs (weights are [out, in])
      "bw1": n(ks[2], (DIM, DIM)), "bb1": n(ks[3], (DIM,), 0.05),
      "bw2": n(ks[4], (DIM, DIM)), "bb2": n(ks[5], (DIM,), 0.05),
      "caw1": n(ks[6], (DIM, DIM)), "cab1": n(ks[7], (DIM,), 0.05),
      "caw2": n(ks[8], (DIM, DIM)), "cab2": n(ks[9], (DIM,), 0.05),
      "paw1": n(ks[10], (DIM, DIM)), "pab1": n(ks[11], (DIM,), 0.05),
      "paw2": n(ks[12], (DIM,)), "pab2": n(ks[13], (1,), 0.05),
      # conv3 (1x1, 6->1)
      "c3_w": n(ks[14], (DIM,)), "c3_b": n(ks[15], (1,), 0.05),
      # FC tail: weights stored as (in, out) = torch W.T (fc3 kept as (1, in))
      "fc1_w": n(ks[16], (H1, FC1_OUT), 0.15), "fc1_b": n(ks[17], (1, FC1_OUT), 0.05),
      "fc2_w": n(ks[18], (FC1_OUT, FC2_OUT), 0.2), "fc2_b": n(ks[19], (1, FC2_OUT), 0.05),
      "fc3_w": n(ks[20], (1, FC2_OUT), 0.3), "fc3_b": n(ks[21], (1, 1), 0.05),
  }


def mynet_reference(x, p):
  """Pure-JAX reference of MyNet.forward (same math as the PyTorch module)."""
  xb = x[:, None, :, :]                                        # NCHW (B,1,32,32)
  w_c1 = p["c1_w"].reshape(DIM, 1, 2, 2)
  y = lax.conv_general_dilated(
      xb, w_c1, window_strides=(1, 1), padding="VALID",
      dimension_numbers=("NCHW", "OIHW", "NCHW"))
  y = jax.nn.relu(y + p["c1_b"].reshape(1, -1, 1, 1))          # (B,6,31,31)

  def mix(v, w, b):      # 1x1 conv, NCHW; w: (Cout, Cin), b: (Cout,)
    return jnp.einsum("oc,bchw->bohw", w, v) + b.reshape(1, -1, 1, 1)

  res = jax.nn.relu(mix(y, p["bw1"], p["bb1"])) + y
  res = mix(res, p["bw2"], p["bb2"])
  pool = jnp.mean(res, axis=(2, 3), keepdims=True)
  att = jax.nn.relu(mix(pool, p["caw1"], p["cab1"]))
  att = jax.nn.sigmoid(mix(att, p["caw2"], p["cab2"]))
  res = res * att
  pa = jax.nn.relu(mix(res, p["paw1"], p["pab1"]))
  pa = jax.nn.sigmoid(mix(pa, p["paw2"].reshape(1, -1), p["pab2"]))
  res = res * pa
  res = jax.nn.relu(res + y)                                   # relu(block(x))
  v = jax.nn.relu(mix(res, p["c3_w"].reshape(1, -1), p["c3_b"]))  # (B,1,31,31)

  h = jnp.einsum("bchw,wn->bchn", v, p["fc1_w"]) + p["fc1_b"].reshape(1, 1, 1, -1)
  h = jnp.einsum("bchk,km->bchm", h, p["fc2_w"]) + p["fc2_b"].reshape(1, 1, 1, -1)
  h = jnp.einsum("bchk,km->bchm", h, p["fc3_w"].T) + p["fc3_b"].reshape(1, 1, 1, -1)
  return jax.nn.sigmoid(h)[:, 0, :, :]                         # (B, 31, 1)


if __name__ == "__main__":
  B = 2                                 # PyTorch input: (2, 1, 32, 32)
  key = jax.random.PRNGKey(0)
  kx, kp = jax.random.split(key)
  x = jax.random.normal(kx, (B, H_IN, W_IN), dtype=jnp.float32)
  params = init_params(kp)

  out = jax.block_until_ready(mynet_forward(x, params))        # (B, 31, 1)
  ref = jax.block_until_ready(mynet_reference(x, params))      # (B, 31, 1)

  np.testing.assert_allclose(np.asarray(out), np.asarray(ref),
                             rtol=1e-4, atol=1e-4)
  print("KERNEL_OK")
</pallas_src>

<mosaic_0001>
module attributes {stable_mosaic.version = 11 : i64} {
  func.func @_mynet_kernel(%arg0: i32, %arg1: memref<1x32x32xf32, #tpu.memory_space<vmem>>, %arg2: memref<6x4xf32, #tpu.memory_space<smem>>, %arg3: memref<6xf32, #tpu.memory_space<smem>>, %arg4: memref<6x6xf32, #tpu.memory_space<smem>>, %arg5: memref<6xf32, #tpu.memory_space<smem>>, %arg6: memref<6x6xf32, #tpu.memory_space<smem>>, %arg7: memref<6xf32, #tpu.memory_space<smem>>, %arg8: memref<6x6xf32, #tpu.memory_space<smem>>, %arg9: memref<6xf32, #tpu.memory_space<smem>>, %arg10: memref<6x6xf32, #tpu.memory_space<smem>>, %arg11: memref<6xf32, #tpu.memory_space<smem>>, %arg12: memref<6x6xf32, #tpu.memory_space<smem>>, %arg13: memref<6xf32, #tpu.memory_space<smem>>, %arg14: memref<6xf32, #tpu.memory_space<smem>>, %arg15: memref<1xf32, #tpu.memory_space<smem>>, %arg16: memref<6xf32, #tpu.memory_space<smem>>, %arg17: memref<1xf32, #tpu.memory_space<smem>>, %arg18: memref<31x16xf32, #tpu.memory_space<vmem>>, %arg19: memref<1x16xf32, #tpu.memory_space<vmem>>, %arg20: memref<16x6xf32, #tpu.memory_space<vmem>>, %arg21: memref<1x6xf32, #tpu.memory_space<vmem>>, %arg22: memref<1x6xf32, #tpu.memory_space<vmem>>, %arg23: memref<1x1xf32, #tpu.memory_space<vmem>>, %arg24: memref<1x31x1xf32, #tpu.memory_space<vmem>>) attributes {dimension_semantics = [#tpu.dimension_semantics<parallel>], iteration_bounds = array<i64: 2>, scalar_prefetch = 0 : i64, scratch_operands = 0 : i64, tpu.core_type = #tpu.core_type<tc>, window_params = [{transform_indices = @transform_0, window_bounds = array<i64: 1, 32, 32>}, {transform_indices = @transform_1, window_bounds = array<i64: 6, 4>}, {transform_indices = @transform_2, window_bounds = array<i64: 6>}, {transform_indices = @transform_3, window_bounds = array<i64: 6, 6>}, {transform_indices = @transform_4, window_bounds = array<i64: 6>}, {transform_indices = @transform_5, window_bounds = array<i64: 6, 6>}, {transform_indices = @transform_6, window_bounds = array<i64: 6>}, {transform_indices = @transform_7, window_bounds = array<i64: 6, 6>}, {transform_indices = @transform_8, window_bounds = array<i64: 6>}, {transform_indices = @transform_9, window_bounds = array<i64: 6, 6>}, {transform_indices = @transform_10, window_bounds = array<i64: 6>}, {transform_indices = @transform_11, window_bounds = array<i64: 6, 6>}, {transform_indices = @transform_12, window_bounds = array<i64: 6>}, {transform_indices = @transform_13, window_bounds = array<i64: 6>}, {transform_indices = @transform_14, window_bounds = array<i64: 1>}, {transform_indices = @transform_15, window_bounds = array<i64: 6>}, {transform_indices = @transform_16, window_bounds = array<i64: 1>}, {pipeline_mode = #tpu.pipeline_mode<synchronous>, transform_indices = @transform_17, window_bounds = array<i64: 31, 16>}, {pipeline_mode = #tpu.pipeline_mode<synchronous>, transform_indices = @transform_18, window_bounds = array<i64: 1, 16>}, {pipeline_mode = #tpu.pipeline_mode<synchronous>, transform_indices = @transform_19, window_bounds = array<i64: 16, 6>}, {pipeline_mode = #tpu.pipeline_mode<synchronous>, transform_indices = @transform_20, window_bounds = array<i64: 1, 6>}, {pipeline_mode = #tpu.pipeline_mode<synchronous>, transform_indices = @transform_21, window_bounds = array<i64: 1, 6>}, {pipeline_mode = #tpu.pipeline_mode<synchronous>, transform_indices = @transform_22, window_bounds = array<i64: 1, 1>}, {transform_indices = @transform_23, window_bounds = array<i64: 1, 31, 1>}]} {
    %c0 = arith.constant 0 : index
    %c0_0 = arith.constant 0 : index
    %c0_1 = arith.constant 0 : index
    %0 = vector.load %arg1[%c0, %c0_0, %c0_1] : memref<1x32x32xf32, #tpu.memory_space<vmem>>, vector<1x32x32xf32>
    %1 = vector.shape_cast %0 : vector<1x32x32xf32> to vector<32x32xf32>
    %2 = vector.extract_strided_slice %1 {offsets = [0, 0], sizes = [31, 31], strides = [1, 1]} : vector<32x32xf32> to vector<31x31xf32>
    %3 = vector.extract_strided_slice %1 {offsets = [0, 1], sizes = [31, 31], strides = [1, 1]} : vector<32x32xf32> to vector<31x31xf32>
    %4 = vector.extract_strided_slice %1 {offsets = [1, 0], sizes = [31, 31], strides = [1, 1]} : vector<32x32xf32> to vector<31x31xf32>
    %5 = vector.extract_strided_slice %1 {offsets = [1, 1], sizes = [31, 31], strides = [1, 1]} : vector<32x32xf32> to vector<31x31xf32>
    %c0_2 = arith.constant 0 : index
    %c0_3 = arith.constant 0 : index
    %6 = memref.load %arg2[%c0_2, %c0_3] : memref<6x4xf32, #tpu.memory_space<smem>>
    %7 = vector.broadcast %6 : f32 to vector<31x31xf32>
    %8 = arith.mulf %7, %2 : vector<31x31xf32>
    %c0_4 = arith.constant 0 : index
    %c1 = arith.constant 1 : index
    %9 = memref.load %arg2[%c0_4, %c1] : memref<6x4xf32, #tpu.memory_space<smem>>
    %10 = vector.broadcast %9 : f32 to vector<31x31xf32>
    %11 = arith.mulf %10, %3 : vector<31x31xf32>
    %12 = arith.addf %8, %11 : vector<31x31xf32>
    %c0_5 = arith.constant 0 : index
    %c2 = arith.constant 2 : index
    %13 = memref.load %arg2[%c0_5, %c2] : memref<6x4xf32, #tpu.memory_space<smem>>
    %14 = vector.broadcast %13 : f32 to vector<31x31xf32>
    %15 = arith.mulf %14, %4 : vector<31x31xf32>
    %16 = arith.addf %12, %15 : vector<31x31xf32>
    %c0_6 = arith.constant 0 : index
    %c3 = arith.constant 3 : index
    %17 = memref.load %arg2[%c0_6, %c3] : memref<6x4xf32, #tpu.memory_space<smem>>
    %18 = vector.broadcast %17 : f32 to vector<31x31xf32>
    %19 = arith.mulf %18, %5 : vector<31x31xf32>
    %20 = arith.addf %16, %19 : vector<31x31xf32>
    %c0_7 = arith.constant 0 : index
    %21 = memref.load %arg3[%c0_7] : memref<6xf32, #tpu.memory_space<smem>>
    %22 = vector.broadcast %21 : f32 to vector<31x31xf32>
    %23 = arith.addf %20, %22 : vector<31x31xf32>
    %cst = arith.constant 0.000000e+00 : f32
    %24 = vector.broadcast %cst : f32 to vector<31x31xf32>
    %25 = arith.maximumf %23, %24 : vector<31x31xf32>
    %c1_8 = arith.constant 1 : index
    %c0_9 = arith.constant 0 : index
    %26 = memref.load %arg2[%c1_8, %c0_9] : memref<6x4xf32, #tpu.memory_space<smem>>
    %27 = vector.broadcast %26 : f32 to vector<31x31xf32>
    %28 = arith.mulf %27, %2 : vector<31x31xf32>
    %c1_10 = arith.constant 1 : index
    %c1_11 = arith.constant 1 : index
    %29 = memref.load %arg2[%c1_10, %c1_11] : memref<6x4xf32, #tpu.memory_space<smem>>
    %30 = vector.broadcast %29 : f32 to vector<31x31xf32>
    %31 = arith.mulf %30, %3 : vector<31x31xf32>
    %32 = arith.addf %28, %31 : vector<31x31xf32>
    %c1_12 = arith.constant 1 : index
    %c2_13 = arith.constant 2 : index
    %33 = memref.load %arg2[%c1_12, %c2_13] : memref<6x4xf32, #tpu.memory_space<smem>>
    %34 = vector.broadcast %33 : f32 to vector<31x31xf32>
    %35 = arith.mulf %34, %4 : vector<31x31xf32>
    %36 = arith.addf %32, %35 : vector<31x31xf32>
    %c1_14 = arith.constant 1 : index
    %c3_15 = arith.constant 3 : index
    %37 = memref.load %arg2[%c1_14, %c3_15] : memref<6x4xf32, #tpu.memory_space<smem>>
    %38 = vector.broadcast %37 : f32 to vector<31x31xf32>
    %39 = arith.mulf %38, %5 : vector<31x31xf32>
    %40 = arith.addf %36, %39 : vector<31x31xf32>
    %c1_16 = arith.constant 1 : index
    %41 = memref.load %arg3[%c1_16] : memref<6xf32, #tpu.memory_space<smem>>
    %42 = vector.broadcast %41 : f32 to vector<31x31xf32>
    %43 = arith.addf %40, %42 : vector<31x31xf32>
    %cst_17 = arith.constant 0.000000e+00 : f32
    %44 = vector.broadcast %cst_17 : f32 to vector<31x31xf32>
    %45 = arith.maximumf %43, %44 : vector<31x31xf32>
    %c2_18 = arith.constant 2 : index
    %c0_19 = arith.constant 0 : index
    %46 = memref.load %arg2[%c2_18, %c0_19] : memref<6x4xf32, #tpu.memory_space<smem>>
    %47 = vector.broadcast %46 : f32 to vector<31x31xf32>
    %48 = arith.mulf %47, %2 : vector<31x31xf32>
    %c2_20 = arith.constant 2 : index
    %c1_21 = arith.constant 1 : index
    %49 = memref.load %arg2[%c2_20, %c1_21] : memref<6x4xf32, #tpu.memory_space<smem>>
    %50 = vector.broadcast %49 : f32 to vector<31x31xf32>
    %51 = arith.mulf %50, %3 : vector<31x31xf32>
    %52 = arith.addf %48, %51 : vector<31x31xf32>
    %c2_22 = arith.constant 2 : index
    %c2_23 = arith.constant 2 : index
    %53 = memref.load %arg2[%c2_22, %c2_23] : memref<6x4xf32, #tpu.memory_space<smem>>
    %54 = vector.broadcast %53 : f32 to vector<31x31xf32>
    %55 = arith.mulf %54, %4 : vector<31x31xf32>
    %56 = arith.addf %52, %55 : vector<31x31xf32>
    %c2_24 = arith.constant 2 : index
    %c3_25 = arith.constant 3 : index
    %57 = memref.load %arg2[%c2_24, %c3_25] : memref<6x4xf32, #tpu.memory_space<smem>>
    %58 = vector.broadcast %57 : f32 to vector<31x31xf32>
    %59 = arith.mulf %58, %5 : vector<31x31xf32>
    %60 = arith.addf %56, %59 : vector<31x31xf32>
    %c2_26 = arith.constant 2 : index
    %61 = memref.load %arg3[%c2_26] : memref<6xf32, #tpu.memory_space<smem>>
    %62 = vector.broadcast %61 : f32 to vector<31x31xf32>
    %63 = arith.addf %60, %62 : vector<31x31xf32>
    %cst_27 = arith.constant 0.000000e+00 : f32
    %64 = vector.broadcast %cst_27 : f32 to vector<31x31xf32>
    %65 = arith.maximumf %63, %64 : vector<31x31xf32>
    %c3_28 = arith.constant 3 : index
    %c0_29 = arith.constant 0 : index
    %66 = memref.load %arg2[%c3_28, %c0_29] : memref<6x4xf32, #tpu.memory_space<smem>>
    %67 = vector.broadcast %66 : f32 to vector<31x31xf32>
    %68 = arith.mulf %67, %2 : vector<31x31xf32>
    %c3_30 = arith.constant 3 : index
    %c1_31 = arith.constant 1 : index
    %69 = memref.load %arg2[%c3_30, %c1_31] : memref<6x4xf32, #tpu.memory_space<smem>>
    %70 = vector.broadcast %69 : f32 to vector<31x31xf32>
    %71 = arith.mulf %70, %3 : vector<31x31xf32>
    %72 = arith.addf %68, %71 : vector<31x31xf32>
    %c3_32 = arith.constant 3 : index
    %c2_33 = arith.constant 2 : index
    %73 = memref.load %arg2[%c3_32, %c2_33] : memref<6x4xf32, #tpu.memory_space<smem>>
    %74 = vector.broadcast %73 : f32 to vector<31x31xf32>
    %75 = arith.mulf %74, %4 : vector<31x31xf32>
    %76 = arith.addf %72, %75 : vector<31x31xf32>
    %c3_34 = arith.constant 3 : index
    %c3_35 = arith.constant 3 : index
    %77 = memref.load %arg2[%c3_34, %c3_35] : memref<6x4xf32, #tpu.memory_space<smem>>
    %78 = vector.broadcast %77 : f32 to vector<31x31xf32>
    %79 = arith.mulf %78, %5 : vector<31x31xf32>
    %80 = arith.addf %76, %79 : vector<31x31xf32>
    %c3_36 = arith.constant 3 : index
    %81 = memref.load %arg3[%c3_36] : memref<6xf32, #tpu.memory_space<smem>>
    %82 = vector.broadcast %81 : f32 to vector<31x31xf32>
    %83 = arith.addf %80, %82 : vector<31x31xf32>
    %cst_37 = arith.constant 0.000000e+00 : f32
    %84 = vector.broadcast %cst_37 : f32 to vector<31x31xf32>
    %85 = arith.maximumf %83, %84 : vector<31x31xf32>
    %c4 = arith.constant 4 : index
    %c0_38 = arith.constant 0 : index
    %86 = memref.load %arg2[%c4, %c0_38] : memref<6x4xf32, #tpu.memory_space<smem>>
    %87 = vector.broadcast %86 : f32 to vector<31x31xf32>
    %88 = arith.mulf %87, %2 : vector<31x31xf32>
    %c4_39 = arith.constant 4 : index
    %c1_40 = arith.constant 1 : index
    %89 = memref.load %arg2[%c4_39, %c1_40] : memref<6x4xf32, #tpu.memory_space<smem>>
    %90 = vector.broadcast %89 : f32 to vector<31x31xf32>
    %91 = arith.mulf %90, %3 : vector<31x31xf32>
    %92 = arith.addf %88, %91 : vector<31x31xf32>
    %c4_41 = arith.constant 4 : index
    %c2_42 = arith.constant 2 : index
    %93 = memref.load %arg2[%c4_41, %c2_42] : memref<6x4xf32, #tpu.memory_space<smem>>
    %94 = vector.broadcast %93 : f32 to vector<31x31xf32>
    %95 = arith.mulf %94, %4 : vector<31x31xf32>
    %96 = arith.addf %92, %95 : vector<31x31xf32>
    %c4_43 = arith.constant 4 : index
    %c3_44 = arith.constant 3 : index
    %97 = memref.load %arg2[%c4_43, %c3_44] : memref<6x4xf32, #tpu.memory_space<smem>>
    %98 = vector.broadcast %97 : f32 to vector<31x31xf32>
    %99 = arith.mulf %98, %5 : vector<31x31xf32>
    %100 = arith.addf %96, %99 : vector<31x31xf32>
    %c4_45 = arith.constant 4 : index
    %101 = memref.load %arg3[%c4_45] : memref<6xf32, #tpu.memory_space<smem>>
    %102 = vector.broadcast %101 : f32 to vector<31x31xf32>
    %103 = arith.addf %100, %102 : vector<31x31xf32>
    %cst_46 = arith.constant 0.000000e+00 : f32
    %104 = vector.broadcast %cst_46 : f32 to vector<31x31xf32>
    %105 = arith.maximumf %103, %104 : vector<31x31xf32>
    %c5 = arith.constant 5 : index
    %c0_47 = arith.constant 0 : index
    %106 = memref.load %arg2[%c5, %c0_47] : memref<6x4xf32, #tpu.memory_space<smem>>
    %107 = vector.broadcast %106 : f32 to vector<31x31xf32>
    %108 = arith.mulf %107, %2 : vector<31x31xf32>
    %c5_48 = arith.constant 5 : index
    %c1_49 = arith.constant 1 : index
    %109 = memref.load %arg2[%c5_48, %c1_49] : memref<6x4xf32, #tpu.memory_space<smem>>
    %110 = vector.broadcast %109 : f32 to vector<31x31xf32>
    %111 = arith.mulf %110, %3 : vector<31x31xf32>
    %112 = arith.addf %108, %111 : vector<31x31xf32>
    %c5_50 = arith.constant 5 : index
    %c2_51 = arith.constant 2 : index
    %113 = memref.load %arg2[%c5_50, %c2_51] : memref<6x4xf32, #tpu.memory_space<smem>>
    %114 = vector.broadcast %113 : f32 to vector<31x31xf32>
    %115 = arith.mulf %114, %4 : vector<31x31xf32>
    %116 = arith.addf %112, %115 : vector<31x31xf32>
    %c5_52 = arith.constant 5 : index
    %c3_53 = arith.constant 3 : index
    %117 = memref.load %arg2[%c5_52, %c3_53] : memref<6x4xf32, #tpu.memory_space<smem>>
    %118 = vector.broadcast %117 : f32 to vector<31x31xf32>
    %119 = arith.mulf %118, %5 : vector<31x31xf32>
    %120 = arith.addf %116, %119 : vector<31x31xf32>
    %c5_54 = arith.constant 5 : index
    %121 = memref.load %arg3[%c5_54] : memref<6xf32, #tpu.memory_space<smem>>
    %122 = vector.broadcast %121 : f32 to vector<31x31xf32>
    %123 = arith.addf %120, %122 : vector<31x31xf32>
    %cst_55 = arith.constant 0.000000e+00 : f32
    %124 = vector.broadcast %cst_55 : f32 to vector<31x31xf32>
    %125 = arith.maximumf %123, %124 : vector<31x31xf32>
    %c0_56 = arith.constant 0 : index
    %c0_57 = arith.constant 0 : index
    %126 = memref.load %arg4[%c0_56, %c0_57] : memref<6x6xf32, #tpu.memory_space<smem>>
    %127 = vector.broadcast %126 : f32 to vector<31x31xf32>
    %128 = arith.mulf %127, %25 : vector<31x31xf32>
    %c0_58 = arith.constant 0 : index
    %c1_59 = arith.constant 1 : index
    %129 = memref.load %arg4[%c0_58, %c1_59] : memref<6x6xf32, #tpu.memory_space<smem>>
    %130 = vector.broadcast %129 : f32 to vector<31x31xf32>
    %131 = arith.mulf %130, %45 : vector<31x31xf32>
    %132 = arith.addf %128, %131 : vector<31x31xf32>
    %c0_60 = arith.constant 0 : index
    %c2_61 = arith.constant 2 : index
    %133 = memref.load %arg4[%c0_60, %c2_61] : memref<6x6xf32, #tpu.memory_space<smem>>
    %134 = vector.broadcast %133 : f32 to vector<31x31xf32>
    %135 = arith.mulf %134, %65 : vector<31x31xf32>
    %136 = arith.addf %132, %135 : vector<31x31xf32>
    %c0_62 = arith.constant 0 : index
    %c3_63 = arith.constant 3 : index
    %137 = memref.load %arg4[%c0_62, %c3_63] : memref<6x6xf32, #tpu.memory_space<smem>>
    %138 = vector.broadcast %137 : f32 to vector<31x31xf32>
    %139 = arith.mulf %138, %85 : vector<31x31xf32>
    %140 = arith.addf %136, %139 : vector<31x31xf32>
    %c0_64 = arith.constant 0 : index
    %c4_65 = arith.constant 4 : index
    %141 = memref.load %arg4[%c0_64, %c4_65] : memref<6x6xf32, #tpu.memory_space<smem>>
    %142 = vector.broadcast %141 : f32 to vector<31x31xf32>
    %143 = arith.mulf %142, %105 : vector<31x31xf32>
    %144 = arith.addf %140, %143 : vector<31x31xf32>
    %c0_66 = arith.constant 0 : index
    %c5_67 = arith.constant 5 : index
    %145 = memref.load %arg4[%c0_66, %c5_67] : memref<6x6xf32, #tpu.memory_space<smem>>
    %146 = vector.broadcast %145 : f32 to vector<31x31xf32>
    %147 = arith.mulf %146, %125 : vector<31x31xf32>
    %148 = arith.addf %144, %147 : vector<31x31xf32>
    %c0_68 = arith.constant 0 : index
    %149 = memref.load %arg5[%c0_68] : memref<6xf32, #tpu.memory_space<smem>>
    %150 = vector.broadcast %149 : f32 to vector<31x31xf32>
    %151 = arith.addf %148, %150 : vector<31x31xf32>
    %c1_69 = arith.constant 1 : index
    %c0_70 = arith.constant 0 : index
    %152 = memref.load %arg4[%c1_69, %c0_70] : memref<6x6xf32, #tpu.memory_space<smem>>
    %153 = vector.broadcast %152 : f32 to vector<31x31xf32>
    %154 = arith.mulf %153, %25 : vector<31x31xf32>
    %c1_71 = arith.constant 1 : index
    %c1_72 = arith.constant 1 : index
    %155 = memref.load %arg4[%c1_71, %c1_72] : memref<6x6xf32, #tpu.memory_space<smem>>
    %156 = vector.broadcast %155 : f32 to vector<31x31xf32>
    %157 = arith.mulf %156, %45 : vector<31x31xf32>
    %158 = arith.addf %154, %157 : vector<31x31xf32>
    %c1_73 = arith.constant 1 : index
    %c2_74 = arith.constant 2 : index
    %159 = memref.load %arg4[%c1_73, %c2_74] : memref<6x6xf32, #tpu.memory_space<smem>>
    %160 = vector.broadcast %159 : f32 to vector<31x31xf32>
    %161 = arith.mulf %160, %65 : vector<31x31xf32>
    %162 = arith.addf %158, %161 : vector<31x31xf32>
    %c1_75 = arith.constant 1 : index
    %c3_76 = arith.constant 3 : index
    %163 = memref.load %arg4[%c1_75, %c3_76] : memref<6x6xf32, #tpu.memory_space<smem>>
    %164 = vector.broadcast %163 : f32 to vector<31x31xf32>
    %165 = arith.mulf %164, %85 : vector<31x31xf32>
    %166 = arith.addf %162, %165 : vector<31x31xf32>
    %c1_77 = arith.constant 1 : index
    %c4_78 = arith.constant 4 : index
    %167 = memref.load %arg4[%c1_77, %c4_78] : memref<6x6xf32, #tpu.memory_space<smem>>
    %168 = vector.broadcast %167 : f32 to vector<31x31xf32>
    %169 = arith.mulf %168, %105 : vector<31x31xf32>
    %170 = arith.addf %166, %169 : vector<31x31xf32>
    %c1_79 = arith.constant 1 : index
    %c5_80 = arith.constant 5 : index
    %171 = memref.load %arg4[%c1_79, %c5_80] : memref<6x6xf32, #tpu.memory_space<smem>>
    %172 = vector.broadcast %171 : f32 to vector<31x31xf32>
    %173 = arith.mulf %172, %125 : vector<31x31xf32>
    %174 = arith.addf %170, %173 : vector<31x31xf32>
    %c1_81 = arith.constant 1 : index
    %175 = memref.load %arg5[%c1_81] : memref<6xf32, #tpu.memory_space<smem>>
    %176 = vector.broadcast %175 : f32 to vector<31x31xf32>
    %177 = arith.addf %174, %176 : vector<31x31xf32>
    %c2_82 = arith.constant 2 : index
    %c0_83 = arith.constant 0 : index
    %178 = memref.load %arg4[%c2_82, %c0_83] : memref<6x6xf32, #tpu.memory_space<smem>>
    %179 = vector.broadcast %178 : f32 to vector<31x31xf32>
    %180 = arith.mulf %179, %25 : vector<31x31xf32>
    %c2_84 = arith.constant 2 : index
    %c1_85 = arith.constant 1 : index
    %181 = memref.load %arg4[%c2_84, %c1_85] : memref<6x6xf32, #tpu.memory_space<smem>>
    %182 = vector.broadcast %181 : f32 to vector<31x31xf32>
    %183 = arith.mulf %182, %45 : vector<31x31xf32>
    %184 = arith.addf %180, %183 : vector<31x31xf32>
    %c2_86 = arith.constant 2 : index
    %c2_87 = arith.constant 2 : index
    %185 = memref.load %arg4[%c2_86, %c2_87] : memref<6x6xf32, #tpu.memory_space<smem>>
    %186 = vector.broadcast %185 : f32 to vector<31x31xf32>
    %187 = arith.mulf %186, %65 : vector<31x31xf32>
    %188 = arith.addf %184, %187 : vector<31x31xf32>
    %c2_88 = arith.constant 2 : index
    %c3_89 = arith.constant 3 : index
    %189 = memref.load %arg4[%c2_88, %c3_89] : memref<6x6xf32, #tpu.memory_space<smem>>
    %190 = vector.broadcast %189 : f32 to vector<31x31xf32>
    %191 = arith.mulf %190, %85 : vector<31x31xf32>
    %192 = arith.addf %188, %191 : vector<31x31xf32>
    %c2_90 = arith.constant 2 : index
    %c4_91 = arith.constant 4 : index
    %193 = memref.load %arg4[%c2_90, %c4_91] : memref<6x6xf32, #tpu.memory_space<smem>>
    %194 = vector.broadcast %193 : f32 to vector<31x31xf32>
    %195 = arith.mulf %194, %105 : vector<31x31xf32>
    %196 = arith.addf %192, %195 : vector<31x31xf32>
    %c2_92 = arith.constant 2 : index
    %c5_93 = arith.constant 5 : index
    %197 = memref.load %arg4[%c2_92, %c5_93] : memref<6x6xf32, #tpu.memory_space<smem>>
    %198 = vector.broadcast %197 : f32 to vector<31x31xf32>
    %199 = arith.mulf %198, %125 : vector<31x31xf32>
    %200 = arith.addf %196, %199 : vector<31x31xf32>
    %c2_94 = arith.constant 2 : index
    %201 = memref.load %arg5[%c2_94] : memref<6xf32, #tpu.memory_space<smem>>
    %202 = vector.broadcast %201 : f32 to vector<31x31xf32>
    %203 = arith.addf %200, %202 : vector<31x31xf32>
    %c3_95 = arith.constant 3 : index
    %c0_96 = arith.constant 0 : index
    %204 = memref.load %arg4[%c3_95, %c0_96] : memref<6x6xf32, #tpu.memory_space<smem>>
    %205 = vector.broadcast %204 : f32 to vector<31x31xf32>
    %206 = arith.mulf %205, %25 : vector<31x31xf32>
    %c3_97 = arith.constant 3 : index
    %c1_98 = arith.constant 1 : index
    %207 = memref.load %arg4[%c3_97, %c1_98] : memref<6x6xf32, #tpu.memory_space<smem>>
    %208 = vector.broadcast %207 : f32 to vector<31x31xf32>
    %209 = arith.mulf %208, %45 : vector<31x31xf32>
    %210 = arith.addf %206, %209 : vector<31x31xf32>
    %c3_99 = arith.constant 3 : index
    %c2_100 = arith.constant 2 : index
    %211 = memref.load %arg4[%c3_99, %c2_100] : memref<6x6xf32, #tpu.memory_space<smem>>
    %212 = vector.broadcast %211 : f32 to vector<31x31xf32>
    %213 = arith.mulf %212, %65 : vector<31x31xf32>
    %214 = arith.addf %210, %213 : vector<31x31xf32>
    %c3_101 = arith.constant 3 : index
    %c3_102 = arith.constant 3 : index
    %215 = memref.load %arg4[%c3_101, %c3_102] : memref<6x6xf32, #tpu.memory_space<smem>>
    %216 = vector.broadcast %215 : f32 to vector<31x31xf32>
    %217 = arith.mulf %216, %85 : vector<31x31xf32>
    %218 = arith.addf %214, %217 : vector<31x31xf32>
    %c3_103 = arith.constant 3 : index
    %c4_104 = arith.constant 4 : index
    %219 = memref.load %arg4[%c3_103, %c4_104] : memref<6x6xf32, #tpu.memory_space<smem>>
    %220 = vector.broadcast %219 : f32 to vector<31x31xf32>
    %221 = arith.mulf %220, %105 : vector<31x31xf32>
    %222 = arith.addf %218, %221 : vector<31x31xf32>
    %c3_105 = arith.constant 3 : index
    %c5_106 = arith.constant 5 : index
    %223 = memref.load %arg4[%c3_105, %c5_106] : memref<6x6xf32, #tpu.memory_space<smem>>
    %224 = vector.broadcast %223 : f32 to vector<31x31xf32>
    %225 = arith.mulf %224, %125 : vector<31x31xf32>
    %226 = arith.addf %222, %225 : vector<31x31xf32>
    %c3_107 = arith.constant 3 : index
    %227 = memref.load %arg5[%c3_107] : memref<6xf32, #tpu.memory_space<smem>>
    %228 = vector.broadcast %227 : f32 to vector<31x31xf32>
    %229 = arith.addf %226, %228 : vector<31x31xf32>
    %c4_108 = arith.constant 4 : index
    %c0_109 = arith.constant 0 : index
    %230 = memref.load %arg4[%c4_108, %c0_109] : memref<6x6xf32, #tpu.memory_space<smem>>
    %231 = vector.broadcast %230 : f32 to vector<31x31xf32>
    %232 = arith.mulf %231, %25 : vector<31x31xf32>
    %c4_110 = arith.constant 4 : index
    %c1_111 = arith.constant 1 : index
    %233 = memref.load %arg4[%c4_110, %c1_111] : memref<6x6xf32, #tpu.memory_space<smem>>
    %234 = vector.broadcast %233 : f32 to vector<31x31xf32>
    %235 = arith.mulf %234, %45 : vector<31x31xf32>
    %236 = arith.addf %232, %235 : vector<31x31xf32>
    %c4_112 = arith.constant 4 : index
    %c2_113 = arith.constant 2 : index
    %237 = memref.load %arg4[%c4_112, %c2_113] : memref<6x6xf32, #tpu.memory_space<smem>>
    %238 = vector.broadcast %237 : f32 to vector<31x31xf32>
    %239 = arith.mulf %238, %65 : vector<31x31xf32>
    %240 = arith.addf %236, %239 : vector<31x31xf32>
    %c4_114 = arith.constant 4 : index
    %c3_115 = arith.constant 3 : index
    %241 = memref.load %arg4[%c4_114, %c3_115] : memref<6x6xf32, #tpu.memory_space<smem>>
    %242 = vector.broadcast %241 : f32 to vector<31x31xf32>
    %243 = arith.mulf %242, %85 : vector<31x31xf32>
    %244 = arith.addf %240, %243 : vector<31x31xf32>
    %c4_116 = arith.constant 4 : index
    %c4_117 = arith.constant 4 : index
    %245 = memref.load %arg4[%c4_116, %c4_117] : memref<6x6xf32, #tpu.memory_space<smem>>
    %246 = vector.broadcast %245 : f32 to vector<31x31xf32>
    %247 = arith.mulf %246, %105 : vector<31x31xf32>
    %248 = arith.addf %244, %247 : vector<31x31xf32>
    %c4_118 = arith.constant 4 : index
    %c5_119 = arith.constant 5 : index
    %249 = memref.load %arg4[%c4_118, %c5_119] : memref<6x6xf32, #tpu.memory_space<smem>>
    %250 = vector.broadcast %249 : f32 to vector<31x31xf32>
    %251 = arith.mulf %250, %125 : vector<31x31xf32>
    %252 = arith.addf %248, %251 : vector<31x31xf32>
    %c4_120 = arith.constant 4 : index
    %253 = memref.load %arg5[%c4_120] : memref<6xf32, #tpu.memory_space<smem>>
    %254 = vector.broadcast %253 : f32 to vector<31x31xf32>
    %255 = arith.addf %252, %254 : vector<31x31xf32>
    %c5_121 = arith.constant 5 : index
    %c0_122 = arith.constant 0 : index
    %256 = memref.load %arg4[%c5_121, %c0_122] : memref<6x6xf32, #tpu.memory_space<smem>>
    %257 = vector.broadcast %256 : f32 to vector<31x31xf32>
    %258 = arith.mulf %257, %25 : vector<31x31xf32>
    %c5_123 = arith.constant 5 : index
    %c1_124 = arith.constant 1 : index
    %259 = memref.load %arg4[%c5_123, %c1_124] : memref<6x6xf32, #tpu.memory_space<smem>>
    %260 = vector.broadcast %259 : f32 to vector<31x31xf32>
    %261 = arith.mulf %260, %45 : vector<31x31xf32>
    %262 = arith.addf %258, %261 : vector<31x31xf32>
    %c5_125 = arith.constant 5 : index
    %c2_126 = arith.constant 2 : index
    %263 = memref.load %arg4[%c5_125, %c2_126] : memref<6x6xf32, #tpu.memory_space<smem>>
    %264 = vector.broadcast %263 : f32 to vector<31x31xf32>
    %265 = arith.mulf %264, %65 : vector<31x31xf32>
    %266 = arith.addf %262, %265 : vector<31x31xf32>
    %c5_127 = arith.constant 5 : index
    %c3_128 = arith.constant 3 : index
    %267 = memref.load %arg4[%c5_127, %c3_128] : memref<6x6xf32, #tpu.memory_space<smem>>
    %268 = vector.broadcast %267 : f32 to vector<31x31xf32>
    %269 = arith.mulf %268, %85 : vector<31x31xf32>
    %270 = arith.addf %266, %269 : vector<31x31xf32>
    %c5_129 = arith.constant 5 : index
    %c4_130 = arith.constant 4 : index
    %271 = memref.load %arg4[%c5_129, %c4_130] : memref<6x6xf32, #tpu.memory_space<smem>>
    %272 = vector.broadcast %271 : f32 to vector<31x31xf32>
    %273 = arith.mulf %272, %105 : vector<31x31xf32>
    %274 = arith.addf %270, %273 : vector<31x31xf32>
    %c5_131 = arith.constant 5 : index
    %c5_132 = arith.constant 5 : index
    %275 = memref.load %arg4[%c5_131, %c5_132] : memref<6x6xf32, #tpu.memory_space<smem>>
    %276 = vector.broadcast %275 : f32 to vector<31x31xf32>
    %277 = arith.mulf %276, %125 : vector<31x31xf32>
    %278 = arith.addf %274, %277 : vector<31x31xf32>
    %c5_133 = arith.constant 5 : index
    %279 = memref.load %arg5[%c5_133] : memref<6xf32, #tpu.memory_space<smem>>
    %280 = vector.broadcast %279 : f32 to vector<31x31xf32>
    %281 = arith.addf %278, %280 : vector<31x31xf32>
    %cst_134 = arith.constant 0.000000e+00 : f32
    %282 = vector.broadcast %cst_134 : f32 to vector<31x31xf32>
    %283 = arith.maximumf %151, %282 : vector<31x31xf32>
    %284 = arith.addf %283, %25 : vector<31x31xf32>
    %cst_135 = arith.constant 0.000000e+00 : f32
    %285 = vector.broadcast %cst_135 : f32 to vector<31x31xf32>
    %286 = arith.maximumf %177, %285 : vector<31x31xf32>
    %287 = arith.addf %286, %45 : vector<31x31xf32>
    %cst_136 = arith.constant 0.000000e+00 : f32
    %288 = vector.broadcast %cst_136 : f32 to vector<31x31xf32>
    %289 = arith.maximumf %203, %288 : vector<31x31xf32>
    %290 = arith.addf %289, %65 : vector<31x31xf32>
    %cst_137 = arith.constant 0.000000e+00 : f32
    %291 = vector.broadcast %cst_137 : f32 to vector<31x31xf32>
    %292 = arith.maximumf %229, %291 : vector<31x31xf32>
    %293 = arith.addf %292, %85 : vector<31x31xf32>
    %cst_138 = arith.constant 0.000000e+00 : f32
    %294 = vector.broadcast %cst_138 : f32 to vector<31x31xf32>
    %295 = arith.maximumf %255, %294 : vector<31x31xf32>
    %296 = arith.addf %295, %105 : vector<31x31xf32>
    %cst_139 = arith.constant 0.000000e+00 : f32
    %297 = vector.broadcast %cst_139 : f32 to vector<31x31xf32>
    %298 = arith.maximumf %281, %297 : vector<31x31xf32>
    %299 = arith.addf %298, %125 : vector<31x31xf32>
    %c0_140 = arith.constant 0 : index
    %c0_141 = arith.constant 0 : index
    %300 = memref.load %arg6[%c0_140, %c0_141] : memref<6x6xf32, #tpu.memory_space<smem>>
    %301 = vector.broadcast %300 : f32 to vector<31x31xf32>
    %302 = arith.mulf %301, %284 : vector<31x31xf32>
    %c0_142 = arith.constant 0 : index
    %c1_143 = arith.constant 1 : index
    %303 = memref.load %arg6[%c0_142, %c1_143] : memref<6x6xf32, #tpu.memory_space<smem>>
    %304 = vector.broadcast %303 : f32 to vector<31x31xf32>
    %305 = arith.mulf %304, %287 : vector<31x31xf32>
    %306 = arith.addf %302, %305 : vector<31x31xf32>
    %c0_144 = arith.constant 0 : index
    %c2_145 = arith.constant 2 : index
    %307 = memref.load %arg6[%c0_144, %c2_145] : memref<6x6xf32, #tpu.memory_space<smem>>
    %308 = vector.broadcast %307 : f32 to vector<31x31xf32>
    %309 = arith.mulf %308, %290 : vector<31x31xf32>
    %310 = arith.addf %306, %309 : vector<31x31xf32>
    %c0_146 = arith.constant 0 : index
    %c3_147 = arith.constant 3 : index
    %311 = memref.load %arg6[%c0_146, %c3_147] : memref<6x6xf32, #tpu.memory_space<smem>>
    %312 = vector.broadcast %311 : f32 to vector<31x31xf32>
    %313 = arith.mulf %312, %293 : vector<31x31xf32>
    %314 = arith.addf %310, %313 : vector<31x31xf32>
    %c0_148 = arith.constant 0 : index
    %c4_149 = arith.constant 4 : index
    %315 = memref.load %arg6[%c0_148, %c4_149] : memref<6x6xf32, #tpu.memory_space<smem>>
    %316 = vector.broadcast %315 : f32 to vector<31x31xf32>
    %317 = arith.mulf %316, %296 : vector<31x31xf32>
    %318 = arith.addf %314, %317 : vector<31x31xf32>
    %c0_150 = arith.constant 0 : index
    %c5_151 = arith.constant 5 : index
    %319 = memref.load %arg6[%c0_150, %c5_151] : memref<6x6xf32, #tpu.memory_space<smem>>
    %320 = vector.broadcast %319 : f32 to vector<31x31xf32>
    %321 = arith.mulf %320, %299 : vector<31x31xf32>
    %322 = arith.addf %318, %321 : vector<31x31xf32>
    %c0_152 = arith.constant 0 : index
    %323 = memref.load %arg7[%c0_152] : memref<6xf32, #tpu.memory_space<smem>>
    %324 = vector.broadcast %323 : f32 to vector<31x31xf32>
    %325 = arith.addf %322, %324 : vector<31x31xf32>
    %c1_153 = arith.constant 1 : index
    %c0_154 = arith.constant 0 : index
    %326 = memref.load %arg6[%c1_153, %c0_154] : memref<6x6xf32, #tpu.memory_space<smem>>
    %327 = vector.broadcast %326 : f32 to vector<31x31xf32>
    %328 = arith.mulf %327, %284 : vector<31x31xf32>
    %c1_155 = arith.constant 1 : index
    %c1_156 = arith.constant 1 : index
    %329 = memref.load %arg6[%c1_155, %c1_156] : memref<6x6xf32, #tpu.memory_space<smem>>
    %330 = vector.broadcast %329 : f32 to vector<31x31xf32>
    %331 = arith.mulf %330, %287 : vector<31x31xf32>
    %332 = arith.addf %328, %331 : vector<31x31xf32>
    %c1_157 = arith.constant 1 : index
    %c2_158 = arith.constant 2 : index
    %333 = memref.load %arg6[%c1_157, %c2_158] : memref<6x6xf32, #tpu.memory_space<smem>>
    %334 = vector.broadcast %333 : f32 to vector<31x31xf32>
    %335 = arith.mulf %334, %290 : vector<31x31xf32>
    %336 = arith.addf %332, %335 : vector<31x31xf32>
    %c1_159 = arith.constant 1 : index
    %c3_160 = arith.constant 3 : index
    %337 = memref.load %arg6[%c1_159, %c3_160] : memref<6x6xf32, #tpu.memory_space<smem>>
    %338 = vector.broadcast %337 : f32 to vector<31x31xf32>
    %339 = arith.mulf %338, %293 : vector<31x31xf32>
    %340 = arith.addf %336, %339 : vector<31x31xf32>
    %c1_161 = arith.constant 1 : index
    %c4_162 = arith.constant 4 : index
    %341 = memref.load %arg6[%c1_161, %c4_162] : memref<6x6xf32, #tpu.memory_space<smem>>
    %342 = vector.broadcast %341 : f32 to vector<31x31xf32>
    %343 = arith.mulf %342, %296 : vector<31x31xf32>
    %344 = arith.addf %340, %343 : vector<31x31xf32>
    %c1_163 = arith.constant 1 : index
    %c5_164 = arith.constant 5 : index
    %345 = memref.load %arg6[%c1_163, %c5_164] : memref<6x6xf32, #tpu.memory_space<smem>>
    %346 = vector.broadcast %345 : f32 to vector<31x31xf32>
    %347 = arith.mulf %346, %299 : vector<31x31xf32>
    %348 = arith.addf %344, %347 : vector<31x31xf32>
    %c1_165 = arith.constant 1 : index
    %349 = memref.load %arg7[%c1_165] : memref<6xf32, #tpu.memory_space<smem>>
    %350 = vector.broadcast %349 : f32 to vector<31x31xf32>
    %351 = arith.addf %348, %350 : vector<31x31xf32>
    %c2_166 = arith.constant 2 : index
    %c0_167 = arith.constant 0 : index
    %352 = memref.load %arg6[%c2_166, %c0_167] : memref<6x6xf32, #tpu.memory_space<smem>>
    %353 = vector.broadcast %352 : f32 to vector<31x31xf32>
    %354 = arith.mulf %353, %284 : vector<31x31xf32>
    %c2_168 = arith.constant 2 : index
    %c1_169 = arith.constant 1 : index
    %355 = memref.load %arg6[%c2_168, %c1_169] : memref<6x6xf32, #tpu.memory_space<smem>>
    %356 = vector.broadcast %355 : f32 to vector<31x31xf32>
    %357 = arith.mulf %356, %287 : vector<31x31xf32>
    %358 = arith.addf %354, %357 : vector<31x31xf32>
    %c2_170 = arith.constant 2 : index
    %c2_171 = arith.constant 2 : index
    %359 = memref.load %arg6[%c2_170, %c2_171] : memref<6x6xf32, #tpu.memory_space<smem>>
    %360 = vector.broadcast %359 : f32 to vector<31x31xf32>
    %361 = arith.mulf %360, %290 : vector<31x31xf32>
    %362 = arith.addf %358, %361 : vector<31x31xf32>
    %c2_172 = arith.constant 2 : index
    %c3_173 = arith.constant 3 : index
    %363 = memref.load %arg6[%c2_172, %c3_173] : memref<6x6xf32, #tpu.memory_space<smem>>
    %364 = vector.broadcast %363 : f32 to vector<31x31xf32>
    %365 = arith.mulf %364, %293 : vector<31x31xf32>
    %366 = arith.addf %362, %365 : vector<31x31xf32>
    %c2_174 = arith.constant 2 : index
    %c4_175 = arith.constant 4 : index
    %367 = memref.load %arg6[%c2_174, %c4_175] : memref<6x6xf32, #tpu.memory_space<smem>>
    %368 = vector.broadcast %367 : f32 to vector<31x31xf32>
    %369 = arith.mulf %368, %296 : vector<31x31xf32>
    %370 = arith.addf %366, %369 : vector<31x31xf32>
    %c2_176 = arith.constant 2 : index
    %c5_177 = arith.constant 5 : index
    %371 = memref.load %arg6[%c2_176, %c5_177] : memref<6x6xf32, #tpu.memory_space<smem>>
    %372 = vector.broadcast %371 : f32 to vector<31x31xf32>
    %373 = arith.mulf %372, %299 : vector<31x31xf32>
    %374 = arith.addf %370, %373 : vector<31x31xf32>
    %c2_178 = arith.constant 2 : index
    %375 = memref.load %arg7[%c2_178] : memref<6xf32, #tpu.memory_space<smem>>
    %376 = vector.broadcast %375 : f32 to vector<31x31xf32>
    %377 = arith.addf %374, %376 : vector<31x31xf32>
    %c3_179 = arith.constant 3 : index
    %c0_180 = arith.constant 0 : index
    %378 = memref.load %arg6[%c3_179, %c0_180] : memref<6x6xf32, #tpu.memory_space<smem>>
    %379 = vector.broadcast %378 : f32 to vector<31x31xf32>
    %380 = arith.mulf %379, %284 : vector<31x31xf32>
    %c3_181 = arith.constant 3 : index
    %c1_182 = arith.constant 1 : index
    %381 = memref.load %arg6[%c3_181, %c1_182] : memref<6x6xf32, #tpu.memory_space<smem>>
    %382 = vector.broadcast %381 : f32 to vector<31x31xf32>
    %383 = arith.mulf %382, %287 : vector<31x31xf32>
    %384 = arith.addf %380, %383 : vector<31x31xf32>
    %c3_183 = arith.constant 3 : index
    %c2_184 = arith.constant 2 : index
    %385 = memref.load %arg6[%c3_183, %c2_184] : memref<6x6xf32, #tpu.memory_space<smem>>
    %386 = vector.broadcast %385 : f32 to vector<31x31xf32>
    %387 = arith.mulf %386, %290 : vector<31x31xf32>
    %388 = arith.addf %384, %387 : vector<31x31xf32>
    %c3_185 = arith.constant 3 : index
    %c3_186 = arith.constant 3 : index
    %389 = memref.load %arg6[%c3_185, %c3_186] : memref<6x6xf32, #tpu.memory_space<smem>>
    %390 = vector.broadcast %389 : f32 to vector<31x31xf32>
    %391 = arith.mulf %390, %293 : vector<31x31xf32>
    %392 = arith.addf %388, %391 : vector<31x31xf32>
    %c3_187 = arith.constant 3 : index
    %c4_188 = arith.constant 4 : index
    %393 = memref.load %arg6[%c3_187, %c4_188] : memref<6x6xf32, #tpu.memory_space<smem>>
    %394 = vector.broadcast %393 : f32 to vector<31x31xf32>
    %395 = arith.mulf %394, %296 : vector<31x31xf32>
    %396 = arith.addf %392, %395 : vector<31x31xf32>
    %c3_189 = arith.constant 3 : index
    %c5_190 = arith.constant 5 : index
    %397 = memref.load %arg6[%c3_189, %c5_190] : memref<6x6xf32, #tpu.memory_space<smem>>
    %398 = vector.broadcast %397 : f32 to vector<31x31xf32>
    %399 = arith.mulf %398, %299 : vector<31x31xf32>
    %400 = arith.addf %396, %399 : vector<31x31xf32>
    %c3_191 = arith.constant 3 : index
    %401 = memref.load %arg7[%c3_191] : memref<6xf32, #tpu.memory_space<smem>>
    %402 = vector.broadcast %401 : f32 to vector<31x31xf32>
    %403 = arith.addf %400, %402 : vector<31x31xf32>
    %c4_192 = arith.constant 4 : index
    %c0_193 = arith.constant 0 : index
    %404 = memref.load %arg6[%c4_192, %c0_193] : memref<6x6xf32, #tpu.memory_space<smem>>
    %405 = vector.broadcast %404 : f32 to vector<31x31xf32>
    %406 = arith.mulf %405, %284 : vector<31x31xf32>
    %c4_194 = arith.constant 4 : index
    %c1_195 = arith.constant 1 : index
    %407 = memref.load %arg6[%c4_194, %c1_195] : memref<6x6xf32, #tpu.memory_space<smem>>
    %408 = vector.broadcast %407 : f32 to vector<31x31xf32>
    %409 = arith.mulf %408, %287 : vector<31x31xf32>
    %410 = arith.addf %406, %409 : vector<31x31xf32>
    %c4_196 = arith.constant 4 : index
    %c2_197 = arith.constant 2 : index
    %411 = memref.load %arg6[%c4_196, %c2_197] : memref<6x6xf32, #tpu.memory_space<smem>>
    %412 = vector.broadcast %411 : f32 to vector<31x31xf32>
    %413 = arith.mulf %412, %290 : vector<31x31xf32>
    %414 = arith.addf %410, %413 : vector<31x31xf32>
    %c4_198 = arith.constant 4 : index
    %c3_199 = arith.constant 3 : index
    %415 = memref.load %arg6[%c4_198, %c3_199] : memref<6x6xf32, #tpu.memory_space<smem>>
    %416 = vector.broadcast %415 : f32 to vector<31x31xf32>
    %417 = arith.mulf %416, %293 : vector<31x31xf32>
    %418 = arith.addf %414, %417 : vector<31x31xf32>
    %c4_200 = arith.constant 4 : index
    %c4_201 = arith.constant 4 : index
    %419 = memref.load %arg6[%c4_200, %c4_201] : memref<6x6xf32, #tpu.memory_space<smem>>
    %420 = vector.broadcast %419 : f32 to vector<31x31xf32>
    %421 = arith.mulf %420, %296 : vector<31x31xf32>
    %422 = arith.addf %418, %421 : vector<31x31xf32>
    %c4_202 = arith.constant 4 : index
    %c5_203 = arith.constant 5 : index
    %423 = memref.load %arg6[%c4_202, %c5_203] : memref<6x6xf32, #tpu.memory_space<smem>>
    %424 = vector.broadcast %423 : f32 to vector<31x31xf32>
    %425 = arith.mulf %424, %299 : vector<31x31xf32>
    %426 = arith.addf %422, %425 : vector<31x31xf32>
    %c4_204 = arith.constant 4 : index
    %427 = memref.load %arg7[%c4_204] : memref<6xf32, #tpu.memory_space<smem>>
    %428 = vector.broadcast %427 : f32 to vector<31x31xf32>
    %429 = arith.addf %426, %428 : vector<31x31xf32>
    %c5_205 = arith.constant 5 : index
    %c0_206 = arith.constant 0 : index
    %430 = memref.load %arg6[%c5_205, %c0_206] : memref<6x6xf32, #tpu.memory_space<smem>>
    %431 = vector.broadcast %430 : f32 to vector<31x31xf32>
    %432 = arith.mulf %431, %284 : vector<31x31xf32>
    %c5_207 = arith.constant 5 : index
    %c1_208 = arith.constant 1 : index
    %433 = memref.load %arg6[%c5_207, %c1_208] : memref<6x6xf32, #tpu.memory_space<smem>>
    %434 = vector.broadcast %433 : f32 to vector<31x31xf32>
    %435 = arith.mulf %434, %287 : vector<31x31xf32>
    %436 = arith.addf %432, %435 : vector<31x31xf32>
    %c5_209 = arith.constant 5 : index
    %c2_210 = arith.constant 2 : index
    %437 = memref.load %arg6[%c5_209, %c2_210] : memref<6x6xf32, #tpu.memory_space<smem>>
    %438 = vector.broadcast %437 : f32 to vector<31x31xf32>
    %439 = arith.mulf %438, %290 : vector<31x31xf32>
    %440 = arith.addf %436, %439 : vector<31x31xf32>
    %c5_211 = arith.constant 5 : index
    %c3_212 = arith.constant 3 : index
    %441 = memref.load %arg6[%c5_211, %c3_212] : memref<6x6xf32, #tpu.memory_space<smem>>
    %442 = vector.broadcast %441 : f32 to vector<31x31xf32>
    %443 = arith.mulf %442, %293 : vector<31x31xf32>
    %444 = arith.addf %440, %443 : vector<31x31xf32>
    %c5_213 = arith.constant 5 : index
    %c4_214 = arith.constant 4 : index
    %445 = memref.load %arg6[%c5_213, %c4_214] : memref<6x6xf32, #tpu.memory_space<smem>>
    %446 = vector.broadcast %445 : f32 to vector<31x31xf32>
    %447 = arith.mulf %446, %296 : vector<31x31xf32>
    %448 = arith.addf %444, %447 : vector<31x31xf32>
    %c5_215 = arith.constant 5 : index
    %c5_216 = arith.constant 5 : index
    %449 = memref.load %arg6[%c5_215, %c5_216] : memref<6x6xf32, #tpu.memory_space<smem>>
    %450 = vector.broadcast %449 : f32 to vector<31x31xf32>
    %451 = arith.mulf %450, %299 : vector<31x31xf32>
    %452 = arith.addf %448, %451 : vector<31x31xf32>
    %c5_217 = arith.constant 5 : index
    %453 = memref.load %arg7[%c5_217] : memref<6xf32, #tpu.memory_space<smem>>
    %454 = vector.broadcast %453 : f32 to vector<31x31xf32>
    %455 = arith.addf %452, %454 : vector<31x31xf32>
    %456 = vector.shape_cast %325 : vector<31x31xf32> to vector<1x31x31xf32>
    %cst_218 = arith.constant dense<0.000000e+00> : vector<1xf32>
    %457 = vector.multi_reduction <add>, %456, %cst_218 [1, 2] : vector<1x31x31xf32> to vector<1xf32>
    %458 = vector.shape_cast %457 : vector<1xf32> to vector<1x1x1xf32>
    %459 = vector.extract %458[0, 0, 0] : f32 from vector<1x1x1xf32>
    %460 = vector.broadcast %459 : f32 to vector<1x1xf32>
    %cst_219 = arith.constant 0.00104058278 : f32
    %461 = vector.broadcast %cst_219 : f32 to vector<1x1xf32>
    %462 = arith.mulf %460, %461 : vector<1x1xf32>
    %463 = vector.shape_cast %351 : vector<31x31xf32> to vector<1x31x31xf32>
    %cst_220 = arith.constant dense<0.000000e+00> : vector<1xf32>
    %464 = vector.multi_reduction <add>, %463, %cst_220 [1, 2] : vector<1x31x31xf32> to vector<1xf32>
    %465 = vector.shape_cast %464 : vector<1xf32> to vector<1x1x1xf32>
    %466 = vector.extract %465[0, 0, 0] : f32 from vector<1x1x1xf32>
    %467 = vector.broadcast %466 : f32 to vector<1x1xf32>
    %cst_221 = arith.constant 0.00104058278 : f32
    %468 = vector.broadcast %cst_221 : f32 to vector<1x1xf32>
    %469 = arith.mulf %467, %468 : vector<1x1xf32>
    %470 = vector.shape_cast %377 : vector<31x31xf32> to vector<1x31x31xf32>
    %cst_222 = arith.constant dense<0.000000e+00> : vector<1xf32>
    %471 = vector.multi_reduction <add>, %470, %cst_222 [1, 2] : vector<1x31x31xf32> to vector<1xf32>
    %472 = vector.shape_cast %471 : vector<1xf32> to vector<1x1x1xf32>
    %473 = vector.extract %472[0, 0, 0] : f32 from vector<1x1x1xf32>
    %474 = vector.broadcast %473 : f32 to vector<1x1xf32>
    %cst_223 = arith.constant 0.00104058278 : f32
    %475 = vector.broadcast %cst_223 : f32 to vector<1x1xf32>
    %476 = arith.mulf %474, %475 : vector<1x1xf32>
    %477 = vector.shape_cast %403 : vector<31x31xf32> to vector<1x31x31xf32>
    %cst_224 = arith.constant dense<0.000000e+00> : vector<1xf32>
    %478 = vector.multi_reduction <add>, %477, %cst_224 [1, 2] : vector<1x31x31xf32> to vector<1xf32>
    %479 = vector.shape_cast %478 : vector<1xf32> to vector<1x1x1xf32>
    %480 = vector.extract %479[0, 0, 0] : f32 from vector<1x1x1xf32>
    %481 = vector.broadcast %480 : f32 to vector<1x1xf32>
    %cst_225 = arith.constant 0.00104058278 : f32
    %482 = vector.broadcast %cst_225 : f32 to vector<1x1xf32>
    %483 = arith.mulf %481, %482 : vector<1x1xf32>
    %484 = vector.shape_cast %429 : vector<31x31xf32> to vector<1x31x31xf32>
    %cst_226 = arith.constant dense<0.000000e+00> : vector<1xf32>
    %485 = vector.multi_reduction <add>, %484, %cst_226 [1, 2] : vector<1x31x31xf32> to vector<1xf32>
    %486 = vector.shape_cast %485 : vector<1xf32> to vector<1x1x1xf32>
    %487 = vector.extract %486[0, 0, 0] : f32 from vector<1x1x1xf32>
    %488 = vector.broadcast %487 : f32 to vector<1x1xf32>
    %cst_227 = arith.constant 0.00104058278 : f32
    %489 = vector.broadcast %cst_227 : f32 to vector<1x1xf32>
    %490 = arith.mulf %488, %489 : vector<1x1xf32>
    %491 = vector.shape_cast %455 : vector<31x31xf32> to vector<1x31x31xf32>
    %cst_228 = arith.constant dense<0.000000e+00> : vector<1xf32>
    %492 = vector.multi_reduction <add>, %491, %cst_228 [1, 2] : vector<1x31x31xf32> to vector<1xf32>
    %493 = vector.shape_cast %492 : vector<1xf32> to vector<1x1x1xf32>
    %494 = vector.extract %493[0, 0, 0] : f32 from vector<1x1x1xf32>
    %495 = vector.broadcast %494 : f32 to vector<1x1xf32>
    %cst_229 = arith.constant 0.00104058278 : f32
    %496 = vector.broadcast %cst_229 : f32 to vector<1x1xf32>
    %497 = arith.mulf %495, %496 : vector<1x1xf32>
    %c0_230 = arith.constant 0 : index
    %c0_231 = arith.constant 0 : index
    %498 = memref.load %arg8[%c0_230, %c0_231] : memref<6x6xf32, #tpu.memory_space<smem>>
    %499 = vector.broadcast %498 : f32 to vector<1x1xf32>
    %500 = arith.mulf %499, %462 : vector<1x1xf32>
    %c0_232 = arith.constant 0 : index
    %c1_233 = arith.constant 1 : index
    %501 = memref.load %arg8[%c0_232, %c1_233] : memref<6x6xf32, #tpu.memory_space<smem>>
    %502 = vector.broadcast %501 : f32 to vector<1x1xf32>
    %503 = arith.mulf %502, %469 : vector<1x1xf32>
    %504 = arith.addf %500, %503 : vector<1x1xf32>
    %c0_234 = arith.constant 0 : index
    %c2_235 = arith.constant 2 : index
    %505 = memref.load %arg8[%c0_234, %c2_235] : memref<6x6xf32, #tpu.memory_space<smem>>
    %506 = vector.broadcast %505 : f32 to vector<1x1xf32>
    %507 = arith.mulf %506, %476 : vector<1x1xf32>
    %508 = arith.addf %504, %507 : vector<1x1xf32>
    %c0_236 = arith.constant 0 : index
    %c3_237 = arith.constant 3 : index
    %509 = memref.load %arg8[%c0_236, %c3_237] : memref<6x6xf32, #tpu.memory_space<smem>>
    %510 = vector.broadcast %509 : f32 to vector<1x1xf32>
    %511 = arith.mulf %510, %483 : vector<1x1xf32>
    %512 = arith.addf %508, %511 : vector<1x1xf32>
    %c0_238 = arith.constant 0 : index
    %c4_239 = arith.constant 4 : index
    %513 = memref.load %arg8[%c0_238, %c4_239] : memref<6x6xf32, #tpu.memory_space<smem>>
    %514 = vector.broadcast %513 : f32 to vector<1x1xf32>
    %515 = arith.mulf %514, %490 : vector<1x1xf32>
    %516 = arith.addf %512, %515 : vector<1x1xf32>
    %c0_240 = arith.constant 0 : index
    %c5_241 = arith.constant 5 : index
    %517 = memref.load %arg8[%c0_240, %c5_241] : memref<6x6xf32, #tpu.memory_space<smem>>
    %518 = vector.broadcast %517 : f32 to vector<1x1xf32>
    %519 = arith.mulf %518, %497 : vector<1x1xf32>
    %520 = arith.addf %516, %519 : vector<1x1xf32>
    %c0_242 = arith.constant 0 : index
    %521 = memref.load %arg9[%c0_242] : memref<6xf32, #tpu.memory_space<smem>>
    %522 = vector.broadcast %521 : f32 to vector<1x1xf32>
    %523 = arith.addf %520, %522 : vector<1x1xf32>
    %c1_243 = arith.constant 1 : index
    %c0_244 = arith.constant 0 : index
    %524 = memref.load %arg8[%c1_243, %c0_244] : memref<6x6xf32, #tpu.memory_space<smem>>
    %525 = vector.broadcast %524 : f32 to vector<1x1xf32>
    %526 = arith.mulf %525, %462 : vector<1x1xf32>
    %c1_245 = arith.constant 1 : index
    %c1_246 = arith.constant 1 : index
    %527 = memref.load %arg8[%c1_245, %c1_246] : memref<6x6xf32, #tpu.memory_space<smem>>
    %528 = vector.broadcast %527 : f32 to vector<1x1xf32>
    %529 = arith.mulf %528, %469 : vector<1x1xf32>
    %530 = arith.addf %526, %529 : vector<1x1xf32>
    %c1_247 = arith.constant 1 : index
    %c2_248 = arith.constant 2 : index
    %531 = memref.load %arg8[%c1_247, %c2_248] : memref<6x6xf32, #tpu.memory_space<smem>>
    %532 = vector.broadcast %531 : f32 to vector<1x1xf32>
    %533 = arith.mulf %532, %476 : vector<1x1xf32>
    %534 = arith.addf %530, %533 : vector<1x1xf32>
    %c1_249 = arith.constant 1 : index
    %c3_250 = arith.constant 3 : index
    %535 = memref.load %arg8[%c1_249, %c3_250] : memref<6x6xf32, #tpu.memory_space<smem>>
    %536 = vector.broadcast %535 : f32 to vector<1x1xf32>
    %537 = arith.mulf %536, %483 : vector<1x1xf32>
    %538 = arith.addf %534, %537 : vector<1x1xf32>
    %c1_251 = arith.constant 1 : index
    %c4_252 = arith.constant 4 : index
    %539 = memref.load %arg8[%c1_251, %c4_252] : memref<6x6xf32, #tpu.memory_space<smem>>
    %540 = vector.broadcast %539 : f32 to vector<1x1xf32>
    %541 = arith.mulf %540, %490 : vector<1x1xf32>
    %542 = arith.addf %538, %541 : vector<1x1xf32>
    %c1_253 = arith.constant 1 : index
    %c5_254 = arith.constant 5 : index
    %543 = memref.load %arg8[%c1_253, %c5_254] : memref<6x6xf32, #tpu.memory_space<smem>>
    %544 = vector.broadcast %543 : f32 to vector<1x1xf32>
    %545 = arith.mulf %544, %497 : vector<1x1xf32>
    %546 = arith.addf %542, %545 : vector<1x1xf32>
    %c1_255 = arith.constant 1 : index
    %547 = memref.load %arg9[%c1_255] : memref<6xf32, #tpu.memory_space<smem>>
    %548 = vector.broadcast %547 : f32 to vector<1x1xf32>
    %549 = arith.addf %546, %548 : vector<1x1xf32>
    %c2_256 = arith.constant 2 : index
    %c0_257 = arith.constant 0 : index
    %550 = memref.load %arg8[%c2_256, %c0_257] : memref<6x6xf32, #tpu.memory_space<smem>>
    %551 = vector.broadcast %550 : f32 to vector<1x1xf32>
    %552 = arith.mulf %551, %462 : vector<1x1xf32>
    %c2_258 = arith.constant 2 : index
    %c1_259 = arith.constant 1 : index
    %553 = memref.load %arg8[%c2_258, %c1_259] : memref<6x6xf32, #tpu.memory_space<smem>>
    %554 = vector.broadcast %553 : f32 to vector<1x1xf32>
    %555 = arith.mulf %554, %469 : vector<1x1xf32>
    %556 = arith.addf %552, %555 : vector<1x1xf32>
    %c2_260 = arith.constant 2 : index
    %c2_261 = arith.constant 2 : index
    %557 = memref.load %arg8[%c2_260, %c2_261] : memref<6x6xf32, #tpu.memory_space<smem>>
    %558 = vector.broadcast %557 : f32 to vector<1x1xf32>
    %559 = arith.mulf %558, %476 : vector<1x1xf32>
    %560 = arith.addf %556, %559 : vector<1x1xf32>
    %c2_262 = arith.constant 2 : index
    %c3_263 = arith.constant 3 : index
    %561 = memref.load %arg8[%c2_262, %c3_263] : memref<6x6xf32, #tpu.memory_space<smem>>
    %562 = vector.broadcast %561 : f32 to vector<1x1xf32>
    %563 = arith.mulf %562, %483 : vector<1x1xf32>
    %564 = arith.addf %560, %563 : vector<1x1xf32>
    %c2_264 = arith.constant 2 : index
    %c4_265 = arith.constant 4 : index
    %565 = memref.load %arg8[%c2_264, %c4_265] : memref<6x6xf32, #tpu.memory_space<smem>>
    %566 = vector.broadcast %565 : f32 to vector<1x1xf32>
    %567 = arith.mulf %566, %490 : vector<1x1xf32>
    %568 = arith.addf %564, %567 : vector<1x1xf32>
    %c2_266 = arith.constant 2 : index
    %c5_267 = arith.constant 5 : index
    %569 = memref.load %arg8[%c2_266, %c5_267] : memref<6x6xf32, #tpu.memory_space<smem>>
    %570 = vector.broadcast %569 : f32 to vector<1x1xf32>
    %571 = arith.mulf %570, %497 : vector<1x1xf32>
    %572 = arith.addf %568, %571 : vector<1x1xf32>
    %c2_268 = arith.constant 2 : index
    %573 = memref.load %arg9[%c2_268] : memref<6xf32, #tpu.memory_space<smem>>
    %574 = vector.broadcast %573 : f32 to vector<1x1xf32>
    %575 = arith.addf %572, %574 : vector<1x1xf32>
    %c3_269 = arith.constant 3 : index
    %c0_270 = arith.constant 0 : index
    %576 = memref.load %arg8[%c3_269, %c0_270] : memref<6x6xf32, #tpu.memory_space<smem>>
    %577 = vector.broadcast %576 : f32 to vector<1x1xf32>
    %578 = arith.mulf %577, %462 : vector<1x1xf32>
    %c3_271 = arith.constant 3 : index
    %c1_272 = arith.constant 1 : index
    %579 = memref.load %arg8[%c3_271, %c1_272] : memref<6x6xf32, #tpu.memory_space<smem>>
    %580 = vector.broadcast %579 : f32 to vector<1x1xf32>
    %581 = arith.mulf %580, %469 : vector<1x1xf32>
    %582 = arith.addf %578, %581 : vector<1x1xf32>
    %c3_273 = arith.constant 3 : index
    %c2_274 = arith.constant 2 : index
    %583 = memref.load %arg8[%c3_273, %c2_274] : memref<6x6xf32, #tpu.memory_space<smem>>
    %584 = vector.broadcast %583 : f32 to vector<1x1xf32>
    %585 = arith.mulf %584, %476 : vector<1x1xf32>
    %586 = arith.addf %582, %585 : vector<1x1xf32>
    %c3_275 = arith.constant 3 : index
    %c3_276 = arith.constant 3 : index
    %587 = memref.load %arg8[%c3_275, %c3_276] : memref<6x6xf32, #tpu.memory_space<smem>>
    %588 = vector.broadcast %587 : f32 to vector<1x1xf32>
    %589 = arith.mulf %588, %483 : vector<1x1xf32>
    %590 = arith.addf %586, %589 : vector<1x1xf32>
    %c3_277 = arith.constant 3 : index
    %c4_278 = arith.constant 4 : index
    %591 = memref.load %arg8[%c3_277, %c4_278] : memref<6x6xf32, #tpu.memory_space<smem>>
    %592 = vector.broadcast %591 : f32 to vector<1x1xf32>
    %593 = arith.mulf %592, %490 : vector<1x1xf32>
    %594 = arith.addf %590, %593 : vector<1x1xf32>
    %c3_279 = arith.constant 3 : index
    %c5_280 = arith.constant 5 : index
    %595 = memref.load %arg8[%c3_279, %c5_280] : memref<6x6xf32, #tpu.memory_space<smem>>
    %596 = vector.broadcast %595 : f32 to vector<1x1xf32>
    %597 = arith.mulf %596, %497 : vector<1x1xf32>
    %598 = arith.addf %594, %597 : vector<1x1xf32>
    %c3_281 = arith.constant 3 : index
    %599 = memref.load %arg9[%c3_281] : memref<6xf32, #tpu.memory_space<smem>>
    %600 = vector.broadcast %599 : f32 to vector<1x1xf32>
    %601 = arith.addf %598, %600 : vector<1x1xf32>
    %c4_282 = arith.constant 4 : index
    %c0_283 = arith.constant 0 : index
    %602 = memref.load %arg8[%c4_282, %c0_283] : memref<6x6xf32, #tpu.memory_space<smem>>
    %603 = vector.broadcast %602 : f32 to vector<1x1xf32>
    %604 = arith.mulf %603, %462 : vector<1x1xf32>
    %c4_284 = arith.constant 4 : index
    %c1_285 = arith.constant 1 : index
    %605 = memref.load %arg8[%c4_284, %c1_285] : memref<6x6xf32, #tpu.memory_space<smem>>
    %606 = vector.broadcast %605 : f32 to vector<1x1xf32>
    %607 = arith.mulf %606, %469 : vector<1x1xf32>
    %608 = arith.addf %604, %607 : vector<1x1xf32>
    %c4_286 = arith.constant 4 : index
    %c2_287 = arith.constant 2 : index
    %609 = memref.load %arg8[%c4_286, %c2_287] : memref<6x6xf32, #tpu.memory_space<smem>>
    %610 = vector.broadcast %609 : f32 to vector<1x1xf32>
    %611 = arith.mulf %610, %476 : vector<1x1xf32>
    %612 = arith.addf %608, %611 : vector<1x1xf32>
    %c4_288 = arith.constant 4 : index
    %c3_289 = arith.constant 3 : index
    %613 = memref.load %arg8[%c4_288, %c3_289] : memref<6x6xf32, #tpu.memory_space<smem>>
    %614 = vector.broadcast %613 : f32 to vector<1x1xf32>
    %615 = arith.mulf %614, %483 : vector<1x1xf32>
    %616 = arith.addf %612, %615 : vector<1x1xf32>
    %c4_290 = arith.constant 4 : index
    %c4_291 = arith.constant 4 : index
    %617 = memref.load %arg8[%c4_290, %c4_291] : memref<6x6xf32, #tpu.memory_space<smem>>
    %618 = vector.broadcast %617 : f32 to vector<1x1xf32>
    %619 = arith.mulf %618, %490 : vector<1x1xf32>
    %620 = arith.addf %616, %619 : vector<1x1xf32>
    %c4_292 = arith.constant 4 : index
    %c5_293 = arith.constant 5 : index
    %621 = memref.load %arg8[%c4_292, %c5_293] : memref<6x6xf32, #tpu.memory_space<smem>>
    %622 = vector.broadcast %621 : f32 to vector<1x1xf32>
    %623 = arith.mulf %622, %497 : vector<1x1xf32>
    %624 = arith.addf %620, %623 : vector<1x1xf32>
    %c4_294 = arith.constant 4 : index
    %625 = memref.load %arg9[%c4_294] : memref<6xf32, #tpu.memory_space<smem>>
    %626 = vector.broadcast %625 : f32 to vector<1x1xf32>
    %627 = arith.addf %624, %626 : vector<1x1xf32>
    %c5_295 = arith.constant 5 : index
    %c0_296 = arith.constant 0 : index
    %628 = memref.load %arg8[%c5_295, %c0_296] : memref<6x6xf32, #tpu.memory_space<smem>>
    %629 = vector.broadcast %628 : f32 to vector<1x1xf32>
    %630 = arith.mulf %629, %462 : vector<1x1xf32>
    %c5_297 = arith.constant 5 : index
    %c1_298 = arith.constant 1 : index
    %631 = memref.load %arg8[%c5_297, %c1_298] : memref<6x6xf32, #tpu.memory_space<smem>>
    %632 = vector.broadcast %631 : f32 to vector<1x1xf32>
    %633 = arith.mulf %632, %469 : vector<1x1xf32>
    %634 = arith.addf %630, %633 : vector<1x1xf32>
    %c5_299 = arith.constant 5 : index
    %c2_300 = arith.constant 2 : index
    %635 = memref.load %arg8[%c5_299, %c2_300] : memref<6x6xf32, #tpu.memory_space<smem>>
    %636 = vector.broadcast %635 : f32 to vector<1x1xf32>
    %637 = arith.mulf %636, %476 : vector<1x1xf32>
    %638 = arith.addf %634, %637 : vector<1x1xf32>
    %c5_301 = arith.constant 5 : index
    %c3_302 = arith.constant 3 : index
    %639 = memref.load %arg8[%c5_301, %c3_302] : memref<6x6xf32, #tpu.memory_space<smem>>
    %640 = vector.broadcast %639 : f32 to vector<1x1xf32>
    %641 = arith.mulf %640, %483 : vector<1x1xf32>
    %642 = arith.addf %638, %641 : vector<1x1xf32>
    %c5_303 = arith.constant 5 : index
    %c4_304 = arith.constant 4 : index
    %643 = memref.load %arg8[%c5_303, %c4_304] : memref<6x6xf32, #tpu.memory_space<smem>>
    %644 = vector.broadcast %643 : f32 to vector<1x1xf32>
    %645 = arith.mulf %644, %490 : vector<1x1xf32>
    %646 = arith.addf %642, %645 : vector<1x1xf32>
    %c5_305 = arith.constant 5 : index
    %c5_306 = arith.constant 5 : index
    %647 = memref.load %arg8[%c5_305, %c5_306] : memref<6x6xf32, #tpu.memory_space<smem>>
    %648 = vector.broadcast %647 : f32 to vector<1x1xf32>
    %649 = arith.mulf %648, %497 : vector<1x1xf32>
    %650 = arith.addf %646, %649 : vector<1x1xf32>
    %c5_307 = arith.constant 5 : index
    %651 = memref.load %arg9[%c5_307] : memref<6xf32, #tpu.memory_space<smem>>
    %652 = vector.broadcast %651 : f32 to vector<1x1xf32>
    %653 = arith.addf %650, %652 : vector<1x1xf32>
    %cst_308 = arith.constant 0.000000e+00 : f32
    %654 = vector.broadcast %cst_308 : f32 to vector<1x1xf32>
    %655 = arith.maximumf %523, %654 : vector<1x1xf32>
    %cst_309 = arith.constant 0.000000e+00 : f32
    %656 = vector.broadcast %cst_309 : f32 to vector<1x1xf32>
    %657 = arith.maximumf %549, %656 : vector<1x1xf32>
    %cst_310 = arith.constant 0.000000e+00 : f32
    %658 = vector.broadcast %cst_310 : f32 to vector<1x1xf32>
    %659 = arith.maximumf %575, %658 : vector<1x1xf32>
    %cst_311 = arith.constant 0.000000e+00 : f32
    %660 = vector.broadcast %cst_311 : f32 to vector<1x1xf32>
    %661 = arith.maximumf %601, %660 : vector<1x1xf32>
    %cst_312 = arith.constant 0.000000e+00 : f32
    %662 = vector.broadcast %cst_312 : f32 to vector<1x1xf32>
    %663 = arith.maximumf %627, %662 : vector<1x1xf32>
    %cst_313 = arith.constant 0.000000e+00 : f32
    %664 = vector.broadcast %cst_313 : f32 to vector<1x1xf32>
    %665 = arith.maximumf %653, %664 : vector<1x1xf32>
    %c0_314 = arith.constant 0 : index
    %c0_315 = arith.constant 0 : index
    %666 = memref.load %arg10[%c0_314, %c0_315] : memref<6x6xf32, #tpu.memory_space<smem>>
    %667 = vector.broadcast %666 : f32 to vector<1x1xf32>
    %668 = arith.mulf %667, %655 : vector<1x1xf32>
    %c0_316 = arith.constant 0 : index
    %c1_317 = arith.constant 1 : index
    %669 = memref.load %arg10[%c0_316, %c1_317] : memref<6x6xf32, #tpu.memory_space<smem>>
    %670 = vector.broadcast %669 : f32 to vector<1x1xf32>
    %671 = arith.mulf %670, %657 : vector<1x1xf32>
    %672 = arith.addf %668, %671 : vector<1x1xf32>
    %c0_318 = arith.constant 0 : index
    %c2_319 = arith.constant 2 : index
    %673 = memref.load %arg10[%c0_318, %c2_319] : memref<6x6xf32, #tpu.memory_space<smem>>
    %674 = vector.broadcast %673 : f32 to vector<1x1xf32>
    %675 = arith.mulf %674, %659 : vector<1x1xf32>
    %676 = arith.addf %672, %675 : vector<1x1xf32>
    %c0_320 = arith.constant 0 : index
    %c3_321 = arith.constant 3 : index
    %677 = memref.load %arg10[%c0_320, %c3_321] : memref<6x6xf32, #tpu.memory_space<smem>>
    %678 = vector.broadcast %677 : f32 to vector<1x1xf32>
    %679 = arith.mulf %678, %661 : vector<1x1xf32>
    %680 = arith.addf %676, %679 : vector<1x1xf32>
    %c0_322 = arith.constant 0 : index
    %c4_323 = arith.constant 4 : index
    %681 = memref.load %arg10[%c0_322, %c4_323] : memref<6x6xf32, #tpu.memory_space<smem>>
    %682 = vector.broadcast %681 : f32 to vector<1x1xf32>
    %683 = arith.mulf %682, %663 : vector<1x1xf32>
    %684 = arith.addf %680, %683 : vector<1x1xf32>
    %c0_324 = arith.constant 0 : index
    %c5_325 = arith.constant 5 : index
    %685 = memref.load %arg10[%c0_324, %c5_325] : memref<6x6xf32, #tpu.memory_space<smem>>
    %686 = vector.broadcast %685 : f32 to vector<1x1xf32>
    %687 = arith.mulf %686, %665 : vector<1x1xf32>
    %688 = arith.addf %684, %687 : vector<1x1xf32>
    %c0_326 = arith.constant 0 : index
    %689 = memref.load %arg11[%c0_326] : memref<6xf32, #tpu.memory_space<smem>>
    %690 = vector.broadcast %689 : f32 to vector<1x1xf32>
    %691 = arith.addf %688, %690 : vector<1x1xf32>
    %c1_327 = arith.constant 1 : index
    %c0_328 = arith.constant 0 : index
    %692 = memref.load %arg10[%c1_327, %c0_328] : memref<6x6xf32, #tpu.memory_space<smem>>
    %693 = vector.broadcast %692 : f32 to vector<1x1xf32>
    %694 = arith.mulf %693, %655 : vector<1x1xf32>
    %c1_329 = arith.constant 1 : index
    %c1_330 = arith.constant 1 : index
    %695 = memref.load %arg10[%c1_329, %c1_330] : memref<6x6xf32, #tpu.memory_space<smem>>
    %696 = vector.broadcast %695 : f32 to vector<1x1xf32>
    %697 = arith.mulf %696, %657 : vector<1x1xf32>
    %698 = arith.addf %694, %697 : vector<1x1xf32>
    %c1_331 = arith.constant 1 : index
    %c2_332 = arith.constant 2 : index
    %699 = memref.load %arg10[%c1_331, %c2_332] : memref<6x6xf32, #tpu.memory_space<smem>>
    %700 = vector.broadcast %699 : f32 to vector<1x1xf32>
    %701 = arith.mulf %700, %659 : vector<1x1xf32>
    %702 = arith.addf %698, %701 : vector<1x1xf32>
    %c1_333 = arith.constant 1 : index
    %c3_334 = arith.constant 3 : index
    %703 = memref.load %arg10[%c1_333, %c3_334] : memref<6x6xf32, #tpu.memory_space<smem>>
    %704 = vector.broadcast %703 : f32 to vector<1x1xf32>
    %705 = arith.mulf %704, %661 : vector<1x1xf32>
    %706 = arith.addf %702, %705 : vector<1x1xf32>
    %c1_335 = arith.constant 1 : index
    %c4_336 = arith.constant 4 : index
    %707 = memref.load %arg10[%c1_335, %c4_336] : memref<6x6xf32, #tpu.memory_space<smem>>
    %708 = vector.broadcast %707 : f32 to vector<1x1xf32>
    %709 = arith.mulf %708, %663 : vector<1x1xf32>
    %710 = arith.addf %706, %709 : vector<1x1xf32>
    %c1_337 = arith.constant 1 : index
    %c5_338 = arith.constant 5 : index
    %711 = memref.load %arg10[%c1_337, %c5_338] : memref<6x6xf32, #tpu.memory_space<smem>>
    %712 = vector.broadcast %711 : f32 to vector<1x1xf32>
    %713 = arith.mulf %712, %665 : vector<1x1xf32>
    %714 = arith.addf %710, %713 : vector<1x1xf32>
    %c1_339 = arith.constant 1 : index
    %715 = memref.load %arg11[%c1_339] : memref<6xf32, #tpu.memory_space<smem>>
    %716 = vector.broadcast %715 : f32 to vector<1x1xf32>
    %717 = arith.addf %714, %716 : vector<1x1xf32>
    %c2_340 = arith.constant 2 : index
    %c0_341 = arith.constant 0 : index
    %718 = memref.load %arg10[%c2_340, %c0_341] : memref<6x6xf32, #tpu.memory_space<smem>>
    %719 = vector.broadcast %718 : f32 to vector<1x1xf32>
    %720 = arith.mulf %719, %655 : vector<1x1xf32>
    %c2_342 = arith.constant 2 : index
    %c1_343 = arith.constant 1 : index
    %721 = memref.load %arg10[%c2_342, %c1_343] : memref<6x6xf32, #tpu.memory_space<smem>>
    %722 = vector.broadcast %721 : f32 to vector<1x1xf32>
    %723 = arith.mulf %722, %657 : vector<1x1xf32>
    %724 = arith.addf %720, %723 : vector<1x1xf32>
    %c2_344 = arith.constant 2 : index
    %c2_345 = arith.constant 2 : index
    %725 = memref.load %arg10[%c2_344, %c2_345] : memref<6x6xf32, #tpu.memory_space<smem>>
    %726 = vector.broadcast %725 : f32 to vector<1x1xf32>
    %727 = arith.mulf %726, %659 : vector<1x1xf32>
    %728 = arith.addf %724, %727 : vector<1x1xf32>
    %c2_346 = arith.constant 2 : index
    %c3_347 = arith.constant 3 : index
    %729 = memref.load %arg10[%c2_346, %c3_347] : memref<6x6xf32, #tpu.memory_space<smem>>
    %730 = vector.broadcast %729 : f32 to vector<1x1xf32>
    %731 = arith.mulf %730, %661 : vector<1x1xf32>
    %732 = arith.addf %728, %731 : vector<1x1xf32>
    %c2_348 = arith.constant 2 : index
    %c4_349 = arith.constant 4 : index
    %733 = memref.load %arg10[%c2_348, %c4_349] : memref<6x6xf32, #tpu.memory_space<smem>>
    %734 = vector.broadcast %733 : f32 to vector<1x1xf32>
    %735 = arith.mulf %734, %663 : vector<1x1xf32>
    %736 = arith.addf %732, %735 : vector<1x1xf32>
    %c2_350 = arith.constant 2 : index
    %c5_351 = arith.constant 5 : index
    %737 = memref.load %arg10[%c2_350, %c5_351] : memref<6x6xf32, #tpu.memory_space<smem>>
    %738 = vector.broadcast %737 : f32 to vector<1x1xf32>
    %739 = arith.mulf %738, %665 : vector<1x1xf32>
    %740 = arith.addf %736, %739 : vector<1x1xf32>
    %c2_352 = arith.constant 2 : index
    %741 = memref.load %arg11[%c2_352] : memref<6xf32, #tpu.memory_space<smem>>
    %742 = vector.broadcast %741 : f32 to vector<1x1xf32>
    %743 = arith.addf %740, %742 : vector<1x1xf32>
    %c3_353 = arith.constant 3 : index
    %c0_354 = arith.constant 0 : index
    %744 = memref.load %arg10[%c3_353, %c0_354] : memref<6x6xf32, #tpu.memory_space<smem>>
    %745 = vector.broadcast %744 : f32 to vector<1x1xf32>
    %746 = arith.mulf %745, %655 : vector<1x1xf32>
    %c3_355 = arith.constant 3 : index
    %c1_356 = arith.constant 1 : index
    %747 = memref.load %arg10[%c3_355, %c1_356] : memref<6x6xf32, #tpu.memory_space<smem>>
    %748 = vector.broadcast %747 : f32 to vector<1x1xf32>
    %749 = arith.mulf %748, %657 : vector<1x1xf32>
    %750 = arith.addf %746, %749 : vector<1x1xf32>
    %c3_357 = arith.constant 3 : index
    %c2_358 = arith.constant 2 : index
    %751 = memref.load %arg10[%c3_357, %c2_358] : memref<6x6xf32, #tpu.memory_space<smem>>
    %752 = vector.broadcast %751 : f32 to vector<1x1xf32>
    %753 = arith.mulf %752, %659 : vector<1x1xf32>
    %754 = arith.addf %750, %753 : vector<1x1xf32>
    %c3_359 = arith.constant 3 : index
    %c3_360 = arith.constant 3 : index
    %755 = memref.load %arg10[%c3_359, %c3_360] : memref<6x6xf32, #tpu.memory_space<smem>>
    %756 = vector.broadcast %755 : f32 to vector<1x1xf32>
    %757 = arith.mulf %756, %661 : vector<1x1xf32>
    %758 = arith.addf %754, %757 : vector<1x1xf32>
    %c3_361 = arith.constant 3 : index
    %c4_362 = arith.constant 4 : index
    %759 = memref.load %arg10[%c3_361, %c4_362] : memref<6x6xf32, #tpu.memory_space<smem>>
    %760 = vector.broadcast %759 : f32 to vector<1x1xf32>
    %761 = arith.mulf %760, %663 : vector<1x1xf32>
    %762 = arith.addf %758, %761 : vector<1x1xf32>
    %c3_363 = arith.constant 3 : index
    %c5_364 = arith.constant 5 : index
    %763 = memref.load %arg10[%c3_363, %c5_364] : memref<6x6xf32, #tpu.memory_space<smem>>
    %764 = vector.broadcast %763 : f32 to vector<1x1xf32>
    %765 = arith.mulf %764, %665 : vector<1x1xf32>
    %766 = arith.addf %762, %765 : vector<1x1xf32>
    %c3_365 = arith.constant 3 : index
    %767 = memref.load %arg11[%c3_365] : memref<6xf32, #tpu.memory_space<smem>>
    %768 = vector.broadcast %767 : f32 to vector<1x1xf32>
    %769 = arith.addf %766, %768 : vector<1x1xf32>
    %c4_366 = arith.constant 4 : index
    %c0_367 = arith.constant 0 : index
    %770 = memref.load %arg10[%c4_366, %c0_367] : memref<6x6xf32, #tpu.memory_space<smem>>
    %771 = vector.broadcast %770 : f32 to vector<1x1xf32>
    %772 = arith.mulf %771, %655 : vector<1x1xf32>
    %c4_368 = arith.constant 4 : index
    %c1_369 = arith.constant 1 : index
    %773 = memref.load %arg10[%c4_368, %c1_369] : memref<6x6xf32, #tpu.memory_space<smem>>
    %774 = vector.broadcast %773 : f32 to vector<1x1xf32>
    %775 = arith.mulf %774, %657 : vector<1x1xf32>
    %776 = arith.addf %772, %775 : vector<1x1xf32>
    %c4_370 = arith.constant 4 : index
    %c2_371 = arith.constant 2 : index
    %777 = memref.load %arg10[%c4_370, %c2_371] : memref<6x6xf32, #tpu.memory_space<smem>>
    %778 = vector.broadcast %777 : f32 to vector<1x1xf32>
    %779 = arith.mulf %778, %659 : vector<1x1xf32>
    %780 = arith.addf %776, %779 : vector<1x1xf32>
    %c4_372 = arith.constant 4 : index
    %c3_373 = arith.constant 3 : index
    %781 = memref.load %arg10[%c4_372, %c3_373] : memref<6x6xf32, #tpu.memory_space<smem>>
    %782 = vector.broadcast %781 : f32 to vector<1x1xf32>
    %783 = arith.mulf %782, %661 : vector<1x1xf32>
    %784 = arith.addf %780, %783 : vector<1x1xf32>
    %c4_374 = arith.constant 4 : index
    %c4_375 = arith.constant 4 : index
    %785 = memref.load %arg10[%c4_374, %c4_375] : memref<6x6xf32, #tpu.memory_space<smem>>
    %786 = vector.broadcast %785 : f32 to vector<1x1xf32>
    %787 = arith.mulf %786, %663 : vector<1x1xf32>
    %788 = arith.addf %784, %787 : vector<1x1xf32>
    %c4_376 = arith.constant 4 : index
    %c5_377 = arith.constant 5 : index
    %789 = memref.load %arg10[%c4_376, %c5_377] : memref<6x6xf32, #tpu.memory_space<smem>>
    %790 = vector.broadcast %789 : f32 to vector<1x1xf32>
    %791 = arith.mulf %790, %665 : vector<1x1xf32>
    %792 = arith.addf %788, %791 : vector<1x1xf32>
    %c4_378 = arith.constant 4 : index
    %793 = memref.load %arg11[%c4_378] : memref<6xf32, #tpu.memory_space<smem>>
    %794 = vector.broadcast %793 : f32 to vector<1x1xf32>
    %795 = arith.addf %792, %794 : vector<1x1xf32>
    %c5_379 = arith.constant 5 : index
    %c0_380 = arith.constant 0 : index
    %796 = memref.load %arg10[%c5_379, %c0_380] : memref<6x6xf32, #tpu.memory_space<smem>>
    %797 = vector.broadcast %796 : f32 to vector<1x1xf32>
    %798 = arith.mulf %797, %655 : vector<1x1xf32>
    %c5_381 = arith.constant 5 : index
    %c1_382 = arith.constant 1 : index
    %799 = memref.load %arg10[%c5_381, %c1_382] : memref<6x6xf32, #tpu.memory_space<smem>>
    %800 = vector.broadcast %799 : f32 to vector<1x1xf32>
    %801 = arith.mulf %800, %657 : vector<1x1xf32>
    %802 = arith.addf %798, %801 : vector<1x1xf32>
    %c5_383 = arith.constant 5 : index
    %c2_384 = arith.constant 2 : index
    %803 = memref.load %arg10[%c5_383, %c2_384] : memref<6x6xf32, #tpu.memory_space<smem>>
    %804 = vector.broadcast %803 : f32 to vector<1x1xf32>
    %805 = arith.mulf %804, %659 : vector<1x1xf32>
    %806 = arith.addf %802, %805 : vector<1x1xf32>
    %c5_385 = arith.constant 5 : index
    %c3_386 = arith.constant 3 : index
    %807 = memref.load %arg10[%c5_385, %c3_386] : memref<6x6xf32, #tpu.memory_space<smem>>
    %808 = vector.broadcast %807 : f32 to vector<1x1xf32>
    %809 = arith.mulf %808, %661 : vector<1x1xf32>
    %810 = arith.addf %806, %809 : vector<1x1xf32>
    %c5_387 = arith.constant 5 : index
    %c4_388 = arith.constant 4 : index
    %811 = memref.load %arg10[%c5_387, %c4_388] : memref<6x6xf32, #tpu.memory_space<smem>>
    %812 = vector.broadcast %811 : f32 to vector<1x1xf32>
    %813 = arith.mulf %812, %663 : vector<1x1xf32>
    %814 = arith.addf %810, %813 : vector<1x1xf32>
    %c5_389 = arith.constant 5 : index
    %c5_390 = arith.constant 5 : index
    %815 = memref.load %arg10[%c5_389, %c5_390] : memref<6x6xf32, #tpu.memory_space<smem>>
    %816 = vector.broadcast %815 : f32 to vector<1x1xf32>
    %817 = arith.mulf %816, %665 : vector<1x1xf32>
    %818 = arith.addf %814, %817 : vector<1x1xf32>
    %c5_391 = arith.constant 5 : index
    %819 = memref.load %arg11[%c5_391] : memref<6xf32, #tpu.memory_space<smem>>
    %820 = vector.broadcast %819 : f32 to vector<1x1xf32>
    %821 = arith.addf %818, %820 : vector<1x1xf32>
    %822 = arith.negf %691 : vector<1x1xf32>
    %823 = math.exp %822 : vector<1x1xf32>
    %cst_392 = arith.constant 1.000000e+00 : f32
    %824 = vector.broadcast %cst_392 : f32 to vector<1x1xf32>
    %825 = arith.addf %824, %823 : vector<1x1xf32>
    %826 = arith.divf %824, %825 : vector<1x1xf32>
    %827 = arith.negf %717 : vector<1x1xf32>
    %828 = math.exp %827 : vector<1x1xf32>
    %cst_393 = arith.constant 1.000000e+00 : f32
    %829 = vector.broadcast %cst_393 : f32 to vector<1x1xf32>
    %830 = arith.addf %829, %828 : vector<1x1xf32>
    %831 = arith.divf %829, %830 : vector<1x1xf32>
    %832 = arith.negf %743 : vector<1x1xf32>
    %833 = math.exp %832 : vector<1x1xf32>
    %cst_394 = arith.constant 1.000000e+00 : f32
    %834 = vector.broadcast %cst_394 : f32 to vector<1x1xf32>
    %835 = arith.addf %834, %833 : vector<1x1xf32>
    %836 = arith.divf %834, %835 : vector<1x1xf32>
    %837 = arith.negf %769 : vector<1x1xf32>
    %838 = math.exp %837 : vector<1x1xf32>
    %cst_395 = arith.constant 1.000000e+00 : f32
    %839 = vector.broadcast %cst_395 : f32 to vector<1x1xf32>
    %840 = arith.addf %839, %838 : vector<1x1xf32>
    %841 = arith.divf %839, %840 : vector<1x1xf32>
    %842 = arith.negf %795 : vector<1x1xf32>
    %843 = math.exp %842 : vector<1x1xf32>
    %cst_396 = arith.constant 1.000000e+00 : f32
    %844 = vector.broadcast %cst_396 : f32 to vector<1x1xf32>
    %845 = arith.addf %844, %843 : vector<1x1xf32>
    %846 = arith.divf %844, %845 : vector<1x1xf32>
    %847 = arith.negf %821 : vector<1x1xf32>
    %848 = math.exp %847 : vector<1x1xf32>
    %cst_397 = arith.constant 1.000000e+00 : f32
    %849 = vector.broadcast %cst_397 : f32 to vector<1x1xf32>
    %850 = arith.addf %849, %848 : vector<1x1xf32>
    %851 = arith.divf %849, %850 : vector<1x1xf32>
    %852 = vector.broadcast %826 : vector<1x1xf32> to vector<31x31xf32>
    %853 = arith.mulf %325, %852 : vector<31x31xf32>
    %854 = vector.broadcast %831 : vector<1x1xf32> to vector<31x31xf32>
    %855 = arith.mulf %351, %854 : vector<31x31xf32>
    %856 = vector.broadcast %836 : vector<1x1xf32> to vector<31x31xf32>
    %857 = arith.mulf %377, %856 : vector<31x31xf32>
    %858 = vector.broadcast %841 : vector<1x1xf32> to vector<31x31xf32>
    %859 = arith.mulf %403, %858 : vector<31x31xf32>
    %860 = vector.broadcast %846 : vector<1x1xf32> to vector<31x31xf32>
    %861 = arith.mulf %429, %860 : vector<31x31xf32>
    %862 = vector.broadcast %851 : vector<1x1xf32> to vector<31x31xf32>
    %863 = arith.mulf %455, %862 : vector<31x31xf32>
    %c0_398 = arith.constant 0 : index
    %c0_399 = arith.constant 0 : index
    %864 = memref.load %arg12[%c0_398, %c0_399] : memref<6x6xf32, #tpu.memory_space<smem>>
    %865 = vector.broadcast %864 : f32 to vector<31x31xf32>
    %866 = arith.mulf %865, %853 : vector<31x31xf32>
    %c0_400 = arith.constant 0 : index
    %c1_401 = arith.constant 1 : index
    %867 = memref.load %arg12[%c0_400, %c1_401] : memref<6x6xf32, #tpu.memory_space<smem>>
    %868 = vector.broadcast %867 : f32 to vector<31x31xf32>
    %869 = arith.mulf %868, %855 : vector<31x31xf32>
    %870 = arith.addf %866, %869 : vector<31x31xf32>
    %c0_402 = arith.constant 0 : index
    %c2_403 = arith.constant 2 : index
    %871 = memref.load %arg12[%c0_402, %c2_403] : memref<6x6xf32, #tpu.memory_space<smem>>
    %872 = vector.broadcast %871 : f32 to vector<31x31xf32>
    %873 = arith.mulf %872, %857 : vector<31x31xf32>
    %874 = arith.addf %870, %873 : vector<31x31xf32>
    %c0_404 = arith.constant 0 : index
    %c3_405 = arith.constant 3 : index
    %875 = memref.load %arg12[%c0_404, %c3_405] : memref<6x6xf32, #tpu.memory_space<smem>>
    %876 = vector.broadcast %875 : f32 to vector<31x31xf32>
    %877 = arith.mulf %876, %859 : vector<31x31xf32>
    %878 = arith.addf %874, %877 : vector<31x31xf32>
    %c0_406 = arith.constant 0 : index
    %c4_407 = arith.constant 4 : index
    %879 = memref.load %arg12[%c0_406, %c4_407] : memref<6x6xf32, #tpu.memory_space<smem>>
    %880 = vector.broadcast %879 : f32 to vector<31x31xf32>
    %881 = arith.mulf %880, %861 : vector<31x31xf32>
    %882 = arith.addf %878, %881 : vector<31x31xf32>
    %c0_408 = arith.constant 0 : index
    %c5_409 = arith.constant 5 : index
    %883 = memref.load %arg12[%c0_408, %c5_409] : memref<6x6xf32, #tpu.memory_space<smem>>
    %884 = vector.broadcast %883 : f32 to vector<31x31xf32>
    %885 = arith.mulf %884, %863 : vector<31x31xf32>
    %886 = arith.addf %882, %885 : vector<31x31xf32>
    %c0_410 = arith.constant 0 : index
    %887 = memref.load %arg13[%c0_410] : memref<6xf32, #tpu.memory_space<smem>>
    %888 = vector.broadcast %887 : f32 to vector<31x31xf32>
    %889 = arith.addf %886, %888 : vector<31x31xf32>
    %c1_411 = arith.constant 1 : index
    %c0_412 = arith.constant 0 : index
    %890 = memref.load %arg12[%c1_411, %c0_412] : memref<6x6xf32, #tpu.memory_space<smem>>
    %891 = vector.broadcast %890 : f32 to vector<31x31xf32>
    %892 = arith.mulf %891, %853 : vector<31x31xf32>
    %c1_413 = arith.constant 1 : index
    %c1_414 = arith.constant 1 : index
    %893 = memref.load %arg12[%c1_413, %c1_414] : memref<6x6xf32, #tpu.memory_space<smem>>
    %894 = vector.broadcast %893 : f32 to vector<31x31xf32>
    %895 = arith.mulf %894, %855 : vector<31x31xf32>
    %896 = arith.addf %892, %895 : vector<31x31xf32>
    %c1_415 = arith.constant 1 : index
    %c2_416 = arith.constant 2 : index
    %897 = memref.load %arg12[%c1_415, %c2_416] : memref<6x6xf32, #tpu.memory_space<smem>>
    %898 = vector.broadcast %897 : f32 to vector<31x31xf32>
    %899 = arith.mulf %898, %857 : vector<31x31xf32>
    %900 = arith.addf %896, %899 : vector<31x31xf32>
    %c1_417 = arith.constant 1 : index
    %c3_418 = arith.constant 3 : index
    %901 = memref.load %arg12[%c1_417, %c3_418] : memref<6x6xf32, #tpu.memory_space<smem>>
    %902 = vector.broadcast %901 : f32 to vector<31x31xf32>
    %903 = arith.mulf %902, %859 : vector<31x31xf32>
    %904 = arith.addf %900, %903 : vector<31x31xf32>
    %c1_419 = arith.constant 1 : index
    %c4_420 = arith.constant 4 : index
    %905 = memref.load %arg12[%c1_419, %c4_420] : memref<6x6xf32, #tpu.memory_space<smem>>
    %906 = vector.broadcast %905 : f32 to vector<31x31xf32>
    %907 = arith.mulf %906, %861 : vector<31x31xf32>
    %908 = arith.addf %904, %907 : vector<31x31xf32>
    %c1_421 = arith.constant 1 : index
    %c5_422 = arith.constant 5 : index
    %909 = memref.load %arg12[%c1_421, %c5_422] : memref<6x6xf32, #tpu.memory_space<smem>>
    %910 = vector.broadcast %909 : f32 to vector<31x31xf32>
    %911 = arith.mulf %910, %863 : vector<31x31xf32>
    %912 = arith.addf %908, %911 : vector<31x31xf32>
    %c1_423 = arith.constant 1 : index
    %913 = memref.load %arg13[%c1_423] : memref<6xf32, #tpu.memory_space<smem>>
    %914 = vector.broadcast %913 : f32 to vector<31x31xf32>
    %915 = arith.addf %912, %914 : vector<31x31xf32>
    %c2_424 = arith.constant 2 : index
    %c0_425 = arith.constant 0 : index
    %916 = memref.load %arg12[%c2_424, %c0_425] : memref<6x6xf32, #tpu.memory_space<smem>>
    %917 = vector.broadcast %916 : f32 to vector<31x31xf32>
    %918 = arith.mulf %917, %853 : vector<31x31xf32>
    %c2_426 = arith.constant 2 : index
    %c1_427 = arith.constant 1 : index
    %919 = memref.load %arg12[%c2_426, %c1_427] : memref<6x6xf32, #tpu.memory_space<smem>>
    %920 = vector.broadcast %919 : f32 to vector<31x31xf32>
    %921 = arith.mulf %920, %855 : vector<31x31xf32>
    %922 = arith.addf %918, %921 : vector<31x31xf32>
    %c2_428 = arith.constant 2 : index
    %c2_429 = arith.constant 2 : index
    %923 = memref.load %arg12[%c2_428, %c2_429] : memref<6x6xf32, #tpu.memory_space<smem>>
    %924 = vector.broadcast %923 : f32 to vector<31x31xf32>
    %925 = arith.mulf %924, %857 : vector<31x31xf32>
    %926 = arith.addf %922, %925 : vector<31x31xf32>
    %c2_430 = arith.constant 2 : index
    %c3_431 = arith.constant 3 : index
    %927 = memref.load %arg12[%c2_430, %c3_431] : memref<6x6xf32, #tpu.memory_space<smem>>
    %928 = vector.broadcast %927 : f32 to vector<31x31xf32>
    %929 = arith.mulf %928, %859 : vector<31x31xf32>
    %930 = arith.addf %926, %929 : vector<31x31xf32>
    %c2_432 = arith.constant 2 : index
    %c4_433 = arith.constant 4 : index
    %931 = memref.load %arg12[%c2_432, %c4_433] : memref<6x6xf32, #tpu.memory_space<smem>>
    %932 = vector.broadcast %931 : f32 to vector<31x31xf32>
    %933 = arith.mulf %932, %861 : vector<31x31xf32>
    %934 = arith.addf %930, %933 : vector<31x31xf32>
    %c2_434 = arith.constant 2 : index
    %c5_435 = arith.constant 5 : index
    %935 = memref.load %arg12[%c2_434, %c5_435] : memref<6x6xf32, #tpu.memory_space<smem>>
    %936 = vector.broadcast %935 : f32 to vector<31x31xf32>
    %937 = arith.mulf %936, %863 : vector<31x31xf32>
    %938 = arith.addf %934, %937 : vector<31x31xf32>
    %c2_436 = arith.constant 2 : index
    %939 = memref.load %arg13[%c2_436] : memref<6xf32, #tpu.memory_space<smem>>
    %940 = vector.broadcast %939 : f32 to vector<31x31xf32>
    %941 = arith.addf %938, %940 : vector<31x31xf32>
    %c3_437 = arith.constant 3 : index
    %c0_438 = arith.constant 0 : index
    %942 = memref.load %arg12[%c3_437, %c0_438] : memref<6x6xf32, #tpu.memory_space<smem>>
    %943 = vector.broadcast %942 : f32 to vector<31x31xf32>
    %944 = arith.mulf %943, %853 : vector<31x31xf32>
    %c3_439 = arith.constant 3 : index
    %c1_440 = arith.constant 1 : index
    %945 = memref.load %arg12[%c3_439, %c1_440] : memref<6x6xf32, #tpu.memory_space<smem>>
    %946 = vector.broadcast %945 : f32 to vector<31x31xf32>
    %947 = arith.mulf %946, %855 : vector<31x31xf32>
    %948 = arith.addf %944, %947 : vector<31x31xf32>
    %c3_441 = arith.constant 3 : index
    %c2_442 = arith.constant 2 : index
    %949 = memref.load %arg12[%c3_441, %c2_442] : memref<6x6xf32, #tpu.memory_space<smem>>
    %950 = vector.broadcast %949 : f32 to vector<31x31xf32>
    %951 = arith.mulf %950, %857 : vector<31x31xf32>
    %952 = arith.addf %948, %951 : vector<31x31xf32>
    %c3_443 = arith.constant 3 : index
    %c3_444 = arith.constant 3 : index
    %953 = memref.load %arg12[%c3_443, %c3_444] : memref<6x6xf32, #tpu.memory_space<smem>>
    %954 = vector.broadcast %953 : f32 to vector<31x31xf32>
    %955 = arith.mulf %954, %859 : vector<31x31xf32>
    %956 = arith.addf %952, %955 : vector<31x31xf32>
    %c3_445 = arith.constant 3 : index
    %c4_446 = arith.constant 4 : index
    %957 = memref.load %arg12[%c3_445, %c4_446] : memref<6x6xf32, #tpu.memory_space<smem>>
    %958 = vector.broadcast %957 : f32 to vector<31x31xf32>
    %959 = arith.mulf %958, %861 : vector<31x31xf32>
    %960 = arith.addf %956, %959 : vector<31x31xf32>
    %c3_447 = arith.constant 3 : index
    %c5_448 = arith.constant 5 : index
    %961 = memref.load %arg12[%c3_447, %c5_448] : memref<6x6xf32, #tpu.memory_space<smem>>
    %962 = vector.broadcast %961 : f32 to vector<31x31xf32>
    %963 = arith.mulf %962, %863 : vector<31x31xf32>
    %964 = arith.addf %960, %963 : vector<31x31xf32>
    %c3_449 = arith.constant 3 : index
    %965 = memref.load %arg13[%c3_449] : memref<6xf32, #tpu.memory_space<smem>>
    %966 = vector.broadcast %965 : f32 to vector<31x31xf32>
    %967 = arith.addf %964, %966 : vector<31x31xf32>
    %c4_450 = arith.constant 4 : index
    %c0_451 = arith.constant 0 : index
    %968 = memref.load %arg12[%c4_450, %c0_451] : memref<6x6xf32, #tpu.memory_space<smem>>
    %969 = vector.broadcast %968 : f32 to vector<31x31xf32>
    %970 = arith.mulf %969, %853 : vector<31x31xf32>
    %c4_452 = arith.constant 4 : index
    %c1_453 = arith.constant 1 : index
    %971 = memref.load %arg12[%c4_452, %c1_453] : memref<6x6xf32, #tpu.memory_space<smem>>
    %972 = vector.broadcast %971 : f32 to vector<31x31xf32>
    %973 = arith.mulf %972, %855 : vector<31x31xf32>
    %974 = arith.addf %970, %973 : vector<31x31xf32>
    %c4_454 = arith.constant 4 : index
    %c2_455 = arith.constant 2 : index
    %975 = memref.load %arg12[%c4_454, %c2_455] : memref<6x6xf32, #tpu.memory_space<smem>>
    %976 = vector.broadcast %975 : f32 to vector<31x31xf32>
    %977 = arith.mulf %976, %857 : vector<31x31xf32>
    %978 = arith.addf %974, %977 : vector<31x31xf32>
    %c4_456 = arith.constant 4 : index
    %c3_457 = arith.constant 3 : index
    %979 = memref.load %arg12[%c4_456, %c3_457] : memref<6x6xf32, #tpu.memory_space<smem>>
    %980 = vector.broadcast %979 : f32 to vector<31x31xf32>
    %981 = arith.mulf %980, %859 : vector<31x31xf32>
    %982 = arith.addf %978, %981 : vector<31x31xf32>
    %c4_458 = arith.constant 4 : index
    %c4_459 = arith.constant 4 : index
    %983 = memref.load %arg12[%c4_458, %c4_459] : memref<6x6xf32, #tpu.memory_space<smem>>
    %984 = vector.broadcast %983 : f32 to vector<31x31xf32>
    %985 = arith.mulf %984, %861 : vector<31x31xf32>
    %986 = arith.addf %982, %985 : vector<31x31xf32>
    %c4_460 = arith.constant 4 : index
    %c5_461 = arith.constant 5 : index
    %987 = memref.load %arg12[%c4_460, %c5_461] : memref<6x6xf32, #tpu.memory_space<smem>>
    %988 = vector.broadcast %987 : f32 to vector<31x31xf32>
    %989 = arith.mulf %988, %863 : vector<31x31xf32>
    %990 = arith.addf %986, %989 : vector<31x31xf32>
    %c4_462 = arith.constant 4 : index
    %991 = memref.load %arg13[%c4_462] : memref<6xf32, #tpu.memory_space<smem>>
    %992 = vector.broadcast %991 : f32 to vector<31x31xf32>
    %993 = arith.addf %990, %992 : vector<31x31xf32>
    %c5_463 = arith.constant 5 : index
    %c0_464 = arith.constant 0 : index
    %994 = memref.load %arg12[%c5_463, %c0_464] : memref<6x6xf32, #tpu.memory_space<smem>>
    %995 = vector.broadcast %994 : f32 to vector<31x31xf32>
    %996 = arith.mulf %995, %853 : vector<31x31xf32>
    %c5_465 = arith.constant 5 : index
    %c1_466 = arith.constant 1 : index
    %997 = memref.load %arg12[%c5_465, %c1_466] : memref<6x6xf32, #tpu.memory_space<smem>>
    %998 = vector.broadcast %997 : f32 to vector<31x31xf32>
    %999 = arith.mulf %998, %855 : vector<31x31xf32>
    %1000 = arith.addf %996, %999 : vector<31x31xf32>
    %c5_467 = arith.constant 5 : index
    %c2_468 = arith.constant 2 : index
    %1001 = memref.load %arg12[%c5_467, %c2_468] : memref<6x6xf32, #tpu.memory_space<smem>>
    %1002 = vector.broadcast %1001 : f32 to vector<31x31xf32>
    %1003 = arith.mulf %1002, %857 : vector<31x31xf32>
    %1004 = arith.addf %1000, %1003 : vector<31x31xf32>
    %c5_469 = arith.constant 5 : index
    %c3_470 = arith.constant 3 : index
    %1005 = memref.load %arg12[%c5_469, %c3_470] : memref<6x6xf32, #tpu.memory_space<smem>>
    %1006 = vector.broadcast %1005 : f32 to vector<31x31xf32>
    %1007 = arith.mulf %1006, %859 : vector<31x31xf32>
    %1008 = arith.addf %1004, %1007 : vector<31x31xf32>
    %c5_471 = arith.constant 5 : index
    %c4_472 = arith.constant 4 : index
    %1009 = memref.load %arg12[%c5_471, %c4_472] : memref<6x6xf32, #tpu.memory_space<smem>>
    %1010 = vector.broadcast %1009 : f32 to vector<31x31xf32>
    %1011 = arith.mulf %1010, %861 : vector<31x31xf32>
    %1012 = arith.addf %1008, %1011 : vector<31x31xf32>
    %c5_473 = arith.constant 5 : index
    %c5_474 = arith.constant 5 : index
    %1013 = memref.load %arg12[%c5_473, %c5_474] : memref<6x6xf32, #tpu.memory_space<smem>>
    %1014 = vector.broadcast %1013 : f32 to vector<31x31xf32>
    %1015 = arith.mulf %1014, %863 : vector<31x31xf32>
    %1016 = arith.addf %1012, %1015 : vector<31x31xf32>
    %c5_475 = arith.constant 5 : index
    %1017 = memref.load %arg13[%c5_475] : memref<6xf32, #tpu.memory_space<smem>>
    %1018 = vector.broadcast %1017 : f32 to vector<31x31xf32>
    %1019 = arith.addf %1016, %1018 : vector<31x31xf32>
    %cst_476 = arith.constant 0.000000e+00 : f32
    %1020 = vector.broadcast %cst_476 : f32 to vector<31x31xf32>
    %1021 = arith.maximumf %889, %1020 : vector<31x31xf32>
    %cst_477 = arith.constant 0.000000e+00 : f32
    %1022 = vector.broadcast %cst_477 : f32 to vector<31x31xf32>
    %1023 = arith.maximumf %915, %1022 : vector<31x31xf32>
    %cst_478 = arith.constant 0.000000e+00 : f32
    %1024 = vector.broadcast %cst_478 : f32 to vector<31x31xf32>
    %1025 = arith.maximumf %941, %1024 : vector<31x31xf32>
    %cst_479 = arith.constant 0.000000e+00 : f32
    %1026 = vector.broadcast %cst_479 : f32 to vector<31x31xf32>
    %1027 = arith.maximumf %967, %1026 : vector<31x31xf32>
    %cst_480 = arith.constant 0.000000e+00 : f32
    %1028 = vector.broadcast %cst_480 : f32 to vector<31x31xf32>
    %1029 = arith.maximumf %993, %1028 : vector<31x31xf32>
    %cst_481 = arith.constant 0.000000e+00 : f32
    %1030 = vector.broadcast %cst_481 : f32 to vector<31x31xf32>
    %1031 = arith.maximumf %1019, %1030 : vector<31x31xf32>
    %c0_482 = arith.constant 0 : index
    %1032 = memref.load %arg14[%c0_482] : memref<6xf32, #tpu.memory_space<smem>>
    %1033 = vector.broadcast %1032 : f32 to vector<31x31xf32>
    %1034 = arith.mulf %1033, %1021 : vector<31x31xf32>
    %c1_483 = arith.constant 1 : index
    %1035 = memref.load %arg14[%c1_483] : memref<6xf32, #tpu.memory_space<smem>>
    %1036 = vector.broadcast %1035 : f32 to vector<31x31xf32>
    %1037 = arith.mulf %1036, %1023 : vector<31x31xf32>
    %1038 = arith.addf %1034, %1037 : vector<31x31xf32>
    %c2_484 = arith.constant 2 : index
    %1039 = memref.load %arg14[%c2_484] : memref<6xf32, #tpu.memory_space<smem>>
    %1040 = vector.broadcast %1039 : f32 to vector<31x31xf32>
    %1041 = arith.mulf %1040, %1025 : vector<31x31xf32>
    %1042 = arith.addf %1038, %1041 : vector<31x31xf32>
    %c3_485 = arith.constant 3 : index
    %1043 = memref.load %arg14[%c3_485] : memref<6xf32, #tpu.memory_space<smem>>
    %1044 = vector.broadcast %1043 : f32 to vector<31x31xf32>
    %1045 = arith.mulf %1044, %1027 : vector<31x31xf32>
    %1046 = arith.addf %1042, %1045 : vector<31x31xf32>
    %c4_486 = arith.constant 4 : index
    %1047 = memref.load %arg14[%c4_486] : memref<6xf32, #tpu.memory_space<smem>>
    %1048 = vector.broadcast %1047 : f32 to vector<31x31xf32>
    %1049 = arith.mulf %1048, %1029 : vector<31x31xf32>
    %1050 = arith.addf %1046, %1049 : vector<31x31xf32>
    %c5_487 = arith.constant 5 : index
    %1051 = memref.load %arg14[%c5_487] : memref<6xf32, #tpu.memory_space<smem>>
    %1052 = vector.broadcast %1051 : f32 to vector<31x31xf32>
    %1053 = arith.mulf %1052, %1031 : vector<31x31xf32>
    %1054 = arith.addf %1050, %1053 : vector<31x31xf32>
    %c0_488 = arith.constant 0 : index
    %1055 = memref.load %arg15[%c0_488] : memref<1xf32, #tpu.memory_space<smem>>
    %1056 = vector.broadcast %1055 : f32 to vector<31x31xf32>
    %1057 = arith.addf %1054, %1056 : vector<31x31xf32>
    %1058 = arith.negf %1057 : vector<31x31xf32>
    %1059 = math.exp %1058 : vector<31x31xf32>
    %cst_489 = arith.constant 1.000000e+00 : f32
    %1060 = vector.broadcast %cst_489 : f32 to vector<31x31xf32>
    %1061 = arith.addf %1060, %1059 : vector<31x31xf32>
    %1062 = arith.divf %1060, %1061 : vector<31x31xf32>
    %1063 = arith.mulf %853, %1062 : vector<31x31xf32>
    %1064 = arith.mulf %855, %1062 : vector<31x31xf32>
    %1065 = arith.mulf %857, %1062 : vector<31x31xf32>
    %1066 = arith.mulf %859, %1062 : vector<31x31xf32>
    %1067 = arith.mulf %861, %1062 : vector<31x31xf32>
    %1068 = arith.mulf %863, %1062 : vector<31x31xf32>
    %1069 = arith.addf %1063, %25 : vector<31x31xf32>
    %cst_490 = arith.constant 0.000000e+00 : f32
    %1070 = vector.broadcast %cst_490 : f32 to vector<31x31xf32>
    %1071 = arith.maximumf %1069, %1070 : vector<31x31xf32>
    %1072 = arith.addf %1064, %45 : vector<31x31xf32>
    %cst_491 = arith.constant 0.000000e+00 : f32
    %1073 = vector.broadcast %cst_491 : f32 to vector<31x31xf32>
    %1074 = arith.maximumf %1072, %1073 : vector<31x31xf32>
    %1075 = arith.addf %1065, %65 : vector<31x31xf32>
    %cst_492 = arith.constant 0.000000e+00 : f32
    %1076 = vector.broadcast %cst_492 : f32 to vector<31x31xf32>
    %1077 = arith.maximumf %1075, %1076 : vector<31x31xf32>
    %1078 = arith.addf %1066, %85 : vector<31x31xf32>
    %cst_493 = arith.constant 0.000000e+00 : f32
    %1079 = vector.broadcast %cst_493 : f32 to vector<31x31xf32>
    %1080 = arith.maximumf %1078, %1079 : vector<31x31xf32>
    %1081 = arith.addf %1067, %105 : vector<31x31xf32>
    %cst_494 = arith.constant 0.000000e+00 : f32
    %1082 = vector.broadcast %cst_494 : f32 to vector<31x31xf32>
    %1083 = arith.maximumf %1081, %1082 : vector<31x31xf32>
    %1084 = arith.addf %1068, %125 : vector<31x31xf32>
    %cst_495 = arith.constant 0.000000e+00 : f32
    %1085 = vector.broadcast %cst_495 : f32 to vector<31x31xf32>
    %1086 = arith.maximumf %1084, %1085 : vector<31x31xf32>
    %c0_496 = arith.constant 0 : index
    %1087 = memref.load %arg16[%c0_496] : memref<6xf32, #tpu.memory_space<smem>>
    %1088 = vector.broadcast %1087 : f32 to vector<31x31xf32>
    %1089 = arith.mulf %1088, %1071 : vector<31x31xf32>
    %c1_497 = arith.constant 1 : index
    %1090 = memref.load %arg16[%c1_497] : memref<6xf32, #tpu.memory_space<smem>>
    %1091 = vector.broadcast %1090 : f32 to vector<31x31xf32>
    %1092 = arith.mulf %1091, %1074 : vector<31x31xf32>
    %1093 = arith.addf %1089, %1092 : vector<31x31xf32>
    %c2_498 = arith.constant 2 : index
    %1094 = memref.load %arg16[%c2_498] : memref<6xf32, #tpu.memory_space<smem>>
    %1095 = vector.broadcast %1094 : f32 to vector<31x31xf32>
    %1096 = arith.mulf %1095, %1077 : vector<31x31xf32>
    %1097 = arith.addf %1093, %1096 : vector<31x31xf32>
    %c3_499 = arith.constant 3 : index
    %1098 = memref.load %arg16[%c3_499] : memref<6xf32, #tpu.memory_space<smem>>
    %1099 = vector.broadcast %1098 : f32 to vector<31x31xf32>
    %1100 = arith.mulf %1099, %1080 : vector<31x31xf32>
    %1101 = arith.addf %1097, %1100 : vector<31x31xf32>
    %c4_500 = arith.constant 4 : index
    %1102 = memref.load %arg16[%c4_500] : memref<6xf32, #tpu.memory_space<smem>>
    %1103 = vector.broadcast %1102 : f32 to vector<31x31xf32>
    %1104 = arith.mulf %1103, %1083 : vector<31x31xf32>
    %1105 = arith.addf %1101, %1104 : vector<31x31xf32>
    %c5_501 = arith.constant 5 : index
    %1106 = memref.load %arg16[%c5_501] : memref<6xf32, #tpu.memory_space<smem>>
    %1107 = vector.broadcast %1106 : f32 to vector<31x31xf32>
    %1108 = arith.mulf %1107, %1086 : vector<31x31xf32>
    %1109 = arith.addf %1105, %1108 : vector<31x31xf32>
    %c0_502 = arith.constant 0 : index
    %1110 = memref.load %arg17[%c0_502] : memref<1xf32, #tpu.memory_space<smem>>
    %1111 = vector.broadcast %1110 : f32 to vector<31x31xf32>
    %1112 = arith.addf %1109, %1111 : vector<31x31xf32>
    %cst_503 = arith.constant 0.000000e+00 : f32
    %1113 = vector.broadcast %cst_503 : f32 to vector<31x31xf32>
    %1114 = arith.maximumf %1112, %1113 : vector<31x31xf32>
    %c0_504 = arith.constant 0 : index
    %c0_505 = arith.constant 0 : index
    %1115 = vector.load %arg18[%c0_504, %c0_505] : memref<31x16xf32, #tpu.memory_space<vmem>>, vector<31x16xf32>
    %cst_506 = arith.constant dense<0.000000e+00> : vector<31x16xf32>
    %1116 = tpu.matmul %1114, %1115, %cst_506 {dimension_numbers = #tpu.dot_dimension_numbers<[1], [0], [0], [1], [0, 0, 1, 1], [], []>} : vector<31x31xf32>, vector<31x16xf32>, vector<31x16xf32> -> vector<31x16xf32>
    %c0_507 = arith.constant 0 : index
    %c0_508 = arith.constant 0 : index
    %1117 = vector.load %arg19[%c0_507, %c0_508] : memref<1x16xf32, #tpu.memory_space<vmem>>, vector<1x16xf32>
    %1118 = vector.broadcast %1117 : vector<1x16xf32> to vector<31x16xf32>
    %1119 = arith.addf %1116, %1118 : vector<31x16xf32>
    %c0_509 = arith.constant 0 : index
    %c0_510 = arith.constant 0 : index
    %1120 = vector.load %arg20[%c0_509, %c0_510] : memref<16x6xf32, #tpu.memory_space<vmem>>, vector<16x6xf32>
    %cst_511 = arith.constant dense<0.000000e+00> : vector<31x6xf32>
    %1121 = tpu.matmul %1119, %1120, %cst_511 {dimension_numbers = #tpu.dot_dimension_numbers<[1], [0], [0], [1], [0, 0, 1, 1], [], []>} : vector<31x16xf32>, vector<16x6xf32>, vector<31x6xf32> -> vector<31x6xf32>
    %c0_512 = arith.constant 0 : index
    %c0_513 = arith.constant 0 : index
    %1122 = vector.load %arg21[%c0_512, %c0_513] : memref<1x6xf32, #tpu.memory_space<vmem>>, vector<1x6xf32>
    %1123 = vector.broadcast %1122 : vector<1x6xf32> to vector<31x6xf32>
    %1124 = arith.addf %1121, %1123 : vector<31x6xf32>
    %c0_514 = arith.constant 0 : index
    %c0_515 = arith.constant 0 : index
    %1125 = vector.load %arg22[%c0_514, %c0_515] : memref<1x6xf32, #tpu.memory_space<vmem>>, vector<1x6xf32>
    %1126 = vector.broadcast %1125 : vector<1x6xf32> to vector<31x6xf32>
    %1127 = arith.mulf %1124, %1126 : vector<31x6xf32>
    %cst_516 = arith.constant dense<0.000000e+00> : vector<31xf32>
    %1128 = vector.multi_reduction <add>, %1127, %cst_516 [1] : vector<31x6xf32> to vector<31xf32>
    %1129 = vector.shape_cast %1128 : vector<31xf32> to vector<31x1xf32>
    %c0_517 = arith.constant 0 : index
    %c0_518 = arith.constant 0 : index
    %1130 = vector.load %arg23[%c0_517, %c0_518] : memref<1x1xf32, #tpu.memory_space<vmem>>, vector<1x1xf32>
    %1131 = vector.broadcast %1130 : vector<1x1xf32> to vector<31x1xf32>
    %1132 = arith.addf %1129, %1131 : vector<31x1xf32>
    %1133 = arith.negf %1132 : vector<31x1xf32>
    %1134 = math.exp %1133 : vector<31x1xf32>
    %cst_519 = arith.constant 1.000000e+00 : f32
    %1135 = vector.broadcast %cst_519 : f32 to vector<31x1xf32>
    %1136 = arith.addf %1135, %1134 : vector<31x1xf32>
    %1137 = arith.divf %1135, %1136 : vector<31x1xf32>
    %c0_520 = arith.constant 0 : index
    %c0_521 = arith.constant 0 : index
    %c0_522 = arith.constant 0 : index
    %1138 = vector.load %arg24[%c0_520, %c0_521, %c0_522] : memref<1x31x1xf32, #tpu.memory_space<vmem>>, vector<1x31x1xf32>
    %1139 = vector.shape_cast %1138 : vector<1x31x1xf32> to vector<31x1xf32>
    %1140 = vector.shape_cast %1137 : vector<31x1xf32> to vector<1x31x1xf32>
    tpu.vector_store %arg24[%c0_520, %c0_521, %c0_522], %1140 {strides = array<i32>} : memref<1x31x1xf32, #tpu.memory_space<vmem>>, vector<1x31x1xf32>,
    return
  }
  func.func @transform_0(%arg0: i32) -> (i32, i32, i32) {
    %c0_i32 = arith.constant 0 : i32
    %c0_i32_0 = arith.constant 0 : i32
    %c0_i32_1 = arith.constant 0 : i32
    return %arg0, %c0_i32, %c0_i32_0 : i32, i32, i32
  }
  func.func @transform_1(%arg0: i32) -> (i32, i32) {
    %c0_i32 = arith.constant 0 : i32
    %c0_i32_0 = arith.constant 0 : i32
    %c0_i32_1 = arith.constant 0 : i32
    return %c0_i32, %c0_i32_0 : i32, i32
  }
  func.func @transform_2(%arg0: i32) -> i32 {
    %c0_i32 = arith.constant 0 : i32
    %c0_i32_0 = arith.constant 0 : i32
    return %c0_i32 : i32
  }
  func.func @transform_3(%arg0: i32) -> (i32, i32) {
    %c0_i32 = arith.constant 0 : i32
    %c0_i32_0 = arith.constant 0 : i32
    %c0_i32_1 = arith.constant 0 : i32
    return %c0_i32, %c0_i32_0 : i32, i32
  }
  func.func @transform_4(%arg0: i32) -> i32 {
    %c0_i32 = arith.constant 0 : i32
    %c0_i32_0 = arith.constant 0 : i32
    return %c0_i32 : i32
  }
  func.func @transform_5(%arg0: i32) -> (i32, i32) {
    %c0_i32 = arith.constant 0 : i32
    %c0_i32_0 = arith.constant 0 : i32
    %c0_i32_1 = arith.constant 0 : i32
    return %c0_i32, %c0_i32_0 : i32, i32
  }
  func.func @transform_6(%arg0: i32) -> i32 {
    %c0_i32 = arith.constant 0 : i32
    %c0_i32_0 = arith.constant 0 : i32
    return %c0_i32 : i32
  }
  func.func @transform_7(%arg0: i32) -> (i32, i32) {
    %c0_i32 = arith.constant 0 : i32
    %c0_i32_0 = arith.constant 0 : i32
    %c0_i32_1 = arith.constant 0 : i32
    return %c0_i32, %c0_i32_0 : i32, i32
  }
  func.func @transform_8(%arg0: i32) -> i32 {
    %c0_i32 = arith.constant 0 : i32
    %c0_i32_0 = arith.constant 0 : i32
    return %c0_i32 : i32
  }
  func.func @transform_9(%arg0: i32) -> (i32, i32) {
    %c0_i32 = arith.constant 0 : i32
    %c0_i32_0 = arith.constant 0 : i32
    %c0_i32_1 = arith.constant 0 : i32
    return %c0_i32, %c0_i32_0 : i32, i32
  }
  func.func @transform_10(%arg0: i32) -> i32 {
    %c0_i32 = arith.constant 0 : i32
    %c0_i32_0 = arith.constant 0 : i32
    return %c0_i32 : i32
  }
  func.func @transform_11(%arg0: i32) -> (i32, i32) {
    %c0_i32 = arith.constant 0 : i32
    %c0_i32_0 = arith.constant 0 : i32
    %c0_i32_1 = arith.constant 0 : i32
    return %c0_i32, %c0_i32_0 : i32, i32
  }
  func.func @transform_12(%arg0: i32) -> i32 {
    %c0_i32 = arith.constant 0 : i32
    %c0_i32_0 = arith.constant 0 : i32
    return %c0_i32 : i32
  }
  func.func @transform_13(%arg0: i32) -> i32 {
    %c0_i32 = arith.constant 0 : i32
    %c0_i32_0 = arith.constant 0 : i32
    return %c0_i32 : i32
  }
  func.func @transform_14(%arg0: i32) -> i32 {
    %c0_i32 = arith.constant 0 : i32
    %c0_i32_0 = arith.constant 0 : i32
    return %c0_i32 : i32
  }
  func.func @transform_15(%arg0: i32) -> i32 {
    %c0_i32 = arith.constant 0 : i32
    %c0_i32_0 = arith.constant 0 : i32
    return %c0_i32 : i32
  }
  func.func @transform_16(%arg0: i32) -> i32 {
    %c0_i32 = arith.constant 0 : i32
    %c0_i32_0 = arith.constant 0 : i32
    return %c0_i32 : i32
  }
  func.func @transform_17(%arg0: i32) -> (i32, i32) {
    %c0_i32 = arith.constant 0 : i32
    %c0_i32_0 = arith.constant 0 : i32
    %c0_i32_1 = arith.constant 0 : i32
    return %c0_i32, %c0_i32_0 : i32, i32
  }
  func.func @transform_18(%arg0: i32) -> (i32, i32) {
    %c0_i32 = arith.constant 0 : i32
    %c0_i32_0 = arith.constant 0 : i32
    %c0_i32_1 = arith.constant 0 : i32
    return %c0_i32, %c0_i32_0 : i32, i32
  }
  func.func @transform_19(%arg0: i32) -> (i32, i32) {
    %c0_i32 = arith.constant 0 : i32
    %c0_i32_0 = arith.constant 0 : i32
    %c0_i32_1 = arith.constant 0 : i32
    return %c0_i32, %c0_i32_0 : i32, i32
  }
  func.func @transform_20(%arg0: i32) -> (i32, i32) {
    %c0_i32 = arith.constant 0 : i32
    %c0_i32_0 = arith.constant 0 : i32
    %c0_i32_1 = arith.constant 0 : i32
    return %c0_i32, %c0_i32_0 : i32, i32
  }
  func.func @transform_21(%arg0: i32) -> (i32, i32) {
    %c0_i32 = arith.constant 0 : i32
    %c0_i32_0 = arith.constant 0 : i32
    %c0_i32_1 = arith.constant 0 : i32
    return %c0_i32, %c0_i32_0 : i32, i32
  }
  func.func @transform_22(%arg0: i32) -> (i32, i32) {
    %c0_i32 = arith.constant 0 : i32
    %c0_i32_0 = arith.constant 0 : i32
    %c0_i32_1 = arith.constant 0 : i32
    return %c0_i32, %c0_i32_0 : i32, i32
  }
  func.func @transform_23(%arg0: i32) -> (i32, i32, i32) {
    %c0_i32 = arith.constant 0 : i32
    %c0_i32_0 = arith.constant 0 : i32
    %c0_i32_1 = arith.constant 0 : i32
    return %arg0, %c0_i32, %c0_i32_0 : i32, i32, i32
  }
}

</mosaic_0001>

<llo_original>
// kernel: tpu_custom_call.1
$region0: #{tpu_custom_call.1}
  #allocation0 [shape = 'u32[]', space=smem, size = 0x4, offset = 0x4, fixed_abs, tag = 'smem constant byte address 0x4 - core index']
  #allocation1 [shape = 'u32[144,128]{1,0:T(1,128)}', space=vmem, size = 0x12000, scoped, tag = 'internal scratch']
  #allocation2 [shape = 'f32[1]{0:T(128)S(6)}', space=smem, size = 0x200, scoped, tag = 'scoped memory for tpu_custom_call.1']
  #allocation3 [shape = 'f32[1]{0:T(128)S(6)}', space=smem, size = 0x200, scoped, tag = 'scoped memory for tpu_custom_call.1']
  #allocation4 [shape = 'f32[1,1]{1,0:T(1,128)S(1)}', space=vmem, size = 0x200, scoped, tag = 'scoped memory for tpu_custom_call.1']
  %s0 = inlined_call_operand.vmem [shape: f32[2,32,32], index: 0, kind: input, shape index: {}]
  %s1 = inlined_call_operand.vmem [shape: f32[6,4], index: 1, kind: input, shape index: {}]
  %s2 = inlined_call_operand.vmem [shape: f32[6], index: 2, kind: input, shape index: {}]
  %s3 = inlined_call_operand.vmem [shape: f32[6,6], index: 3, kind: input, shape index: {}]
  %s4 = inlined_call_operand.hbm [shape: f32[6], index: 4, kind: input, shape index: {}]
  %s5 = inlined_call_operand.vmem [shape: f32[6,6], index: 5, kind: input, shape index: {}]
  %s6 = inlined_call_operand.hbm [shape: f32[6], index: 6, kind: input, shape index: {}]
  %s7 = inlined_call_operand.vmem [shape: f32[6,6], index: 7, kind: input, shape index: {}]
  %s8 = inlined_call_operand.hbm [shape: f32[6], index: 8, kind: input, shape index: {}]
  %s9 = inlined_call_operand.vmem [shape: f32[6,6], index: 9, kind: input, shape index: {}]
  %s10 = inlined_call_operand.vmem [shape: f32[6], index: 10, kind: input, shape index: {}]
  %s11 = inlined_call_operand.vmem [shape: f32[6,6], index: 11, kind: input, shape index: {}]
  %s12 = inlined_call_operand.vmem [shape: f32[6], index: 12, kind: input, shape index: {}]
  %s13 = inlined_call_operand.vmem [shape: f32[6], index: 13, kind: input, shape index: {}]
  %s14 = inlined_call_operand.<no memory space> [shape: f32[1], index: 14, kind: input, shape index: {}]
  %s15 = inlined_call_operand.vmem [shape: f32[6], index: 15, kind: input, shape index: {}]
  %s16 = inlined_call_operand.<no memory space> [shape: f32[1], index: 16, kind: input, shape index: {}]
  %s17 = inlined_call_operand.vmem [shape: f32[31,16], index: 17, kind: input, shape index: {}]
  %s18 = inlined_call_operand.vmem [shape: f32[1,16], index: 18, kind: input, shape index: {}]
  %s19 = inlined_call_operand.vmem [shape: f32[16,6], index: 19, kind: input, shape index: {}]
  %s20 = inlined_call_operand.vmem [shape: f32[1,6], index: 20, kind: input, shape index: {}]
  %s21 = inlined_call_operand.vmem [shape: f32[1,6], index: 21, kind: input, shape index: {}]
  %s22 = inlined_call_operand.<no memory space> [shape: f32[1,1], index: 22, kind: input, shape index: {}]
  %s23 = inlined_call_operand.vmem [shape: f32[2,31,1], index: 23, kind: output, shape index: {}]
  %s24 = sld [smem:[#allocation0]]
  $region181: #{tpu_custom_call.1} parent=0
    _
  %s26 = ssub.s32 1, %s24
  %s27 = scalar_select 0, %s26, %s24
  %28 = sst [smem:[#allocation2]] %s14
  %29 = sst [smem:[#allocation3]] %s16
  %v30 = vstv %s22
  %31 = vst [vmem:[#allocation4] sm:$0x1] %v30
  $region1: #{tpu_custom_call.1} parent=0
    #allocation5 [shape = 'u8[4096]{0}', space=smem, size = 0x1000, scoped, tag = 'input window, operand 1, single buffered']
    #allocation6 [shape = 's32[2]{0}', space=sflag, size = 0x8, scoped, tag = 'scoped memory for tpu_custom_call.1']
    #allocation7 [shape = 's32[2]{0}', space=sflag, size = 0x8, scoped, tag = 'scoped memory for tpu_custom_call.1']
    #allocation8 [shape = 'u8[512]{0}', space=smem, size = 0x200, scoped, tag = 'input window, operand 2, single buffered']
    #allocation9 [shape = 's32[1]{0}', space=sflag, size = 0x4, scoped, tag = 'scoped memory for tpu_custom_call.1']
    #allocation10 [shape = 'u8[4096]{0}', space=smem, size = 0x1000, scoped, tag = 'input window, operand 3, single buffered']
    #allocation11 [shape = 'u8[512]{0}', space=smem, size = 0x200, scoped, tag = 'input window, operand 4, single buffered']
    #allocation12 [shape = 'u8[4096]{0}', space=smem, size = 0x1000, scoped, tag = 'input window, operand 5, single buffered']
    #allocation13 [shape = 's32[1]{0}', space=sflag, size = 0x4, scoped, tag = 'scoped memory for tpu_custom_call.1']
    #allocation14 [shape = 'u8[512]{0}', space=smem, size = 0x200, scoped, tag = 'input window, operand 6, single buffered']
    #allocation15 [shape = 's32[1]{0}', space=sflag, size = 0x4, scoped, tag = 'scoped memory for tpu_custom_call.1']
    #allocation16 [shape = 'u8[4096]{0}', space=smem, size = 0x1000, scoped, tag = 'input window, operand 7, single buffered']
    #allocation17 [shape = 'u8[512]{0}', space=smem, size = 0x200, scoped, tag = 'input window, operand 8, single buffered']
    #allocation18 [shape = 'u8[4096]{0}', space=smem, size = 0x1000, scoped, tag = 'input window, operand 9, single buffered']
    #allocation19 [shape = 's32[1]{0}', space=sflag, size = 0x4, scoped, tag = 'scoped memory for tpu_custom_call.1']
    #allocation20 [shape = 'u8[512]{0}', space=smem, size = 0x200, scoped, tag = 'input window, operand 10, single buffered']
    #allocation21 [shape = 'u8[4096]{0}', space=smem, size = 0x1000, scoped, tag = 'input window, operand 11, single buffered']
    #allocation22 [shape = 's32[1]{0}', space=sflag, size = 0x4, scoped, tag = 'scoped memory for tpu_custom_call.1']
    #allocation23 [shape = 'u8[512]{0}', space=smem, size = 0x200, scoped, tag = 'input window, operand 12, single buffered']
    #allocation24 [shape = 'u8[512]{0}', space=smem, size = 0x200, scoped, tag = 'input window, operand 13, single buffered']
    #allocation25 [shape = 's32[1]{0}', space=sflag, size = 0x4, scoped, tag = 'scoped memory for tpu_custom_call.1']
    #allocation26 [shape = 'u8[512]{0}', space=smem, size = 0x200, scoped, tag = 'input window, operand 15, single buffered']
    %32 = vsyncpa [#allocation7], 0
    %33 = vsyncpa [#allocation9], 0
    %34 = vsyncpa [#allocation6], 0
    %35 = vsyncpa [#allocation13], 0
    %36 = vsyncpa [#allocation15], 0
    %37 = vsyncpa [#allocation19], 0
    %38 = vsyncpa [#allocation22], 0
    %39 = vsyncpa [#allocation25], 0
    loop: start=0, step=1, limit=4
    $region2: #{tpu_custom_call.1} parent=1 // loop_pre_header
      _
    $region3: #{tpu_custom_call.1} parent=1 // loop_header
      %s41 = sphi 0, %s45
      %p42 = scmp.ge.s32.totalorder %s41, 4
      %s51 = sphi 0, %s53
      %s54 = sphi 0, %s51
      %s55 = sphi 0, %s54
      %s71 = sphi 0, %s55
      %s75 = sphi 0, %s75
      %s77 = sphi 0, %s75
      %s78 = sphi 0, %s77
      %s92 = sphi 0, %s78
      %s96 = sphi 0, %s96
      %s98 = sphi 0, %s96
      %s99 = sphi 0, %s98
      %s113 = sphi 0, %s99
      %s117 = sphi 0, %s117
      %s119 = sphi 0, %s117
      %s120 = sphi 0, %s119
      %s134 = sphi 0, %s120
      %s138 = sphi 0, %s138
      %s140 = sphi 0, %s138
      %s141 = sphi 0, %s140
      %s155 = sphi 0, %s141
      %s159 = sphi 0, %s159
      %s161 = sphi 0, %s159
      %s162 = sphi 0, %s161
      %s176 = sphi 0, %s162
      %s180 = sphi 0, %s180
      %s182 = sphi 0, %s180
      %s183 = sphi 0, %s182
      %s197 = sphi 0, %s183
      %s201 = sphi 0, %s201
      %s203 = sphi 0, %s201
      %s204 = sphi 0, %s203
      %s218 = sphi 0, %s204
      %s222 = sphi 0, %s222
      %s224 = sphi 0, %s222
      %s225 = sphi 0, %s224
      %s239 = sphi 0, %s225
      %s243 = sphi 0, %s243
      %s245 = sphi 0, %s243
      %s246 = sphi 0, %s245
      %s260 = sphi 0, %s246
      %s264 = sphi 0, %s264
      %s266 = sphi 0, %s264
      %s267 = sphi 0, %s266
      %s281 = sphi 0, %s267
      %s285 = sphi 0, %s285
      %s287 = sphi 0, %s285
      %s288 = sphi 0, %s287
      %s302 = sphi 0, %s288
      %s306 = sphi 0, %s306
      %s308 = sphi 0, %s306
      %s309 = sphi 0, %s308
      %s323 = sphi 0, %s309
      %s327 = sphi 0, %s327
      %s329 = sphi 0, %s327
      %s330 = sphi 0, %s329
      %s344 = sphi 0, %s330
      %s348 = sphi 0, %s348
      %s350 = sphi 0, %s348
      %s351 = sphi 0, %s350
      %s365 = sphi 0, %s351
      %s369 = sphi 0, %s369
      %s371 = sphi 0, %s369
      %s372 = sphi 0, %s371
      %s386 = sphi 0, %s372
      %s390 = sphi 0, %s390
      %s392 = sphi 0, %s390
      %s393 = sphi 0, %s392
      %s407 = sphi 0, %s393
      %s411 = sphi 0, %s411
      %s413 = sphi 0, %s411
      %s414 = sphi 0, %s413
      %s428 = sphi 0, %s414
      %s432 = sphi 0, %s432
      %s434 = sphi 0, %s432
      %s435 = sphi 0, %s434
      %s449 = sphi 0, %s435
      %s453 = sphi 0, %s453
      %s455 = sphi 0, %s453
      %s456 = sphi 0, %s455
      %s470 = sphi 0, %s456
      %s474 = sphi 0, %s474
      %s476 = sphi 0, %s474
      %s477 = sphi 0, %s476
      %s491 = sphi 0, %s477
      %s495 = sphi 0, %s495
      %s497 = sphi 0, %s495
      %s498 = sphi 0, %s497
      %s512 = sphi 0, %s498
      %s516 = sphi 0, %s516
      %s518 = sphi 0, %s516
      %s519 = sphi 0, %s518
      %s533 = sphi 0, %s519
      %s539 = sphi 0, %s541
      %s542 = sphi 0, %s539
      %s543 = sphi 0, %s542
      %s559 = sphi 0, %s543
    $region4: #{tpu_custom_call.1} parent=1 // loop_header_branch
      %44 = sbr.rel (%p42) target = $region8
    $region5: #{tpu_custom_call.1} parent=1 // loop_body
      %s46 = ssub.s32 %s41, 1
      %s47 = ssub.s32 %s41, 2
      %s48 = sadd.s32 %s41, 1
      %s49 = ssub.s32 %s41, %s48
      %p50 = scmp.eq.s32.totalorder %s49, 0
      %s52 = sadd.s32 %s51, 1
      %s53 = scalar_select %p50, %s51, %s52
      %p56 = pneg %p50
      %p57 = scmp.eq.s32.totalorder %s41, 1
      %p58 = por %p56, %p57
      %p59 = scmp.ne.s32.totalorder %s51, %s54
      %p60 = scmp.eq.s32.totalorder %s41, 0
      %p61 = por %p59, %p60
      %p62 = scmp.ne.s32.totalorder %s51, %s54
      %p63 = scmp.eq.s32.totalorder %s46, 1
      %p64 = por %p62, %p63
      %p65 = scmp.ne.s32.totalorder %s54, %s55
      %p66 = scmp.eq.s32.totalorder %s46, 0
      %p67 = por %p65, %p66
      %p68 = scmp.ne.s32.totalorder %s54, %s55
      %p69 = scmp.eq.s32.totalorder %s47, 1
      %p70 = por %p68, %p69
      %p72 = scmp.ne.s32.totalorder %s55, %s71
      %p73 = scmp.eq.s32.totalorder %s47, 0
      %p74 = por %p72, %p73
      %s76 = sadd.s32 %s75, 1
      %p79 = scmp.eq.s32.totalorder %s41, 1
      %p80 = scmp.ne.s32.totalorder %s75, %s77
      %p81 = scmp.eq.s32.totalorder %s41, 0
      %p82 = por %p80, %p81
      %p83 = scmp.ne.s32.totalorder %s75, %s77
      %p84 = scmp.eq.s32.totalorder %s46, 1
      %p85 = por %p83, %p84
      %p86 = scmp.ne.s32.totalorder %s77, %s78
      %p87 = scmp.eq.s32.totalorder %s46, 0
      %p88 = por %p86, %p87
      %p89 = scmp.ne.s32.totalorder %s77, %s78
      %p90 = scmp.eq.s32.totalorder %s47, 1
      %p91 = por %p89, %p90
      %p93 = scmp.ne.s32.totalorder %s78, %s92
      %p94 = scmp.eq.s32.totalorder %s47, 0
      %p95 = por %p93, %p94
      %s97 = sadd.s32 %s96, 1
      %p100 = scmp.eq.s32.totalorder %s41, 1
      %p101 = scmp.ne.s32.totalorder %s96, %s98
      %p102 = scmp.eq.s32.totalorder %s41, 0
      %p103 = por %p101, %p102
      %p104 = scmp.ne.s32.totalorder %s96, %s98
      %p105 = scmp.eq.s32.totalorder %s46, 1
      %p106 = por %p104, %p105
      %p107 = scmp.ne.s32.totalorder %s98, %s99
      %p108 = scmp.eq.s32.totalorder %s46, 0
      %p109 = por %p107, %p108
      %p110 = scmp.ne.s32.totalorder %s98, %s99
      %p111 = scmp.eq.s32.totalorder %s47, 1
      %p112 = por %p110, %p111
      %p114 = scmp.ne.s32.totalorder %s99, %s113
      %p115 = scmp.eq.s32.totalorder %s47, 0
      %p116 = por %p114, %p115
      %s118 = sadd.s32 %s117, 1
      %p121 = scmp.eq.s32.totalorder %s41, 1
      %p122 = scmp.ne.s32.totalorder %s117, %s119
      %p123 = scmp.eq.s32.totalorder %s41, 0
      %p124 = por %p122, %p123
      %p125 = scmp.ne.s32.totalorder %s117, %s119
      %p126 = scmp.eq.s32.totalorder %s46, 1
      %p127 = por %p125, %p126
      %p128 = scmp.ne.s32.totalorder %s119, %s120
      %p129 = scmp.eq.s32.totalorder %s46, 0
      %p130 = por %p128, %p129
      %p131 = scmp.ne.s32.totalorder %s119, %s120
      %p132 = scmp.eq.s32.totalorder %s47, 1
      %p133 = por %p131, %p132
      %p135 = scmp.ne.s32.totalorder %s120, %s134
      %p136 = scmp.eq.s32.totalorder %s47, 0
      %p137 = por %p135, %p136
      %s139 = sadd.s32 %s138, 1
      %p142 = scmp.eq.s32.totalorder %s41, 1
      %p143 = scmp.ne.s32.totalorder %s138, %s140
      %p144 = scmp.eq.s32.totalorder %s41, 0
      %p145 = por %p143, %p144
      %p146 = scmp.ne.s32.totalorder %s138, %s140
      %p147 = scmp.eq.s32.totalorder %s46, 1
      %p148 = por %p146, %p147
      %p149 = scmp.ne.s32.totalorder %s140, %s141
      %p150 = scmp.eq.s32.totalorder %s46, 0
      %p151 = por %p149, %p150
      %p152 = scmp.ne.s32.totalorder %s140, %s141
      %p153 = scmp.eq.s32.totalorder %s47, 1
      %p154 = por %p152, %p153
      %p156 = scmp.ne.s32.totalorder %s141, %s155
      %p157 = scmp.eq.s32.totalorder %s47, 0
      %p158 = por %p156, %p157
      %s160 = sadd.s32 %s159, 1
      %p163 = scmp.eq.s32.totalorder %s41, 1
      %p164 = scmp.ne.s32.totalorder %s159, %s161
      %p165 = scmp.eq.s32.totalorder %s41, 0
      %p166 = por %p164, %p165
      %p167 = scmp.ne.s32.totalorder %s159, %s161
      %p168 = scmp.eq.s32.totalorder %s46, 1
      %p169 = por %p167, %p168
      %p170 = scmp.ne.s32.totalorder %s161, %s162
      %p171 = scmp.eq.s32.totalorder %s46, 0
      %p172 = por %p170, %p171
      %p173 = scmp.ne.s32.totalorder %s161, %s162
      %p174 = scmp.eq.s32.totalorder %s47, 1
      %p175 = por %p173, %p174
      %p177 = scmp.ne.s32.totalorder %s162, %s176
      %p178 = scmp.eq.s32.totalorder %s47, 0
      %p179 = por %p177, %p178
      %s181 = sadd.s32 %s180, 1
      %p184 = scmp.eq.s32.totalorder %s41, 1
      %p185 = scmp.ne.s32.totalorder %s180, %s182
      %p186 = scmp.eq.s32.totalorder %s41, 0
      %p187 = por %p185, %p186
      %p188 = scmp.ne.s32.totalorder %s180, %s182
      %p189 = scmp.eq.s32.totalorder %s46, 1
      %p190 = por %p188, %p189
      %p191 = scmp.ne.s32.totalorder %s182, %s183
      %p192 = scmp.eq.s32.totalorder %s46, 0
      %p193 = por %p191, %p192
      %p194 = scmp.ne.s32.totalorder %s182, %s183
      %p195 = scmp.eq.s32.totalorder %s47, 1
      %p196 = por %p194, %p195
      %p198 = scmp.ne.s32.totalorder %s183, %s197
      %p199 = scmp.eq.s32.totalorder %s47, 0
      %p200 = por %p198, %p199
      %s202 = sadd.s32 %s201, 1
      %p205 = scmp.eq.s32.totalorder %s41, 1
      %p206 = scmp.ne.s32.totalorder %s201, %s203
      %p207 = scmp.eq.s32.totalorder %s41, 0
      %p208 = por %p206, %p207
      %p209 = scmp.ne.s32.totalorder %s201, %s203
      %p210 = scmp.eq.s32.totalorder %s46, 1
      %p211 = por %p209, %p210
      %p212 = scmp.ne.s32.totalorder %s203, %s204
      %p213 = scmp.eq.s32.totalorder %s46, 0
      %p214 = por %p212, %p213
      %p215 = scmp.ne.s32.totalorder %s203, %s204
      %p216 = scmp.eq.s32.totalorder %s47, 1
      %p217 = por %p215, %p216
      %p219 = scmp.ne.s32.totalorder %s204, %s218
      %p220 = scmp.eq.s32.totalorder %s47, 0
      %p221 = por %p219, %p220
      %s223 = sadd.s32 %s222, 1
      %p226 = scmp.eq.s32.totalorder %s41, 1
      %p227 = scmp.ne.s32.totalorder %s222, %s224
      %p228 = scmp.eq.s32.totalorder %s41, 0
      %p229 = por %p227, %p228
      %p230 = scmp.ne.s32.totalorder %s222, %s224
      %p231 = scmp.eq.s32.totalorder %s46, 1
      %p232 = por %p230, %p231
      %p233 = scmp.ne.s32.totalorder %s224, %s225
      %p234 = scmp.eq.s32.totalorder %s46, 0
      %p235 = por %p233, %p234
      %p236 = scmp.ne.s32.totalorder %s224, %s225
      %p237 = scmp.eq.s32.totalorder %s47, 1
      %p238 = por %p236, %p237
      %p240 = scmp.ne.s32.totalorder %s225, %s239
      %p241 = scmp.eq.s32.totalorder %s47, 0
      %p242 = por %p240, %p241
      %s244 = sadd.s32 %s243, 1
      %p247 = scmp.eq.s32.totalorder %s41, 1
      %p248 = scmp.ne.s32.totalorder %s243, %s245
      %p249 = scmp.eq.s32.totalorder %s41, 0
      %p250 = por %p248, %p249
      %p251 = scmp.ne.s32.totalorder %s243, %s245
      %p252 = scmp.eq.s32.totalorder %s46, 1
      %p253 = por %p251, %p252
      %p254 = scmp.ne.s32.totalorder %s245, %s246
      %p255 = scmp.eq.s32.totalorder %s46, 0
      %p256 = por %p254, %p255
      %p257 = scmp.ne.s32.totalorder %s245, %s246
      %p258 = scmp.eq.s32.totalorder %s47, 1
      %p259 = por %p257, %p258
      %p261 = scmp.ne.s32.totalorder %s246, %s260
      %p262 = scmp.eq.s32.totalorder %s47, 0
      %p263 = por %p261, %p262
      %s265 = sadd.s32 %s264, 1
      %p268 = scmp.eq.s32.totalorder %s41, 1
      %p269 = scmp.ne.s32.totalorder %s264, %s266
      %p270 = scmp.eq.s32.totalorder %s41, 0
      %p271 = por %p269, %p270
      %p272 = scmp.ne.s32.totalorder %s264, %s266
      %p273 = scmp.eq.s32.totalorder %s46, 1
      %p274 = por %p272, %p273
      %p275 = scmp.ne.s32.totalorder %s266, %s267
      %p276 = scmp.eq.s32.totalorder %s46, 0
      %p277 = por %p275, %p276
      %p278 = scmp.ne.s32.totalorder %s266, %s267
      %p279 = scmp.eq.s32.totalorder %s47, 1
      %p280 = por %p278, %p279
      %p282 = scmp.ne.s32.totalorder %s267, %s281
      %p283 = scmp.eq.s32.totalorder %s47, 0
      %p284 = por %p282, %p283
      %s286 = sadd.s32 %s285, 1
      %p289 = scmp.eq.s32.totalorder %s41, 1
      %p290 = scmp.ne.s32.totalorder %s285, %s287
      %p291 = scmp.eq.s32.totalorder %s41, 0
      %p292 = por %p290, %p291
      %p293 = scmp.ne.s32.totalorder %s285, %s287
      %p294 = scmp.eq.s32.totalorder %s46, 1
      %p295 = por %p293, %p294
      %p296 = scmp.ne.s32.totalorder %s287, %s288
      %p297 = scmp.eq.s32.totalorder %s46, 0
      %p298 = por %p296, %p297
      %p299 = scmp.ne.s32.totalorder %s287, %s288
      %p300 = scmp.eq.s32.totalorder %s47, 1
      %p301 = por %p299, %p300
      %p303 = scmp.ne.s32.totalorder %s288, %s302
      %p304 = scmp.eq.s32.totalorder %s47, 0
      %p305 = por %p303, %p304
      %s307 = sadd.s32 %s306, 1
      %p310 = scmp.eq.s32.totalorder %s41, 1
      %p311 = scmp.ne.s32.totalorder %s306, %s308
      %p312 = scmp.eq.s32.totalorder %s41, 0
      %p313 = por %p311, %p312
      %p314 = scmp.ne.s32.totalorder %s306, %s308
      %p315 = scmp.eq.s32.totalorder %s46, 1
      %p316 = por %p314, %p315
      %p317 = scmp.ne.s32.totalorder %s308, %s309
      %p318 = scmp.eq.s32.totalorder %s46, 0
      %p319 = por %p317, %p318
      %p320 = scmp.ne.s32.totalorder %s308, %s309
      %p321 = scmp.eq.s32.totalorder %s47, 1
      %p322 = por %p320, %p321
      %p324 = scmp.ne.s32.totalorder %s309, %s323
      %p325 = scmp.eq.s32.totalorder %s47, 0
      %p326 = por %p324, %p325
      %s328 = sadd.s32 %s327, 1
      %p331 = scmp.eq.s32.totalorder %s41, 1
      %p332 = scmp.ne.s32.totalorder %s327, %s329
      %p333 = scmp.eq.s32.totalorder %s41, 0
      %p334 = por %p332, %p333
      %p335 = scmp.ne.s32.totalorder %s327, %s329
      %p336 = scmp.eq.s32.totalorder %s46, 1
      %p337 = por %p335, %p336
      %p338 = scmp.ne.s32.totalorder %s329, %s330
      %p339 = scmp.eq.s32.totalorder %s46, 0
      %p340 = por %p338, %p339
      %p341 = scmp.ne.s32.totalorder %s329, %s330
      %p342 = scmp.eq.s32.totalorder %s47, 1
      %p343 = por %p341, %p342
      %p345 = scmp.ne.s32.totalorder %s330, %s344
      %p346 = scmp.eq.s32.totalorder %s47, 0
      %p347 = por %p345, %p346
      %s349 = sadd.s32 %s348, 1
      %p352 = scmp.eq.s32.totalorder %s41, 1
      %p353 = scmp.ne.s32.totalorder %s348, %s350
      %p354 = scmp.eq.s32.totalorder %s41, 0
      %p355 = por %p353, %p354
      %p356 = scmp.ne.s32.totalorder %s348, %s350
      %p357 = scmp.eq.s32.totalorder %s46, 1
      %p358 = por %p356, %p357
      %p359 = scmp.ne.s32.totalorder %s350, %s351
      %p360 = scmp.eq.s32.totalorder %s46, 0
      %p361 = por %p359, %p360
      %p362 = scmp.ne.s32.totalorder %s350, %s351
      %p363 = scmp.eq.s32.totalorder %s47, 1
      %p364 = por %p362, %p363
      %p366 = scmp.ne.s32.totalorder %s351, %s365
      %p367 = scmp.eq.s32.totalorder %s47, 0
      %p368 = por %p366, %p367
      %s370 = sadd.s32 %s369, 1
      %p373 = scmp.eq.s32.totalorder %s41, 1
      %p374 = scmp.ne.s32.totalorder %s369, %s371
      %p375 = scmp.eq.s32.totalorder %s41, 0
      %p376 = por %p374, %p375
      %p377 = scmp.ne.s32.totalorder %s369, %s371
      %p378 = scmp.eq.s32.totalorder %s46, 1
      %p379 = por %p377, %p378
      %p380 = scmp.ne.s32.totalorder %s371, %s372
      %p381 = scmp.eq.s32.totalorder %s46, 0
      %p382 = por %p380, %p381
      %p383 = scmp.ne.s32.totalorder %s371, %s372
      %p384 = scmp.eq.s32.totalorder %s47, 1
      %p385 = por %p383, %p384
      %p387 = scmp.ne.s32.totalorder %s372, %s386
      %p388 = scmp.eq.s32.totalorder %s47, 0
      %p389 = por %p387, %p388
      %s391 = sadd.s32 %s390, 1
      %p394 = scmp.eq.s32.totalorder %s41, 1
      %p395 = scmp.ne.s32.totalorder %s390, %s392
      %p396 = scmp.eq.s32.totalorder %s41, 0
      %p397 = por %p395, %p396
      %p398 = scmp.ne.s32.totalorder %s390, %s392
      %p399 = scmp.eq.s32.totalorder %s46, 1
      %p400 = por %p398, %p399
      %p401 = scmp.ne.s32.totalorder %s392, %s393
      %p402 = scmp.eq.s32.totalorder %s46, 0
      %p403 = por %p401, %p402
      %p404 = scmp.ne.s32.totalorder %s392, %s393
      %p405 = scmp.eq.s32.totalorder %s47, 1
      %p406 = por %p404, %p405
      %p408 = scmp.ne.s32.totalorder %s393, %s407
      %p409 = scmp.eq.s32.totalorder %s47, 0
      %p410 = por %p408, %p409
      %s412 = sadd.s32 %s411, 1
      %p415 = scmp.eq.s32.totalorder %s41, 1
      %p416 = scmp.ne.s32.totalorder %s411, %s413
      %p417 = scmp.eq.s32.totalorder %s41, 0
      %p418 = por %p416, %p417
      %p419 = scmp.ne.s32.totalorder %s411, %s413
      %p420 = scmp.eq.s32.totalorder %s46, 1
      %p421 = por %p419, %p420
      %p422 = scmp.ne.s32.totalorder %s413, %s414
      %p423 = scmp.eq.s32.totalorder %s46, 0
      %p424 = por %p422, %p423
      %p425 = scmp.ne.s32.totalorder %s413, %s414
      %p426 = scmp.eq.s32.totalorder %s47, 1
      %p427 = por %p425, %p426
      %p429 = scmp.ne.s32.totalorder %s414, %s428
      %p430 = scmp.eq.s32.totalorder %s47, 0
      %p431 = por %p429, %p430
      %s433 = sadd.s32 %s432, 1
      %p436 = scmp.eq.s32.totalorder %s41, 1
      %p437 = scmp.ne.s32.totalorder %s432, %s434
      %p438 = scmp.eq.s32.totalorder %s41, 0
      %p439 = por %p437, %p438
      %p440 = scmp.ne.s32.totalorder %s432, %s434
      %p441 = scmp.eq.s32.totalorder %s46, 1
      %p442 = por %p440, %p441
      %p443 = scmp.ne.s32.totalorder %s434, %s435
      %p444 = scmp.eq.s32.totalorder %s46, 0
      %p445 = por %p443, %p444
      %p446 = scmp.ne.s32.totalorder %s434, %s435
      %p447 = scmp.eq.s32.totalorder %s47, 1
      %p448 = por %p446, %p447
      %p450 = scmp.ne.s32.totalorder %s435, %s449
      %p451 = scmp.eq.s32.totalorder %s47, 0
      %p452 = por %p450, %p451
      %s454 = sadd.s32 %s453, 1
      %p457 = scmp.eq.s32.totalorder %s41, 1
      %p458 = scmp.ne.s32.totalorder %s453, %s455
      %p459 = scmp.eq.s32.totalorder %s41, 0
      %p460 = por %p458, %p459
      %p461 = scmp.ne.s32.totalorder %s453, %s455
      %p462 = scmp.eq.s32.totalorder %s46, 1
      %p463 = por %p461, %p462
      %p464 = scmp.ne.s32.totalorder %s455, %s456
      %p465 = scmp.eq.s32.totalorder %s46, 0
      %p466 = por %p464, %p465
      %p467 = scmp.ne.s32.totalorder %s455, %s456
      %p468 = scmp.eq.s32.totalorder %s47, 1
      %p469 = por %p467, %p468
      %p471 = scmp.ne.s32.totalorder %s456, %s470
      %p472 = scmp.eq.s32.totalorder %s47, 0
      %p473 = por %p471, %p472
      %s475 = sadd.s32 %s474, 1
      %p478 = scmp.eq.s32.totalorder %s41, 1
      %p479 = scmp.ne.s32.totalorder %s474, %s476
      %p480 = scmp.eq.s32.totalorder %s41, 0
      %p481 = por %p479, %p480
      %p482 = scmp.ne.s32.totalorder %s474, %s476
      %p483 = scmp.eq.s32.totalorder %s46, 1
      %p484 = por %p482, %p483
      %p485 = scmp.ne.s32.totalorder %s476, %s477
      %p486 = scmp.eq.s32.totalorder %s46, 0
      %p487 = por %p485, %p486
      %p488 = scmp.ne.s32.totalorder %s476, %s477
      %p489 = scmp.eq.s32.totalorder %s47, 1
      %p490 = por %p488, %p489
      %p492 = scmp.ne.s32.totalorder %s477, %s491
      %p493 = scmp.eq.s32.totalorder %s47, 0
      %p494 = por %p492, %p493
      %s496 = sadd.s32 %s495, 1
      %p499 = scmp.eq.s32.totalorder %s41, 1
      %p500 = scmp.ne.s32.totalorder %s495, %s497
      %p501 = scmp.eq.s32.totalorder %s41, 0
      %p502 = por %p500, %p501
      %p503 = scmp.ne.s32.totalorder %s495, %s497
      %p504 = scmp.eq.s32.totalorder %s46, 1
      %p505 = por %p503, %p504
      %p506 = scmp.ne.s32.totalorder %s497, %s498
      %p507 = scmp.eq.s32.totalorder %s46, 0
      %p508 = por %p506, %p507
      %p509 = scmp.ne.s32.totalorder %s497, %s498
      %p510 = scmp.eq.s32.totalorder %s47, 1
      %p511 = por %p509, %p510
      %p513 = scmp.ne.s32.totalorder %s498, %s512
      %p514 = scmp.eq.s32.totalorder %s47, 0
      %p515 = por %p513, %p514
      %s517 = sadd.s32 %s516, 1
      %p520 = scmp.eq.s32.totalorder %s41, 1
      %p521 = scmp.ne.s32.totalorder %s516, %s518
      %p522 = scmp.eq.s32.totalorder %s41, 0
      %p523 = por %p521, %p522
      %p524 = scmp.ne.s32.totalorder %s516, %s518
      %p525 = scmp.eq.s32.totalorder %s46, 1
      %p526 = por %p524, %p525
      %p527 = scmp.ne.s32.totalorder %s518, %s519
      %p528 = scmp.eq.s32.totalorder %s46, 0
      %p529 = por %p527, %p528
      %p530 = scmp.ne.s32.totalorder %s518, %s519
      %p531 = scmp.eq.s32.totalorder %s47, 1
      %p532 = por %p530, %p531
      %p534 = scmp.ne.s32.totalorder %s519, %s533
      %p535 = scmp.eq.s32.totalorder %s47, 0
      %p536 = por %p534, %p535
      %s537 = ssub.s32 %s41, %s48
      %p538 = scmp.eq.s32.totalorder %s537, 0
      %s540 = sadd.s32 %s539, 1
      %s541 = scalar_select %p538, %s539, %s540
      %p544 = pneg %p538
      %p545 = scmp.eq.s32.totalorder %s41, 1
      %p546 = por %p544, %p545
      %p547 = scmp.ne.s32.totalorder %s539, %s542
      %p548 = scmp.eq.s32.totalorder %s41, 0
      %p549 = por %p547, %p548
      %p550 = scmp.ne.s32.totalorder %s539, %s542
      %p551 = scmp.eq.s32.totalorder %s46, 1
      %p552 = por %p550, %p551
      %p553 = scmp.ne.s32.totalorder %s542, %s543
      %p554 = scmp.eq.s32.totalorder %s46, 0
      %p555 = por %p553, %p554
      %p556 = scmp.ne.s32.totalorder %s542, %s543
      %p557 = scmp.eq.s32.totalorder %s47, 1
      %p558 = por %p556, %p557
      %p560 = scmp.ne.s32.totalorder %s543, %s559
      %p561 = scmp.eq.s32.totalorder %s47, 0
      %p562 = por %p560, %p561
      %p563 = scmp.le.s32.totalorder 1, %s41
      %p564 = scmp.lt.s32.totalorder %s41, 3
      %p565 = pnand %p563, %p564
      %p566 = pneg %p565
      // Predicated region
      $region9: #{tpu_custom_call.1} parent=5 // pred_check
        _
      $region10: #{tpu_custom_call.1} parent=5 // pred_check_branch
        %568 = sbr.rel (%p565) target = $region12
      $region11: #{tpu_custom_call.1} parent=5 // pred_region
        %s569 = ssub.s32 %s41, 1
        // Predicated region
        $region13: #{tpu_custom_call.1} parent=11 // pred_check
          %p570 = pneg %p88
        $region14: #{tpu_custom_call.1} parent=11 // pred_check_branch
          %572 = sbr.rel (%p570) target = $region16
        $region15: #{tpu_custom_call.1} parent=11 // pred_region
          %s574 = ssub.s32 128, 128
          %575 = vsyncadd [#allocation7], %s574
          %s577 = sshll.u32 %s1, 4
          %s578 = int_to_ptr.vmem [resolvable:$true] %s577
          %580 = dma.vmem_to_smem %s578, 128, [#allocation5], [#allocation7]
        $region16: #{tpu_custom_call.1} parent=11 // pred_fallthru
          _
        // Predicated region
        $region17: #{tpu_custom_call.1} parent=11 // pred_check
          %p581 = pneg %p109
        $region18: #{tpu_custom_call.1} parent=11 // pred_check_branch
          %583 = sbr.rel (%p581) target = $region20
        $region19: #{tpu_custom_call.1} parent=11 // pred_region
          %s585 = ssub.s32 16, 16
          %586 = vsyncadd [#allocation9], %s585
          %s588 = sshll.u32 %s2, 4
          %s589 = int_to_ptr.vmem [resolvable:$true] %s588
          %591 = dma.vmem_to_smem %s589, 16, [#allocation8], [#allocation9]
        $region20: #{tpu_custom_call.1} parent=11 // pred_fallthru
          _
        // Predicated region
        $region21: #{tpu_custom_call.1} parent=11 // pred_check
          %p592 = pneg %p130
        $region22: #{tpu_custom_call.1} parent=11 // pred_check_branch
          %594 = sbr.rel (%p592) target = $region24
        $region23: #{tpu_custom_call.1} parent=11 // pred_region
          %s596 = ssub.s32 128, 128
          %597 = vsyncadd [#allocation9], %s596
          %s599 = sshll.u32 %s3, 4
          %s600 = int_to_ptr.vmem [resolvable:$true] %s599
          %602 = dma.vmem_to_smem %s600, 128, [#allocation10], [#allocation9]
        $region24: #{tpu_custom_call.1} parent=11 // pred_fallthru
          _
        // Predicated region
        $region25: #{tpu_custom_call.1} parent=11 // pred_check
          %p603 = pneg %p151
        $region26: #{tpu_custom_call.1} parent=11 // pred_check_branch
          %605 = sbr.rel (%p603) target = $region28
        $region27: #{tpu_custom_call.1} parent=11 // pred_region
          %s607 = ssub.s32 16, 16
          %608 = vsyncadd [#allocation6], %s607
          %611 = dma.hbm_to_smem %s4, 16, [#allocation11], [#allocation6]
        $region28: #{tpu_custom_call.1} parent=11 // pred_fallthru
          _
        // Predicated region
        $region29: #{tpu_custom_call.1} parent=11 // pred_check
          %p612 = pneg %p172
        $region30: #{tpu_custom_call.1} parent=11 // pred_check_branch
          %614 = sbr.rel (%p612) target = $region32
        $region31: #{tpu_custom_call.1} parent=11 // pred_region
          %s616 = ssub.s32 128, 128
          %617 = vsyncadd [#allocation13], %s616
          %s619 = sshll.u32 %s5, 4
          %s620 = int_to_ptr.vmem [resolvable:$true] %s619
          %622 = dma.vmem_to_smem %s620, 128, [#allocation12], [#allocation13]
        $region32: #{tpu_custom_call.1} parent=11 // pred_fallthru
          _
        // Predicated region
        $region33: #{tpu_custom_call.1} parent=11 // pred_check
          %p623 = pneg %p193
        $region34: #{tpu_custom_call.1} parent=11 // pred_check_branch
          %625 = sbr.rel (%p623) target = $region36
        $region35: #{tpu_custom_call.1} parent=11 // pred_region
          %s627 = ssub.s32 16, 16
          %628 = vsyncadd [#allocation15], %s627
          %631 = dma.hbm_to_smem %s6, 16, [#allocation14], [#allocation15]
        $region36: #{tpu_custom_call.1} parent=11 // pred_fallthru
          _
        // Predicated region
        $region37: #{tpu_custom_call.1} parent=11 // pred_check
          %p632 = pneg %p214
        $region38: #{tpu_custom_call.1} parent=11 // pred_check_branch
          %634 = sbr.rel (%p632) target = $region40
        $region39: #{tpu_custom_call.1} parent=11 // pred_region
          %s636 = ssub.s32 128, 128
          %637 = vsyncadd [#allocation13], %s636
          %s639 = sshll.u32 %s7, 4
          %s640 = int_to_ptr.vmem [resolvable:$true] %s639
          %642 = dma.vmem_to_smem %s640, 128, [#allocation16], [#allocation13]
        $region40: #{tpu_custom_call.1} parent=11 // pred_fallthru
          _
        // Predicated region
        $region41: #{tpu_custom_call.1} parent=11 // pred_check
          %p643 = pneg %p235
        $region42: #{tpu_custom_call.1} parent=11 // pred_check_branch
          %645 = sbr.rel (%p643) target = $region44
        $region43: #{tpu_custom_call.1} parent=11 // pred_region
          %s647 = ssub.s32 16, 16
          %648 = vsyncadd [#allocation15], %s647
          %651 = dma.hbm_to_smem %s8, 16, [#allocation17], [#allocation15]
        $region44: #{tpu_custom_call.1} parent=11 // pred_fallthru
          _
        // Predicated region
        $region45: #{tpu_custom_call.1} parent=11 // pred_check
          %p652 = pneg %p256
        $region46: #{tpu_custom_call.1} parent=11 // pred_check_branch
          %654 = sbr.rel (%p652) target = $region48
        $region47: #{tpu_custom_call.1} parent=11 // pred_region
          %s656 = ssub.s32 128, 128
          %657 = vsyncadd [#allocation19], %s656
          %s659 = sshll.u32 %s9, 4
          %s660 = int_to_ptr.vmem [resolvable:$true] %s659
          %662 = dma.vmem_to_smem %s660, 128, [#allocation18], [#allocation19]
        $region48: #{tpu_custom_call.1} parent=11 // pred_fallthru
          _
        // Predicated region
        $region49: #{tpu_custom_call.1} parent=11 // pred_check
          %p663 = pneg %p277
        $region50: #{tpu_custom_call.1} parent=11 // pred_check_branch
          %665 = sbr.rel (%p663) target = $region52
        $region51: #{tpu_custom_call.1} parent=11 // pred_region
          %s667 = ssub.s32 16, 16
          %668 = vsyncadd [#allocation19], %s667
          %s670 = sshll.u32 %s10, 4
          %s671 = int_to_ptr.vmem [resolvable:$true] %s670
          %673 = dma.vmem_to_smem %s671, 16, [#allocation20], [#allocation19]
        $region52: #{tpu_custom_call.1} parent=11 // pred_fallthru
          _
        // Predicated region
        $region53: #{tpu_custom_call.1} parent=11 // pred_check
          %p674 = pneg %p298
        $region54: #{tpu_custom_call.1} parent=11 // pred_check_branch
          %676 = sbr.rel (%p674) target = $region56
        $region55: #{tpu_custom_call.1} parent=11 // pred_region
          %s678 = ssub.s32 128, 128
          %679 = vsyncadd [#allocation22], %s678
          %s681 = sshll.u32 %s11, 4
          %s682 = int_to_ptr.vmem [resolvable:$true] %s681
          %684 = dma.vmem_to_smem %s682, 128, [#allocation21], [#allocation22]
        $region56: #{tpu_custom_call.1} parent=11 // pred_fallthru
          _
        // Predicated region
        $region57: #{tpu_custom_call.1} parent=11 // pred_check
          %p685 = pneg %p319
        $region58: #{tpu_custom_call.1} parent=11 // pred_check_branch
          %687 = sbr.rel (%p685) target = $region60
        $region59: #{tpu_custom_call.1} parent=11 // pred_region
          %s689 = ssub.s32 16, 16
          %690 = vsyncadd [#allocation22], %s689
          %s692 = sshll.u32 %s12, 4
          %s693 = int_to_ptr.vmem [resolvable:$true] %s692
          %695 = dma.vmem_to_smem %s693, 16, [#allocation23], [#allocation22]
        $region60: #{tpu_custom_call.1} parent=11 // pred_fallthru
          _
        // Predicated region
        $region61: #{tpu_custom_call.1} parent=11 // pred_check
          %p696 = pneg %p340
        $region62: #{tpu_custom_call.1} parent=11 // pred_check_branch
          %698 = sbr.rel (%p696) target = $region64
        $region63: #{tpu_custom_call.1} parent=11 // pred_region
          %s700 = ssub.s32 16, 16
          %701 = vsyncadd [#allocation25], %s700
          %s703 = sshll.u32 %s13, 4
          %s704 = int_to_ptr.vmem [resolvable:$true] %s703
          %706 = dma.vmem_to_smem %s704, 16, [#allocation24], [#allocation25]
        $region64: #{tpu_custom_call.1} parent=11 // pred_fallthru
          _
        // Predicated region
        $region65: #{tpu_custom_call.1} parent=11 // pred_check
          %p707 = pneg %p361
        $region66: #{tpu_custom_call.1} parent=11 // pred_check_branch
          %709 = sbr.rel (%p707) target = $region68
        $region67: #{tpu_custom_call.1} parent=11 // pred_region
          _
        $region68: #{tpu_custom_call.1} parent=11 // pred_fallthru
          _
        // Predicated region
        $region69: #{tpu_custom_call.1} parent=11 // pred_check
          %p710 = pneg %p382
        $region70: #{tpu_custom_call.1} parent=11 // pred_check_branch
          %712 = sbr.rel (%p710) target = $region72
        $region71: #{tpu_custom_call.1} parent=11 // pred_region
          %s714 = ssub.s32 16, 16
          %715 = vsyncadd [#allocation25], %s714
          %s717 = sshll.u32 %s15, 4
          %s718 = int_to_ptr.vmem [resolvable:$true] %s717
          %720 = dma.vmem_to_smem %s718, 16, [#allocation26], [#allocation25]
        $region72: #{tpu_custom_call.1} parent=11 // pred_fallthru
          _
        // Predicated region
        $region73: #{tpu_custom_call.1} parent=11 // pred_check
          %p721 = pneg %p403
        $region74: #{tpu_custom_call.1} parent=11 // pred_check_branch
          %723 = sbr.rel (%p721) target = $region76
        $region75: #{tpu_custom_call.1} parent=11 // pred_region
          _
        $region76: #{tpu_custom_call.1} parent=11 // pred_fallthru
          _
        // Predicated region
        $region77: #{tpu_custom_call.1} parent=11 // pred_check
          %p724 = pneg %p424
        $region78: #{tpu_custom_call.1} parent=11 // pred_check_branch
          %726 = sbr.rel (%p724) target = $region80
        $region79: #{tpu_custom_call.1} parent=11 // pred_region
          _
        $region80: #{tpu_custom_call.1} parent=11 // pred_fallthru
          _
        // Predicated region
        $region81: #{tpu_custom_call.1} parent=11 // pred_check
          %p727 = pneg %p445
        $region82: #{tpu_custom_call.1} parent=11 // pred_check_branch
          %729 = sbr.rel (%p727) target = $region84
        $region83: #{tpu_custom_call.1} parent=11 // pred_region
          _
        $region84: #{tpu_custom_call.1} parent=11 // pred_fallthru
          _
        // Predicated region
        $region85: #{tpu_custom_call.1} parent=11 // pred_check
          %p730 = pneg %p466
        $region86: #{tpu_custom_call.1} parent=11 // pred_check_branch
          %732 = sbr.rel (%p730) target = $region88
        $region87: #{tpu_custom_call.1} parent=11 // pred_region
          _
        $region88: #{tpu_custom_call.1} parent=11 // pred_fallthru
          _
        // Predicated region
        $region89: #{tpu_custom_call.1} parent=11 // pred_check
          %p733 = pneg %p487
        $region90: #{tpu_custom_call.1} parent=11 // pred_check_branch
          %735 = sbr.rel (%p733) target = $region92
        $region91: #{tpu_custom_call.1} parent=11 // pred_region
          _
        $region92: #{tpu_custom_call.1} parent=11 // pred_fallthru
          _
        // Predicated region
        $region93: #{tpu_custom_call.1} parent=11 // pred_check
          %p736 = pneg %p508
        $region94: #{tpu_custom_call.1} parent=11 // pred_check_branch
          %738 = sbr.rel (%p736) target = $region96
        $region95: #{tpu_custom_call.1} parent=11 // pred_region
          _
        $region96: #{tpu_custom_call.1} parent=11 // pred_fallthru
          _
        // Predicated region
        $region97: #{tpu_custom_call.1} parent=11 // pred_check
          %p739 = pneg %p529
        $region98: #{tpu_custom_call.1} parent=11 // pred_check_branch
          %741 = sbr.rel (%p739) target = $region100
        $region99: #{tpu_custom_call.1} parent=11 // pred_region
          _
        $region100: #{tpu_custom_call.1} parent=11 // pred_fallthru
          _
      $region12: #{tpu_custom_call.1} parent=5 // pred_fallthru
        _
      %p742 = scmp.lt.s32.totalorder %s41, 2
      // Predicated region
      $region101: #{tpu_custom_call.1} parent=5 // pred_check
        %p743 = pneg %p742
      $region102: #{tpu_custom_call.1} parent=5 // pred_check_branch
        %745 = sbr.rel (%p743) target = $region104
      $region103: #{tpu_custom_call.1} parent=5 // pred_region
        // Predicated region
        $region105: #{tpu_custom_call.1} parent=103 // pred_check
          %p746 = pneg %p61
        $region106: #{tpu_custom_call.1} parent=103 // pred_check_branch
          %748 = sbr.rel (%p746) target = $region108
        $region107: #{tpu_custom_call.1} parent=103 // pred_region
          %p749 = scmp.lt.s32.totalorder %s41, 1
          %s750 = scalar_select %p749, %s41, 1
          %s751 = smul.addr %s750, 4
          %s752 = smul.addr %s751, 8
          %s753 = scalar_lea.vmem %s0, %s752
        $region108: #{tpu_custom_call.1} parent=103 // pred_fallthru
          _
      $region104: #{tpu_custom_call.1} parent=5 // pred_fallthru
        _
      %p754 = scmp.le.s32.totalorder 1, %s41
      %p755 = scmp.lt.s32.totalorder %s41, 3
      %p756 = pnand %p754, %p755
      %p757 = pneg %p756
      // Predicated region
      $region109: #{tpu_custom_call.1} parent=5 // pred_check
        _
      $region110: #{tpu_custom_call.1} parent=5 // pred_check_branch
        %759 = sbr.rel (%p756) target = $region112
      $region111: #{tpu_custom_call.1} parent=5 // pred_region
        %s760 = ssub.s32 %s41, 1
        // Predicated region
        $region113: #{tpu_custom_call.1} parent=111 // pred_check
          %p761 = pneg %p88
        $region114: #{tpu_custom_call.1} parent=111 // pred_check_branch
          %763 = sbr.rel (%p761) target = $region116
        $region115: #{tpu_custom_call.1} parent=111 // pred_region
          %764 = dma.done [#allocation7], 128
        $region116: #{tpu_custom_call.1} parent=111 // pred_fallthru
          _
        // Predicated region
        $region117: #{tpu_custom_call.1} parent=111 // pred_check
          %p765 = pneg %p109
        $region118: #{tpu_custom_call.1} parent=111 // pred_check_branch
          %767 = sbr.rel (%p765) target = $region120
        $region119: #{tpu_custom_call.1} parent=111 // pred_region
          %768 = dma.done [#allocation9], 16
        $region120: #{tpu_custom_call.1} parent=111 // pred_fallthru
          _
        // Predicated region
        $region121: #{tpu_custom_call.1} parent=111 // pred_check
          %p769 = pneg %p130
        $region122: #{tpu_custom_call.1} parent=111 // pred_check_branch
          %771 = sbr.rel (%p769) target = $region124
        $region123: #{tpu_custom_call.1} parent=111 // pred_region
          %772 = dma.done [#allocation9], 128
        $region124: #{tpu_custom_call.1} parent=111 // pred_fallthru
          _
        // Predicated region
        $region125: #{tpu_custom_call.1} parent=111 // pred_check
          %p773 = pneg %p151
        $region126: #{tpu_custom_call.1} parent=111 // pred_check_branch
          %775 = sbr.rel (%p773) target = $region128
        $region127: #{tpu_custom_call.1} parent=111 // pred_region
          %776 = dma.done [#allocation6], 16
        $region128: #{tpu_custom_call.1} parent=111 // pred_fallthru
          _
        // Predicated region
        $region129: #{tpu_custom_call.1} parent=111 // pred_check
          %p777 = pneg %p172
        $region130: #{tpu_custom_call.1} parent=111 // pred_check_branch
          %779 = sbr.rel (%p777) target = $region132
        $region131: #{tpu_custom_call.1} parent=111 // pred_region
          %780 = dma.done [#allocation13], 128
        $region132: #{tpu_custom_call.1} parent=111 // pred_fallthru
          _
        // Predicated region
        $region133: #{tpu_custom_call.1} parent=111 // pred_check
          %p781 = pneg %p193
        $region134: #{tpu_custom_call.1} parent=111 // pred_check_branch
          %783 = sbr.rel (%p781) target = $region136
        $region135: #{tpu_custom_call.1} parent=111 // pred_region
          %784 = dma.done [#allocation15], 16
        $region136: #{tpu_custom_call.1} parent=111 // pred_fallthru
          _
        // Predicated region
        $region137: #{tpu_custom_call.1} parent=111 // pred_check
          %p785 = pneg %p214
        $region138: #{tpu_custom_call.1} parent=111 // pred_check_branch
          %787 = sbr.rel (%p785) target = $region140
        $region139: #{tpu_custom_call.1} parent=111 // pred_region
          %788 = dma.done [#allocation13], 128
        $region140: #{tpu_custom_call.1} parent=111 // pred_fallthru
          _
        // Predicated region
        $region141: #{tpu_custom_call.1} parent=111 // pred_check
          %p789 = pneg %p235
        $region142: #{tpu_custom_call.1} parent=111 // pred_check_branch
          %791 = sbr.rel (%p789) target = $region144
        $region143: #{tpu_custom_call.1} parent=111 // pred_region
          %792 = dma.done [#allocation15], 16
        $region144: #{tpu_custom_call.1} parent=111 // pred_fallthru
          _
        // Predicated region
        $region145: #{tpu_custom_call.1} parent=111 // pred_check
          %p793 = pneg %p256
        $region146: #{tpu_custom_call.1} parent=111 // pred_check_branch
          %795 = sbr.rel (%p793) target = $region148
        $region147: #{tpu_custom_call.1} parent=111 // pred_region
          %796 = dma.done [#allocation19], 128
        $region148: #{tpu_custom_call.1} parent=111 // pred_fallthru
          _
        // Predicated region
        $region149: #{tpu_custom_call.1} parent=111 // pred_check
          %p797 = pneg %p277
        $region150: #{tpu_custom_call.1} parent=111 // pred_check_branch
          %799 = sbr.rel (%p797) target = $region152
        $region151: #{tpu_custom_call.1} parent=111 // pred_region
          %800 = dma.done [#allocation19], 16
        $region152: #{tpu_custom_call.1} parent=111 // pred_fallthru
          _
        // Predicated region
        $region153: #{tpu_custom_call.1} parent=111 // pred_check
          %p801 = pneg %p298
        $region154: #{tpu_custom_call.1} parent=111 // pred_check_branch
          %803 = sbr.rel (%p801) target = $region156
        $region155: #{tpu_custom_call.1} parent=111 // pred_region
          %804 = dma.done [#allocation22], 128
        $region156: #{tpu_custom_call.1} parent=111 // pred_fallthru
          _
        // Predicated region
        $region157: #{tpu_custom_call.1} parent=111 // pred_check
          %p805 = pneg %p319
        $region158: #{tpu_custom_call.1} parent=111 // pred_check_branch
          %807 = sbr.rel (%p805) target = $region160
        $region159: #{tpu_custom_call.1} parent=111 // pred_region
          %808 = dma.done [#allocation22], 16
        $region160: #{tpu_custom_call.1} parent=111 // pred_fallthru
          _
        // Predicated region
        $region161: #{tpu_custom_call.1} parent=111 // pred_check
          %p809 = pneg %p340
        $region162: #{tpu_custom_call.1} parent=111 // pred_check_branch
          %811 = sbr.rel (%p809) target = $region164
        $region163: #{tpu_custom_call.1} parent=111 // pred_region
          %812 = dma.done [#allocation25], 16
        $region164: #{tpu_custom_call.1} parent=111 // pred_fallthru
          _
        // Predicated region
        $region165: #{tpu_custom_call.1} parent=111 // pred_check
          %p813 = pneg %p382
        $region166: #{tpu_custom_call.1} parent=111 // pred_check_branch
          %815 = sbr.rel (%p813) target = $region168
        $region167: #{tpu_custom_call.1} parent=111 // pred_region
          %816 = dma.done [#allocation25], 16
        $region168: #{tpu_custom_call.1} parent=111 // pred_fallthru
          _
        %817 = sfence
        %p818 = scmp.lt.s32.totalorder %s46, 1
        %s819 = scalar_select %p818, %s46, 1
        %s820 = smul.addr %s819, 4
        %s821 = smul.addr %s820, 8
        %s822 = scalar_lea.vmem %s0, %s821
        %p823 = pneg %p67
        %p824 = pneg %p64
        %p825 = pneg %p88
        %p826 = pneg %p85
        %p827 = pneg %p109
        %p828 = pneg %p106
        %p829 = pneg %p130
        %p830 = pneg %p127
        %p831 = pneg %p151
        %p832 = pneg %p148
        %p833 = pneg %p172
        %p834 = pneg %p169
        %p835 = pneg %p193
        %p836 = pneg %p190
        %p837 = pneg %p214
        %p838 = pneg %p211
        %p839 = pneg %p235
        %p840 = pneg %p232
        %p841 = pneg %p256
        %p842 = pneg %p253
        %p843 = pneg %p277
        %p844 = pneg %p274
        %p845 = pneg %p298
        %p846 = pneg %p295
        %p847 = pneg %p319
        %p848 = pneg %p316
        %p849 = pneg %p340
        %p850 = pneg %p337
        %p851 = pneg %p361
        %p852 = pneg %p358
        %p853 = pneg %p382
        %p854 = pneg %p379
        %p855 = pneg %p403
        %p856 = pneg %p400
        %p857 = pneg %p424
        %p858 = pneg %p421
        %p859 = pneg %p445
        %p860 = pneg %p442
        %p861 = pneg %p466
        %p862 = pneg %p463
        %p863 = pneg %p487
        %p864 = pneg %p484
        %p865 = pneg %p508
        %p866 = pneg %p505
        %p867 = pneg %p529
        %p868 = pneg %p526
        %p869 = pneg %p555
        %p870 = pneg %p552
        %p871 = scmp.lt.s32.totalorder %s46, 1
        %s872 = scalar_select %p871, %s46, 1
        %s873 = smul.addr %s872, 4
        %s874 = smul.addr %s873, 8
        %s875 = scalar_lea.vmem %s23, %s874
        %p876 = scmp.lt.s32.totalorder %s46, 1
        %s877 = scalar_select %p876, %s46, 1
        %s878 = smul.addr %s877, 4
        %s879 = smul.addr %s878, 8
        %s880 = scalar_lea.vmem %s0, %s879
        %p881 = scmp.lt.s32.totalorder %s46, 1
        %s882 = scalar_select %p881, %s46, 1
        %s883 = smul.addr %s882, 4
        %s884 = smul.addr %s883, 8
        %s885 = scalar_lea.vmem %s23, %s884
        %v886 = vld [vmem:[%s880] sm:$0xff]
        %v887 = vld [vmem:[%s880 + $0x8] sm:$0xff]
        %v888 = vld [vmem:[%s880 + $0x10] sm:$0xff]
        %v889 = vld [vmem:[%s880 + $0x18] sm:$0xff]
        %s890 = sld [smem:[#allocation5]]
        %v891 = vstv %s890
        %v892 = vmul.f32 %v891, %v886
        %v893 = vmul.f32 %v891, %v887
        %v894 = vmul.f32 %v891, %v888
        %v895 = vmul.f32 %v891, %v889
        %s896 = sld [smem:[#allocation5 + $0x1]]
        %v897 = vstv %s896
        %v898 = vmul.f32 %v897, %v886
        %v899 = vmul.f32 %v897, %v887
        %v900 = vmul.f32 %v897, %v888
        %v901 = vmul.f32 %v897, %v889
        %906 = vrot.lane.b32.xlu0 %v898, 127
        %v907 = vpop.permute.xlu0 %906
        %908 = vrot.lane.b32.xlu0 %v899, 127
        %v909 = vpop.permute.xlu0 %908
        %910 = vrot.lane.b32.xlu0 %v900, 127
        %v911 = vpop.permute.xlu0 %910
        %912 = vrot.lane.b32.xlu0 %v901, 127
        %v913 = vpop.permute.xlu0 %912
        %v918 = vadd.f32 %v892, %v907
        %v919 = vadd.f32 %v893, %v909
        %v920 = vadd.f32 %v894, %v911
        %v921 = vadd.f32 %v895, %v913
        %s922 = sld [smem:[#allocation5 + $0x2]]
        %v923 = vstv %s922
        %v924 = vmul.f32 %v923, %v886
        %v925 = vmul.f32 %v923, %v887
        %v926 = vmul.f32 %v923, %v888
        %v927 = vmul.f32 %v923, %v889
        %vm932 = vcmask 1046528
        %v933 = vrot.slane %v924, 1
        %v934 = vrot.slane %v925, 1
        %v935 = vsel %vm932, %v933, %v934
        %v936 = vrot.slane %v926, 1
        %v937 = vsel %vm932, %v934, %v936
        %v938 = vrot.slane %v927, 1
        %v939 = vsel %vm932, %v936, %v938
        %v944 = vadd.f32 %v918, %v935
        %v945 = vadd.f32 %v919, %v937
        %v946 = vadd.f32 %v920, %v939
        %v947 = vadd.f32 %v921, %v938
        %s948 = sld [smem:[#allocation5 + $0x3]]
        %v949 = vstv %s948
        %v950 = vmul.f32 %v949, %v886
        %v951 = vmul.f32 %v949, %v887
        %v952 = vmul.f32 %v949, %v888
        %v953 = vmul.f32 %v949, %v889
        %v958 = vrot.slane %v950, 1
        %v959 = vrot.slane %v951, 1
        %v960 = vsel %vm932, %v958, %v959
        %v961 = vrot.slane %v952, 1
        %v962 = vsel %vm932, %v959, %v961
        %v963 = vrot.slane %v953, 1
        %v964 = vsel %vm932, %v961, %v963
        %965 = vrot.lane.b32.xlu0 %v960, 127
        %v966 = vpop.permute.xlu0 %965
        %967 = vrot.lane.b32.xlu0 %v962, 127
        %v968 = vpop.permute.xlu0 %967
        %969 = vrot.lane.b32.xlu0 %v964, 127
        %v970 = vpop.permute.xlu0 %969
        %971 = vrot.lane.b32.xlu0 %v963, 127
        %v972 = vpop.permute.xlu0 %971
        %v977 = vadd.f32 %v944, %v966
        %v978 = vadd.f32 %v945, %v968
        %v979 = vadd.f32 %v946, %v970
        %v980 = vadd.f32 %v947, %v972
        %s981 = sld [smem:[#allocation8]]
        %v982 = vstv %s981
        %v983 = vadd.f32 %v977, %v982
        %v984 = vadd.f32 %v978, %v982
        %v985 = vadd.f32 %v979, %v982
        %v986 = vadd.f32 %v980, %v982
        %v987 = vmax.f32 %v983, 0.0
        %v988 = vmax.f32 %v984, 0.0
        %v989 = vmax.f32 %v985, 0.0
        %v990 = vmax.f32 %v986, 0.0
        %s991 = sld [smem:[#allocation5 + $0x80]]
        %v992 = vstv %s991
        %v993 = vmul.f32 %v992, %v886
        %v994 = vmul.f32 %v992, %v887
        %v995 = vmul.f32 %v992, %v888
        %v996 = vmul.f32 %v992, %v889
        %s997 = sld [smem:[#allocation5 + $0x81]]
        %v998 = vstv %s997
        %v999 = vmul.f32 %v998, %v886
        %v1000 = vmul.f32 %v998, %v887
        %v1001 = vmul.f32 %v998, %v888
        %v1002 = vmul.f32 %v998, %v889
        %1007 = vrot.lane.b32.xlu0 %v999, 127
        %v1008 = vpop.permute.xlu0 %1007
        %1009 = vrot.lane.b32.xlu0 %v1000, 127
        %v1010 = vpop.permute.xlu0 %1009
        %1011 = vrot.lane.b32.xlu0 %v1001, 127
        %v1012 = vpop.permute.xlu0 %1011
        %1013 = vrot.lane.b32.xlu0 %v1002, 127
        %v1014 = vpop.permute.xlu0 %1013
        %v1019 = vadd.f32 %v993, %v1008
        %v1020 = vadd.f32 %v994, %v1010
        %v1021 = vadd.f32 %v995, %v1012
        %v1022 = vadd.f32 %v996, %v1014
        %s1023 = sld [smem:[#allocation5 + $0x82]]
        %v1024 = vstv %s1023
        %v1025 = vmul.f32 %v1024, %v886
        %v1026 = vmul.f32 %v1024, %v887
        %v1027 = vmul.f32 %v1024, %v888
        %v1028 = vmul.f32 %v1024, %v889
        %v1033 = vrot.slane %v1025, 1
        %v1034 = vrot.slane %v1026, 1
        %v1035 = vsel %vm932, %v1033, %v1034
        %v1036 = vrot.slane %v1027, 1
        %v1037 = vsel %vm932, %v1034, %v1036
        %v1038 = vrot.slane %v1028, 1
        %v1039 = vsel %vm932, %v1036, %v1038
        %v1044 = vadd.f32 %v1019, %v1035
        %v1045 = vadd.f32 %v1020, %v1037
        %v1046 = vadd.f32 %v1021, %v1039
        %v1047 = vadd.f32 %v1022, %v1038
        %s1048 = sld [smem:[#allocation5 + $0x83]]
        %v1049 = vstv %s1048
        %v1050 = vmul.f32 %v1049, %v886
        %v1051 = vmul.f32 %v1049, %v887
        %v1052 = vmul.f32 %v1049, %v888
        %v1053 = vmul.f32 %v1049, %v889
        %v1058 = vrot.slane %v1050, 1
        %v1059 = vrot.slane %v1051, 1
        %v1060 = vsel %vm932, %v1058, %v1059
        %v1061 = vrot.slane %v1052, 1
        %v1062 = vsel %vm932, %v1059, %v1061
        %v1063 = vrot.slane %v1053, 1
        %v1064 = vsel %vm932, %v1061, %v1063
        %1065 = vrot.lane.b32.xlu0 %v1060, 127
        %v1066 = vpop.permute.xlu0 %1065
        %1067 = vrot.lane.b32.xlu0 %v1062, 127
        %v1068 = vpop.permute.xlu0 %1067
        %1069 = vrot.lane.b32.xlu0 %v1064, 127
        %v1070 = vpop.permute.xlu0 %1069
        %1071 = vrot.lane.b32.xlu0 %v1063, 127
        %v1072 = vpop.permute.xlu0 %1071
        %v1077 = vadd.f32 %v1044, %v1066
        %v1078 = vadd.f32 %v1045, %v1068
        %v1079 = vadd.f32 %v1046, %v1070
        %v1080 = vadd.f32 %v1047, %v1072
        %s1081 = sld [smem:[#allocation8 + $0x1]]
        %v1082 = vstv %s1081
        %v1083 = vadd.f32 %v1077, %v1082
        %v1084 = vadd.f32 %v1078, %v1082
        %v1085 = vadd.f32 %v1079, %v1082
        %v1086 = vadd.f32 %v1080, %v1082
        %v1087 = vmax.f32 %v1083, 0.0
        %v1088 = vmax.f32 %v1084, 0.0
        %v1089 = vmax.f32 %v1085, 0.0
        %v1090 = vmax.f32 %v1086, 0.0
        %s1091 = sld [smem:[#allocation5 + $0x100]]
        %v1092 = vstv %s1091
        %v1093 = vmul.f32 %v1092, %v886
        %v1094 = vmul.f32 %v1092, %v887
        %v1095 = vmul.f32 %v1092, %v888
        %v1096 = vmul.f32 %v1092, %v889
        %s1097 = sld [smem:[#allocation5 + $0x101]]
        %v1098 = vstv %s1097
        %v1099 = vmul.f32 %v1098, %v886
        %v1100 = vmul.f32 %v1098, %v887
        %v1101 = vmul.f32 %v1098, %v888
        %v1102 = vmul.f32 %v1098, %v889
        %1107 = vrot.lane.b32.xlu0 %v1099, 127
        %v1108 = vpop.permute.xlu0 %1107
        %1109 = vrot.lane.b32.xlu0 %v1100, 127
        %v1110 = vpop.permute.xlu0 %1109
        %1111 = vrot.lane.b32.xlu0 %v1101, 127
        %v1112 = vpop.permute.xlu0 %1111
        %1113 = vrot.lane.b32.xlu0 %v1102, 127
        %v1114 = vpop.permute.xlu0 %1113
        %v1119 = vadd.f32 %v1093, %v1108
        %v1120 = vadd.f32 %v1094, %v1110
        %v1121 = vadd.f32 %v1095, %v1112
        %v1122 = vadd.f32 %v1096, %v1114
        %s1123 = sld [smem:[#allocation5 + $0x102]]
        %v1124 = vstv %s1123
        %v1125 = vmul.f32 %v1124, %v886
        %v1126 = vmul.f32 %v1124, %v887
        %v1127 = vmul.f32 %v1124, %v888
        %v1128 = vmul.f32 %v1124, %v889
        %v1133 = vrot.slane %v1125, 1
        %v1134 = vrot.slane %v1126, 1
        %v1135 = vsel %vm932, %v1133, %v1134
        %v1136 = vrot.slane %v1127, 1
        %v1137 = vsel %vm932, %v1134, %v1136
        %v1138 = vrot.slane %v1128, 1
        %v1139 = vsel %vm932, %v1136, %v1138
        %v1144 = vadd.f32 %v1119, %v1135
        %v1145 = vadd.f32 %v1120, %v1137
        %v1146 = vadd.f32 %v1121, %v1139
        %v1147 = vadd.f32 %v1122, %v1138
        %s1148 = sld [smem:[#allocation5 + $0x103]]
        %v1149 = vstv %s1148
        %v1150 = vmul.f32 %v1149, %v886
        %v1151 = vmul.f32 %v1149, %v887
        %v1152 = vmul.f32 %v1149, %v888
        %v1153 = vmul.f32 %v1149, %v889
        %v1158 = vrot.slane %v1150, 1
        %v1159 = vrot.slane %v1151, 1
        %v1160 = vsel %vm932, %v1158, %v1159
        %v1161 = vrot.slane %v1152, 1
        %v1162 = vsel %vm932, %v1159, %v1161
        %v1163 = vrot.slane %v1153, 1
        %v1164 = vsel %vm932, %v1161, %v1163
        %1165 = vrot.lane.b32.xlu0 %v1160, 127
        %v1166 = vpop.permute.xlu0 %1165
        %1167 = vrot.lane.b32.xlu0 %v1162, 127
        %v1168 = vpop.permute.xlu0 %1167
        %1169 = vrot.lane.b32.xlu0 %v1164, 127
        %v1170 = vpop.permute.xlu0 %1169
        %1171 = vrot.lane.b32.xlu0 %v1163, 127
        %v1172 = vpop.permute.xlu0 %1171
        %v1177 = vadd.f32 %v1144, %v1166
        %v1178 = vadd.f32 %v1145, %v1168
        %v1179 = vadd.f32 %v1146, %v1170
        %v1180 = vadd.f32 %v1147, %v1172
        %s1181 = sld [smem:[#allocation8 + $0x2]]
        %v1182 = vstv %s1181
        %v1183 = vadd.f32 %v1177, %v1182
        %v1184 = vadd.f32 %v1178, %v1182
        %v1185 = vadd.f32 %v1179, %v1182
        %v1186 = vadd.f32 %v1180, %v1182
        %v1187 = vmax.f32 %v1183, 0.0
        %v1188 = vmax.f32 %v1184, 0.0
        %v1189 = vmax.f32 %v1185, 0.0
        %v1190 = vmax.f32 %v1186, 0.0
        %s1191 = sld [smem:[#allocation5 + $0x180]]
        %v1192 = vstv %s1191
        %v1193 = vmul.f32 %v1192, %v886
        %v1194 = vmul.f32 %v1192, %v887
        %v1195 = vmul.f32 %v1192, %v888
        %v1196 = vmul.f32 %v1192, %v889
        %s1197 = sld [smem:[#allocation5 + $0x181]]
        %v1198 = vstv %s1197
        %v1199 = vmul.f32 %v1198, %v886
        %v1200 = vmul.f32 %v1198, %v887
        %v1201 = vmul.f32 %v1198, %v888
        %v1202 = vmul.f32 %v1198, %v889
        %1207 = vrot.lane.b32.xlu0 %v1199, 127
        %v1208 = vpop.permute.xlu0 %1207
        %1209 = vrot.lane.b32.xlu0 %v1200, 127
        %v1210 = vpop.permute.xlu0 %1209
        %1211 = vrot.lane.b32.xlu0 %v1201, 127
        %v1212 = vpop.permute.xlu0 %1211
        %1213 = vrot.lane.b32.xlu0 %v1202, 127
        %v1214 = vpop.permute.xlu0 %1213
        %v1219 = vadd.f32 %v1193, %v1208
        %v1220 = vadd.f32 %v1194, %v1210
        %v1221 = vadd.f32 %v1195, %v1212
        %v1222 = vadd.f32 %v1196, %v1214
        %s1223 = sld [smem:[#allocation5 + $0x182]]
        %v1224 = vstv %s1223
        %v1225 = vmul.f32 %v1224, %v886
        %v1226 = vmul.f32 %v1224, %v887
        %v1227 = vmul.f32 %v1224, %v888
        %v1228 = vmul.f32 %v1224, %v889
        %v1233 = vrot.slane %v1225, 1
        %v1234 = vrot.slane %v1226, 1
        %v1235 = vsel %vm932, %v1233, %v1234
        %v1236 = vrot.slane %v1227, 1
        %v1237 = vsel %vm932, %v1234, %v1236
        %v1238 = vrot.slane %v1228, 1
        %v1239 = vsel %vm932, %v1236, %v1238
        %v1244 = vadd.f32 %v1219, %v1235
        %v1245 = vadd.f32 %v1220, %v1237
        %v1246 = vadd.f32 %v1221, %v1239
        %v1247 = vadd.f32 %v1222, %v1238
        %s1248 = sld [smem:[#allocation5 + $0x183]]
        %v1249 = vstv %s1248
        %v1250 = vmul.f32 %v1249, %v886
        %v1251 = vmul.f32 %v1249, %v887
        %v1252 = vmul.f32 %v1249, %v888
        %v1253 = vmul.f32 %v1249, %v889
        %v1258 = vrot.slane %v1250, 1
        %v1259 = vrot.slane %v1251, 1
        %v1260 = vsel %vm932, %v1258, %v1259
        %v1261 = vrot.slane %v1252, 1
        %v1262 = vsel %vm932, %v1259, %v1261
        %v1263 = vrot.slane %v1253, 1
        %v1264 = vsel %vm932, %v1261, %v1263
        %1265 = vrot.lane.b32.xlu0 %v1260, 127
        %v1266 = vpop.permute.xlu0 %1265
        %1267 = vrot.lane.b32.xlu0 %v1262, 127
        %v1268 = vpop.permute.xlu0 %1267
        %1269 = vrot.lane.b32.xlu0 %v1264, 127
        %v1270 = vpop.permute.xlu0 %1269
        %1271 = vrot.lane.b32.xlu0 %v1263, 127
        %v1272 = vpop.permute.xlu0 %1271
        %v1277 = vadd.f32 %v1244, %v1266
        %v1278 = vadd.f32 %v1245, %v1268
        %v1279 = vadd.f32 %v1246, %v1270
        %v1280 = vadd.f32 %v1247, %v1272
        %s1281 = sld [smem:[#allocation8 + $0x3]]
        %v1282 = vstv %s1281
        %v1283 = vadd.f32 %v1277, %v1282
        %v1284 = vadd.f32 %v1278, %v1282
        %v1285 = vadd.f32 %v1279, %v1282
        %v1286 = vadd.f32 %v1280, %v1282
        %v1287 = vmax.f32 %v1283, 0.0
        %v1288 = vmax.f32 %v1284, 0.0
        %v1289 = vmax.f32 %v1285, 0.0
        %v1290 = vmax.f32 %v1286, 0.0
        %s1291 = sld [smem:[#allocation5 + $0x200]]
        %v1292 = vstv %s1291
        %v1293 = vmul.f32 %v1292, %v886
        %v1294 = vmul.f32 %v1292, %v887
        %v1295 = vmul.f32 %v1292, %v888
        %v1296 = vmul.f32 %v1292, %v889
        %s1297 = sld [smem:[#allocation5 + $0x201]]
        %v1298 = vstv %s1297
        %v1299 = vmul.f32 %v1298, %v886
        %v1300 = vmul.f32 %v1298, %v887
        %v1301 = vmul.f32 %v1298, %v888
        %v1302 = vmul.f32 %v1298, %v889
        %1307 = vrot.lane.b32.xlu0 %v1299, 127
        %v1308 = vpop.permute.xlu0 %1307
        %1309 = vrot.lane.b32.xlu0 %v1300, 127
        %v1310 = vpop.permute.xlu0 %1309
        %1311 = vrot.lane.b32.xlu0 %v1301, 127
        %v1312 = vpop.permute.xlu0 %1311
        %1313 = vrot.lane.b32.xlu0 %v1302, 127
        %v1314 = vpop.permute.xlu0 %1313
        %v1319 = vadd.f32 %v1293, %v1308
        %v1320 = vadd.f32 %v1294, %v1310
        %v1321 = vadd.f32 %v1295, %v1312
        %v1322 = vadd.f32 %v1296, %v1314
        %s1323 = sld [smem:[#allocation5 + $0x202]]
        %v1324 = vstv %s1323
        %v1325 = vmul.f32 %v1324, %v886
        %v1326 = vmul.f32 %v1324, %v887
        %v1327 = vmul.f32 %v1324, %v888
        %v1328 = vmul.f32 %v1324, %v889
        %v1333 = vrot.slane %v1325, 1
        %v1334 = vrot.slane %v1326, 1
        %v1335 = vsel %vm932, %v1333, %v1334
        %v1336 = vrot.slane %v1327, 1
        %v1337 = vsel %vm932, %v1334, %v1336
        %v1338 = vrot.slane %v1328, 1
        %v1339 = vsel %vm932, %v1336, %v1338
        %v1344 = vadd.f32 %v1319, %v1335
        %v1345 = vadd.f32 %v1320, %v1337
        %v1346 = vadd.f32 %v1321, %v1339
        %v1347 = vadd.f32 %v1322, %v1338
        %s1348 = sld [smem:[#allocation5 + $0x203]]
        %v1349 = vstv %s1348
        %v1350 = vmul.f32 %v1349, %v886
        %v1351 = vmul.f32 %v1349, %v887
        %v1352 = vmul.f32 %v1349, %v888
        %v1353 = vmul.f32 %v1349, %v889
        %v1358 = vrot.slane %v1350, 1
        %v1359 = vrot.slane %v1351, 1
        %v1360 = vsel %vm932, %v1358, %v1359
        %v1361 = vrot.slane %v1352, 1
        %v1362 = vsel %vm932, %v1359, %v1361
        %v1363 = vrot.slane %v1353, 1
        %v1364 = vsel %vm932, %v1361, %v1363
        %1365 = vrot.lane.b32.xlu0 %v1360, 127
        %v1366 = vpop.permute.xlu0 %1365
        %1367 = vrot.lane.b32.xlu0 %v1362, 127
        %v1368 = vpop.permute.xlu0 %1367
        %1369 = vrot.lane.b32.xlu0 %v1364, 127
        %v1370 = vpop.permute.xlu0 %1369
        %1371 = vrot.lane.b32.xlu0 %v1363, 127
        %v1372 = vpop.permute.xlu0 %1371
        %v1377 = vadd.f32 %v1344, %v1366
        %v1378 = vadd.f32 %v1345, %v1368
        %v1379 = vadd.f32 %v1346, %v1370
        %v1380 = vadd.f32 %v1347, %v1372
        %s1381 = sld [smem:[#allocation8 + $0x4]]
        %v1382 = vstv %s1381
        %v1383 = vadd.f32 %v1377, %v1382
        %v1384 = vadd.f32 %v1378, %v1382
        %v1385 = vadd.f32 %v1379, %v1382
        %v1386 = vadd.f32 %v1380, %v1382
        %v1387 = vmax.f32 %v1383, 0.0
        %v1388 = vmax.f32 %v1384, 0.0
        %v1389 = vmax.f32 %v1385, 0.0
        %v1390 = vmax.f32 %v1386, 0.0
        %s1391 = sld [smem:[#allocation5 + $0x280]]
        %v1392 = vstv %s1391
        %v1393 = vmul.f32 %v1392, %v886
        %v1394 = vmul.f32 %v1392, %v887
        %v1395 = vmul.f32 %v1392, %v888
        %v1396 = vmul.f32 %v1392, %v889
        %s1397 = sld [smem:[#allocation5 + $0x281]]
        %v1398 = vstv %s1397
        %v1399 = vmul.f32 %v1398, %v886
        %v1400 = vmul.f32 %v1398, %v887
        %v1401 = vmul.f32 %v1398, %v888
        %v1402 = vmul.f32 %v1398, %v889
        %1407 = vrot.lane.b32.xlu0 %v1399, 127
        %v1408 = vpop.permute.xlu0 %1407
        %1409 = vrot.lane.b32.xlu0 %v1400, 127
        %v1410 = vpop.permute.xlu0 %1409
        %1411 = vrot.lane.b32.xlu0 %v1401, 127
        %v1412 = vpop.permute.xlu0 %1411
        %1413 = vrot.lane.b32.xlu0 %v1402, 127
        %v1414 = vpop.permute.xlu0 %1413
        %v1419 = vadd.f32 %v1393, %v1408
        %v1420 = vadd.f32 %v1394, %v1410
        %v1421 = vadd.f32 %v1395, %v1412
        %v1422 = vadd.f32 %v1396, %v1414
        %s1423 = sld [smem:[#allocation5 + $0x282]]
        %v1424 = vstv %s1423
        %v1425 = vmul.f32 %v1424, %v886
        %v1426 = vmul.f32 %v1424, %v887
        %v1427 = vmul.f32 %v1424, %v888
        %v1428 = vmul.f32 %v1424, %v889
        %v1433 = vrot.slane %v1425, 1
        %v1434 = vrot.slane %v1426, 1
        %v1435 = vsel %vm932, %v1433, %v1434
        %v1436 = vrot.slane %v1427, 1
        %v1437 = vsel %vm932, %v1434, %v1436
        %v1438 = vrot.slane %v1428, 1
        %v1439 = vsel %vm932, %v1436, %v1438
        %v1444 = vadd.f32 %v1419, %v1435
        %v1445 = vadd.f32 %v1420, %v1437
        %v1446 = vadd.f32 %v1421, %v1439
        %v1447 = vadd.f32 %v1422, %v1438
        %s1448 = sld [smem:[#allocation5 + $0x283]]
        %v1449 = vstv %s1448
        %v1450 = vmul.f32 %v1449, %v886
        %v1451 = vmul.f32 %v1449, %v887
        %v1452 = vmul.f32 %v1449, %v888
        %v1453 = vmul.f32 %v1449, %v889
        %v1458 = vrot.slane %v1450, 1
        %v1459 = vrot.slane %v1451, 1
        %v1460 = vsel %vm932, %v1458, %v1459
        %v1461 = vrot.slane %v1452, 1
        %v1462 = vsel %vm932, %v1459, %v1461
        %v1463 = vrot.slane %v1453, 1
        %v1464 = vsel %vm932, %v1461, %v1463
        %1465 = vrot.lane.b32.xlu0 %v1460, 127
        %v1466 = vpop.permute.xlu0 %1465
        %1467 = vrot.lane.b32.xlu0 %v1462, 127
        %v1468 = vpop.permute.xlu0 %1467
        %1469 = vrot.lane.b32.xlu0 %v1464, 127
        %v1470 = vpop.permute.xlu0 %1469
        %1471 = vrot.lane.b32.xlu0 %v1463, 127
        %v1472 = vpop.permute.xlu0 %1471
        %v1477 = vadd.f32 %v1444, %v1466
        %v1478 = vadd.f32 %v1445, %v1468
        %v1479 = vadd.f32 %v1446, %v1470
        %v1480 = vadd.f32 %v1447, %v1472
        %s1481 = sld [smem:[#allocation8 + $0x5]]
        %v1482 = vstv %s1481
        %v1483 = vadd.f32 %v1477, %v1482
        %v1484 = vadd.f32 %v1478, %v1482
        %v1485 = vadd.f32 %v1479, %v1482
        %v1486 = vadd.f32 %v1480, %v1482
        %v1487 = vmax.f32 %v1483, 0.0
        %v1488 = vmax.f32 %v1484, 0.0
        %v1489 = vmax.f32 %v1485, 0.0
        %v1490 = vmax.f32 %v1486, 0.0
        %s1491 = sld [smem:[#allocation10]]
        %v1492 = vstv %s1491
        %v1493 = vmul.f32 %v1492, %v987
        %v1494 = vmul.f32 %v1492, %v988
        %v1495 = vmul.f32 %v1492, %v989
        %v1496 = vmul.f32 %v1492, %v990
        %s1497 = sld [smem:[#allocation10 + $0x1]]
        %v1498 = vstv %s1497
        %v1499 = vmul.f32 %v1498, %v1087
        %v1500 = vmul.f32 %v1498, %v1088
        %v1501 = vmul.f32 %v1498, %v1089
        %v1502 = vmul.f32 %v1498, %v1090
        %v1503 = vadd.f32 %v1493, %v1499
        %v1504 = vadd.f32 %v1494, %v1500
        %v1505 = vadd.f32 %v1495, %v1501
        %v1506 = vadd.f32 %v1496, %v1502
        %s1507 = sld [smem:[#allocation10 + $0x2]]
        %v1508 = vstv %s1507
        %v1509 = vmul.f32 %v1508, %v1187
        %v1510 = vmul.f32 %v1508, %v1188
        %v1511 = vmul.f32 %v1508, %v1189
        %v1512 = vmul.f32 %v1508, %v1190
        %v1513 = vadd.f32 %v1503, %v1509
        %v1514 = vadd.f32 %v1504, %v1510
        %v1515 = vadd.f32 %v1505, %v1511
        %v1516 = vadd.f32 %v1506, %v1512
        %s1517 = sld [smem:[#allocation10 + $0x3]]
        %v1518 = vstv %s1517
        %v1519 = vmul.f32 %v1518, %v1287
        %v1520 = vmul.f32 %v1518, %v1288
        %v1521 = vmul.f32 %v1518, %v1289
        %v1522 = vmul.f32 %v1518, %v1290
        %v1523 = vadd.f32 %v1513, %v1519
        %v1524 = vadd.f32 %v1514, %v1520
        %v1525 = vadd.f32 %v1515, %v1521
        %v1526 = vadd.f32 %v1516, %v1522
        %s1527 = sld [smem:[#allocation10 + $0x4]]
        %v1528 = vstv %s1527
        %v1529 = vmul.f32 %v1528, %v1387
        %v1530 = vmul.f32 %v1528, %v1388
        %v1531 = vmul.f32 %v1528, %v1389
        %v1532 = vmul.f32 %v1528, %v1390
        %v1533 = vadd.f32 %v1523, %v1529
        %v1534 = vadd.f32 %v1524, %v1530
        %v1535 = vadd.f32 %v1525, %v1531
        %v1536 = vadd.f32 %v1526, %v1532
        %s1537 = sld [smem:[#allocation10 + $0x5]]
        %v1538 = vstv %s1537
        %v1539 = vmul.f32 %v1538, %v1487
        %v1540 = vmul.f32 %v1538, %v1488
        %v1541 = vmul.f32 %v1538, %v1489
        %v1542 = vmul.f32 %v1538, %v1490
        %v1543 = vadd.f32 %v1533, %v1539
        %v1544 = vadd.f32 %v1534, %v1540
        %v1545 = vadd.f32 %v1535, %v1541
        %v1546 = vadd.f32 %v1536, %v1542
        %s1547 = sld [smem:[#allocation11]]
        %v1548 = vstv %s1547
        %v1549 = vadd.f32 %v1543, %v1548
        %v1550 = vadd.f32 %v1544, %v1548
        %v1551 = vadd.f32 %v1545, %v1548
        %v1552 = vadd.f32 %v1546, %v1548
        %s1553 = sld [smem:[#allocation10 + $0x80]]
        %v1554 = vstv %s1553
        %v1555 = vmul.f32 %v1554, %v987
        %v1556 = vmul.f32 %v1554, %v988
        %v1557 = vmul.f32 %v1554, %v989
        %v1558 = vmul.f32 %v1554, %v990
        %s1559 = sld [smem:[#allocation10 + $0x81]]
        %v1560 = vstv %s1559
        %v1561 = vmul.f32 %v1560, %v1087
        %v1562 = vmul.f32 %v1560, %v1088
        %v1563 = vmul.f32 %v1560, %v1089
        %v1564 = vmul.f32 %v1560, %v1090
        %v1565 = vadd.f32 %v1555, %v1561
        %v1566 = vadd.f32 %v1556, %v1562
        %v1567 = vadd.f32 %v1557, %v1563
        %v1568 = vadd.f32 %v1558, %v1564
        %s1569 = sld [smem:[#allocation10 + $0x82]]
        %v1570 = vstv %s1569
        %v1571 = vmul.f32 %v1570, %v1187
        %v1572 = vmul.f32 %v1570, %v1188
        %v1573 = vmul.f32 %v1570, %v1189
        %v1574 = vmul.f32 %v1570, %v1190
        %v1575 = vadd.f32 %v1565, %v1571
        %v1576 = vadd.f32 %v1566, %v1572
        %v1577 = vadd.f32 %v1567, %v1573
        %v1578 = vadd.f32 %v1568, %v1574
        %s1579 = sld [smem:[#allocation10 + $0x83]]
        %v1580 = vstv %s1579
        %v1581 = vmul.f32 %v1580, %v1287
        %v1582 = vmul.f32 %v1580, %v1288
        %v1583 = vmul.f32 %v1580, %v1289
        %v1584 = vmul.f32 %v1580, %v1290
        %v1585 = vadd.f32 %v1575, %v1581
        %v1586 = vadd.f32 %v1576, %v1582
        %v1587 = vadd.f32 %v1577, %v1583
        %v1588 = vadd.f32 %v1578, %v1584
        %s1589 = sld [smem:[#allocation10 + $0x84]]
        %v1590 = vstv %s1589
        %v1591 = vmul.f32 %v1590, %v1387
        %v1592 = vmul.f32 %v1590, %v1388
        %v1593 = vmul.f32 %v1590, %v1389
        %v1594 = vmul.f32 %v1590, %v1390
        %v1595 = vadd.f32 %v1585, %v1591
        %v1596 = vadd.f32 %v1586, %v1592
        %v1597 = vadd.f32 %v1587, %v1593
        %v1598 = vadd.f32 %v1588, %v1594
        %s1599 = sld [smem:[#allocation10 + $0x85]]
        %v1600 = vstv %s1599
        %v1601 = vmul.f32 %v1600, %v1487
        %v1602 = vmul.f32 %v1600, %v1488
        %v1603 = vmul.f32 %v1600, %v1489
        %v1604 = vmul.f32 %v1600, %v1490
        %v1605 = vadd.f32 %v1595, %v1601
        %v1606 = vadd.f32 %v1596, %v1602
        %v1607 = vadd.f32 %v1597, %v1603
        %v1608 = vadd.f32 %v1598, %v1604
        %s1609 = sld [smem:[#allocation11 + $0x1]]
        %v1610 = vstv %s1609
        %v1611 = vadd.f32 %v1605, %v1610
        %v1612 = vadd.f32 %v1606, %v1610
        %v1613 = vadd.f32 %v1607, %v1610
        %v1614 = vadd.f32 %v1608, %v1610
        %s1615 = sld [smem:[#allocation10 + $0x100]]
        %v1616 = vstv %s1615
        %v1617 = vmul.f32 %v1616, %v987
        %v1618 = vmul.f32 %v1616, %v988
        %v1619 = vmul.f32 %v1616, %v989
        %v1620 = vmul.f32 %v1616, %v990
        %s1621 = sld [smem:[#allocation10 + $0x101]]
        %v1622 = vstv %s1621
        %v1623 = vmul.f32 %v1622, %v1087
        %v1624 = vmul.f32 %v1622, %v1088
        %v1625 = vmul.f32 %v1622, %v1089
        %v1626 = vmul.f32 %v1622, %v1090
        %v1627 = vadd.f32 %v1617, %v1623
        %v1628 = vadd.f32 %v1618, %v1624
        %v1629 = vadd.f32 %v1619, %v1625
        %v1630 = vadd.f32 %v1620, %v1626
        %s1631 = sld [smem:[#allocation10 + $0x102]]
        %v1632 = vstv %s1631
        %v1633 = vmul.f32 %v1632, %v1187
        %v1634 = vmul.f32 %v1632, %v1188
        %v1635 = vmul.f32 %v1632, %v1189
        %v1636 = vmul.f32 %v1632, %v1190
        %v1637 = vadd.f32 %v1627, %v1633
        %v1638 = vadd.f32 %v1628, %v1634
        %v1639 = vadd.f32 %v1629, %v1635
        %v1640 = vadd.f32 %v1630, %v1636
        %s1641 = sld [smem:[#allocation10 + $0x103]]
        %v1642 = vstv %s1641
        %v1643 = vmul.f32 %v1642, %v1287
        %v1644 = vmul.f32 %v1642, %v1288
        %v1645 = vmul.f32 %v1642, %v1289
        %v1646 = vmul.f32 %v1642, %v1290
        %v1647 = vadd.f32 %v1637, %v1643
        %v1648 = vadd.f32 %v1638, %v1644
        %v1649 = vadd.f32 %v1639, %v1645
        %v1650 = vadd.f32 %v1640, %v1646
        %s1651 = sld [smem:[#allocation10 + $0x104]]
        %v1652 = vstv %s1651
        %v1653 = vmul.f32 %v1652, %v1387
        %v1654 = vmul.f32 %v1652, %v1388
        %v1655 = vmul.f32 %v1652, %v1389
        %v1656 = vmul.f32 %v1652, %v1390
        %v1657 = vadd.f32 %v1647, %v1653
        %v1658 = vadd.f32 %v1648, %v1654
        %v1659 = vadd.f32 %v1649, %v1655
        %v1660 = vadd.f32 %v1650, %v1656
        %s1661 = sld [smem:[#allocation10 + $0x105]]
        %v1662 = vstv %s1661
        %v1663 = vmul.f32 %v1662, %v1487
        %v1664 = vmul.f32 %v1662, %v1488
        %v1665 = vmul.f32 %v1662, %v1489
        %v1666 = vmul.f32 %v1662, %v1490
        %v1667 = vadd.f32 %v1657, %v1663
        %v1668 = vadd.f32 %v1658, %v1664
        %v1669 = vadd.f32 %v1659, %v1665
        %v1670 = vadd.f32 %v1660, %v1666
        %s1671 = sld [smem:[#allocation11 + $0x2]]
        %v1672 = vstv %s1671
        %v1673 = vadd.f32 %v1667, %v1672
        %v1674 = vadd.f32 %v1668, %v1672
        %v1675 = vadd.f32 %v1669, %v1672
        %v1676 = vadd.f32 %v1670, %v1672
        %s1677 = sld [smem:[#allocation10 + $0x180]]
        %v1678 = vstv %s1677
        %v1679 = vmul.f32 %v1678, %v987
        %v1680 = vmul.f32 %v1678, %v988
        %v1681 = vmul.f32 %v1678, %v989
        %v1682 = vmul.f32 %v1678, %v990
        %s1683 = sld [smem:[#allocation10 + $0x181]]
        %v1684 = vstv %s1683
        %v1685 = vmul.f32 %v1684, %v1087
        %v1686 = vmul.f32 %v1684, %v1088
        %v1687 = vmul.f32 %v1684, %v1089
        %v1688 = vmul.f32 %v1684, %v1090
        %v1689 = vadd.f32 %v1679, %v1685
        %v1690 = vadd.f32 %v1680, %v1686
        %v1691 = vadd.f32 %v1681, %v1687
        %v1692 = vadd.f32 %v1682, %v1688
        %s1693 = sld [smem:[#allocation10 + $0x182]]
        %v1694 = vstv %s1693
        %v1695 = vmul.f32 %v1694, %v1187
        %v1696 = vmul.f32 %v1694, %v1188
        %v1697 = vmul.f32 %v1694, %v1189
        %v1698 = vmul.f32 %v1694, %v1190
        %v1699 = vadd.f32 %v1689, %v1695
        %v1700 = vadd.f32 %v1690, %v1696
        %v1701 = vadd.f32 %v1691, %v1697
        %v1702 = vadd.f32 %v1692, %v1698
        %s1703 = sld [smem:[#allocation10 + $0x183]]
        %v1704 = vstv %s1703
        %v1705 = vmul.f32 %v1704, %v1287
        %v1706 = vmul.f32 %v1704, %v1288
        %v1707 = vmul.f32 %v1704, %v1289
        %v1708 = vmul.f32 %v1704, %v1290
        %v1709 = vadd.f32 %v1699, %v1705
        %v1710 = vadd.f32 %v1700, %v1706
        %v1711 = vadd.f32 %v1701, %v1707
        %v1712 = vadd.f32 %v1702, %v1708
        %s1713 = sld [smem:[#allocation10 + $0x184]]
        %v1714 = vstv %s1713
        %v1715 = vmul.f32 %v1714, %v1387
        %v1716 = vmul.f32 %v1714, %v1388
        %v1717 = vmul.f32 %v1714, %v1389
        %v1718 = vmul.f32 %v1714, %v1390
        %v1719 = vadd.f32 %v1709, %v1715
        %v1720 = vadd.f32 %v1710, %v1716
        %v1721 = vadd.f32 %v1711, %v1717
        %v1722 = vadd.f32 %v1712, %v1718
        %s1723 = sld [smem:[#allocation10 + $0x185]]
        %v1724 = vstv %s1723
        %v1725 = vmul.f32 %v1724, %v1487
        %v1726 = vmul.f32 %v1724, %v1488
        %v1727 = vmul.f32 %v1724, %v1489
        %v1728 = vmul.f32 %v1724, %v1490
        %v1729 = vadd.f32 %v1719, %v1725
        %v1730 = vadd.f32 %v1720, %v1726
        %v1731 = vadd.f32 %v1721, %v1727
        %v1732 = vadd.f32 %v1722, %v1728
        %s1733 = sld [smem:[#allocation11 + $0x3]]
        %v1734 = vstv %s1733
        %v1735 = vadd.f32 %v1729, %v1734
        %v1736 = vadd.f32 %v1730, %v1734
        %v1737 = vadd.f32 %v1731, %v1734
        %v1738 = vadd.f32 %v1732, %v1734
        %s1739 = sld [smem:[#allocation10 + $0x200]]
        %v1740 = vstv %s1739
        %v1741 = vmul.f32 %v1740, %v987
        %v1742 = vmul.f32 %v1740, %v988
        %v1743 = vmul.f32 %v1740, %v989
        %v1744 = vmul.f32 %v1740, %v990
        %s1745 = sld [smem:[#allocation10 + $0x201]]
        %v1746 = vstv %s1745
        %v1747 = vmul.f32 %v1746, %v1087
        %v1748 = vmul.f32 %v1746, %v1088
        %v1749 = vmul.f32 %v1746, %v1089
        %v1750 = vmul.f32 %v1746, %v1090
        %v1751 = vadd.f32 %v1741, %v1747
        %v1752 = vadd.f32 %v1742, %v1748
        %v1753 = vadd.f32 %v1743, %v1749
        %v1754 = vadd.f32 %v1744, %v1750
        %s1755 = sld [smem:[#allocation10 + $0x202]]
        %v1756 = vstv %s1755
        %v1757 = vmul.f32 %v1756, %v1187
        %v1758 = vmul.f32 %v1756, %v1188
        %v1759 = vmul.f32 %v1756, %v1189
        %v1760 = vmul.f32 %v1756, %v1190
        %v1761 = vadd.f32 %v1751, %v1757
        %v1762 = vadd.f32 %v1752, %v1758
        %v1763 = vadd.f32 %v1753, %v1759
        %v1764 = vadd.f32 %v1754, %v1760
        %s1765 = sld [smem:[#allocation10 + $0x203]]
        %v1766 = vstv %s1765
        %v1767 = vmul.f32 %v1766, %v1287
        %v1768 = vmul.f32 %v1766, %v1288
        %v1769 = vmul.f32 %v1766, %v1289
        %v1770 = vmul.f32 %v1766, %v1290
        %v1771 = vadd.f32 %v1761, %v1767
        %v1772 = vadd.f32 %v1762, %v1768
        %v1773 = vadd.f32 %v1763, %v1769
        %v1774 = vadd.f32 %v1764, %v1770
        %s1775 = sld [smem:[#allocation10 + $0x204]]
        %v1776 = vstv %s1775
        %v1777 = vmul.f32 %v1776, %v1387
        %v1778 = vmul.f32 %v1776, %v1388
        %v1779 = vmul.f32 %v1776, %v1389
        %v1780 = vmul.f32 %v1776, %v1390
        %v1781 = vadd.f32 %v1771, %v1777
        %v1782 = vadd.f32 %v1772, %v1778
        %v1783 = vadd.f32 %v1773, %v1779
        %v1784 = vadd.f32 %v1774, %v1780
        %s1785 = sld [smem:[#allocation10 + $0x205]]
        %v1786 = vstv %s1785
        %v1787 = vmul.f32 %v1786, %v1487
        %v1788 = vmul.f32 %v1786, %v1488
        %v1789 = vmul.f32 %v1786, %v1489
        %v1790 = vmul.f32 %v1786, %v1490
        %v1791 = vadd.f32 %v1781, %v1787
        %v1792 = vadd.f32 %v1782, %v1788
        %v1793 = vadd.f32 %v1783, %v1789
        %v1794 = vadd.f32 %v1784, %v1790
        %s1795 = sld [smem:[#allocation11 + $0x4]]
        %v1796 = vstv %s1795
        %v1797 = vadd.f32 %v1791, %v1796
        %v1798 = vadd.f32 %v1792, %v1796
        %v1799 = vadd.f32 %v1793, %v1796
        %v1800 = vadd.f32 %v1794, %v1796
        %s1801 = sld [smem:[#allocation10 + $0x280]]
        %v1802 = vstv %s1801
        %v1803 = vmul.f32 %v1802, %v987
        %v1804 = vmul.f32 %v1802, %v988
        %v1805 = vmul.f32 %v1802, %v989
        %v1806 = vmul.f32 %v1802, %v990
        %s1807 = sld [smem:[#allocation10 + $0x281]]
        %v1808 = vstv %s1807
        %v1809 = vmul.f32 %v1808, %v1087
        %v1810 = vmul.f32 %v1808, %v1088
        %v1811 = vmul.f32 %v1808, %v1089
        %v1812 = vmul.f32 %v1808, %v1090
        %v1813 = vadd.f32 %v1803, %v1809
        %v1814 = vadd.f32 %v1804, %v1810
        %v1815 = vadd.f32 %v1805, %v1811
        %v1816 = vadd.f32 %v1806, %v1812
        %s1817 = sld [smem:[#allocation10 + $0x282]]
        %v1818 = vstv %s1817
        %v1819 = vmul.f32 %v1818, %v1187
        %v1820 = vmul.f32 %v1818, %v1188
        %v1821 = vmul.f32 %v1818, %v1189
        %v1822 = vmul.f32 %v1818, %v1190
        %v1823 = vadd.f32 %v1813, %v1819
        %v1824 = vadd.f32 %v1814, %v1820
        %v1825 = vadd.f32 %v1815, %v1821
        %v1826 = vadd.f32 %v1816, %v1822
        %s1827 = sld [smem:[#allocation10 + $0x283]]
        %v1828 = vstv %s1827
        %v1829 = vmul.f32 %v1828, %v1287
        %v1830 = vmul.f32 %v1828, %v1288
        %v1831 = vmul.f32 %v1828, %v1289
        %v1832 = vmul.f32 %v1828, %v1290
        %v1833 = vadd.f32 %v1823, %v1829
        %v1834 = vadd.f32 %v1824, %v1830
        %v1835 = vadd.f32 %v1825, %v1831
        %v1836 = vadd.f32 %v1826, %v1832
        %s1837 = sld [smem:[#allocation10 + $0x284]]
        %v1838 = vstv %s1837
        %v1839 = vmul.f32 %v1838, %v1387
        %v1840 = vmul.f32 %v1838, %v1388
        %v1841 = vmul.f32 %v1838, %v1389
        %v1842 = vmul.f32 %v1838, %v1390
        %v1843 = vadd.f32 %v1833, %v1839
        %v1844 = vadd.f32 %v1834, %v1840
        %v1845 = vadd.f32 %v1835, %v1841
        %v1846 = vadd.f32 %v1836, %v1842
        %s1847 = sld [smem:[#allocation10 + $0x285]]
        %v1848 = vstv %s1847
        %v1849 = vmul.f32 %v1848, %v1487
        %v1850 = vmul.f32 %v1848, %v1488
        %v1851 = vmul.f32 %v1848, %v1489
        %v1852 = vmul.f32 %v1848, %v1490
        %v1853 = vadd.f32 %v1843, %v1849
        %v1854 = vadd.f32 %v1844, %v1850
        %v1855 = vadd.f32 %v1845, %v1851
        %v1856 = vadd.f32 %v1846, %v1852
        %s1857 = sld [smem:[#allocation11 + $0x5]]
        %v1858 = vstv %s1857
        %v1859 = vadd.f32 %v1853, %v1858
        %v1860 = vadd.f32 %v1854, %v1858
        %v1861 = vadd.f32 %v1855, %v1858
        %v1862 = vadd.f32 %v1856, %v1858
        %v1863 = vmax.f32 %v1549, 0.0
        %v1864 = vmax.f32 %v1550, 0.0
        %v1865 = vmax.f32 %v1551, 0.0
        %v1866 = vmax.f32 %v1552, 0.0
        %v1867 = vadd.f32 %v1863, %v987
        %v1868 = vadd.f32 %v1864, %v988
        %v1869 = vadd.f32 %v1865, %v989
        %v1870 = vadd.f32 %v1866, %v990
        %v1871 = vmax.f32 %v1611, 0.0
        %v1872 = vmax.f32 %v1612, 0.0
        %v1873 = vmax.f32 %v1613, 0.0
        %v1874 = vmax.f32 %v1614, 0.0
        %v1875 = vadd.f32 %v1871, %v1087
        %v1876 = vadd.f32 %v1872, %v1088
        %v1877 = vadd.f32 %v1873, %v1089
        %v1878 = vadd.f32 %v1874, %v1090
        %v1879 = vmax.f32 %v1673, 0.0
        %v1880 = vmax.f32 %v1674, 0.0
        %v1881 = vmax.f32 %v1675, 0.0
        %v1882 = vmax.f32 %v1676, 0.0
        %v1883 = vadd.f32 %v1879, %v1187
        %v1884 = vadd.f32 %v1880, %v1188
        %v1885 = vadd.f32 %v1881, %v1189
        %v1886 = vadd.f32 %v1882, %v1190
        %v1887 = vmax.f32 %v1735, 0.0
        %v1888 = vmax.f32 %v1736, 0.0
        %v1889 = vmax.f32 %v1737, 0.0
        %v1890 = vmax.f32 %v1738, 0.0
        %v1891 = vadd.f32 %v1887, %v1287
        %v1892 = vadd.f32 %v1888, %v1288
        %v1893 = vadd.f32 %v1889, %v1289
        %v1894 = vadd.f32 %v1890, %v1290
        %v1895 = vmax.f32 %v1797, 0.0
        %v1896 = vmax.f32 %v1798, 0.0
        %v1897 = vmax.f32 %v1799, 0.0
        %v1898 = vmax.f32 %v1800, 0.0
        %v1899 = vadd.f32 %v1895, %v1387
        %v1900 = vadd.f32 %v1896, %v1388
        %v1901 = vadd.f32 %v1897, %v1389
        %v1902 = vadd.f32 %v1898, %v1390
        %v1903 = vmax.f32 %v1859, 0.0
        %v1904 = vmax.f32 %v1860, 0.0
        %v1905 = vmax.f32 %v1861, 0.0
        %v1906 = vmax.f32 %v1862, 0.0
        %v1907 = vadd.f32 %v1903, %v1487
        %v1908 = vadd.f32 %v1904, %v1488
        %v1909 = vadd.f32 %v1905, %v1489
        %v1910 = vadd.f32 %v1906, %v1490
        %s1911 = sld [smem:[#allocation12]]
        %v1912 = vstv %s1911
        %v1913 = vmul.f32 %v1912, %v1867
        %v1914 = vmul.f32 %v1912, %v1868
        %v1915 = vmul.f32 %v1912, %v1869
        %v1916 = vmul.f32 %v1912, %v1870
        %s1917 = sld [smem:[#allocation12 + $0x1]]
        %v1918 = vstv %s1917
        %v1919 = vmul.f32 %v1918, %v1875
        %v1920 = vmul.f32 %v1918, %v1876
        %v1921 = vmul.f32 %v1918, %v1877
        %v1922 = vmul.f32 %v1918, %v1878
        %v1923 = vadd.f32 %v1913, %v1919
        %v1924 = vadd.f32 %v1914, %v1920
        %v1925 = vadd.f32 %v1915, %v1921
        %v1926 = vadd.f32 %v1916, %v1922
        %s1927 = sld [smem:[#allocation12 + $0x2]]
        %v1928 = vstv %s1927
        %v1929 = vmul.f32 %v1928, %v1883
        %v1930 = vmul.f32 %v1928, %v1884
        %v1931 = vmul.f32 %v1928, %v1885
        %v1932 = vmul.f32 %v1928, %v1886
        %v1933 = vadd.f32 %v1923, %v1929
        %v1934 = vadd.f32 %v1924, %v1930
        %v1935 = vadd.f32 %v1925, %v1931
        %v1936 = vadd.f32 %v1926, %v1932
        %s1937 = sld [smem:[#allocation12 + $0x3]]
        %v1938 = vstv %s1937
        %v1939 = vmul.f32 %v1938, %v1891
        %v1940 = vmul.f32 %v1938, %v1892
        %v1941 = vmul.f32 %v1938, %v1893
        %v1942 = vmul.f32 %v1938, %v1894
        %v1943 = vadd.f32 %v1933, %v1939
        %v1944 = vadd.f32 %v1934, %v1940
        %v1945 = vadd.f32 %v1935, %v1941
        %v1946 = vadd.f32 %v1936, %v1942
        %s1947 = sld [smem:[#allocation12 + $0x4]]
        %v1948 = vstv %s1947
        %v1949 = vmul.f32 %v1948, %v1899
        %v1950 = vmul.f32 %v1948, %v1900
        %v1951 = vmul.f32 %v1948, %v1901
        %v1952 = vmul.f32 %v1948, %v1902
        %v1953 = vadd.f32 %v1943, %v1949
        %v1954 = vadd.f32 %v1944, %v1950
        %v1955 = vadd.f32 %v1945, %v1951
        %v1956 = vadd.f32 %v1946, %v1952
        %s1957 = sld [smem:[#allocation12 + $0x5]]
        %v1958 = vstv %s1957
        %v1959 = vmul.f32 %v1958, %v1907
        %v1960 = vmul.f32 %v1958, %v1908
        %v1961 = vmul.f32 %v1958, %v1909
        %v1962 = vmul.f32 %v1958, %v1910
        %v1963 = vadd.f32 %v1953, %v1959
        %v1964 = vadd.f32 %v1954, %v1960
        %v1965 = vadd.f32 %v1955, %v1961
        %v1966 = vadd.f32 %v1956, %v1962
        %s1967 = sld [smem:[#allocation14]]
        %v1968 = vstv %s1967
        %v1969 = vadd.f32 %v1963, %v1968
        %v1970 = vadd.f32 %v1964, %v1968
        %v1971 = vadd.f32 %v1965, %v1968
        %v1972 = vadd.f32 %v1966, %v1968
        %s1973 = sld [smem:[#allocation12 + $0x80]]
        %v1974 = vstv %s1973
        %v1975 = vmul.f32 %v1974, %v1867
        %v1976 = vmul.f32 %v1974, %v1868
        %v1977 = vmul.f32 %v1974, %v1869
        %v1978 = vmul.f32 %v1974, %v1870
        %s1979 = sld [smem:[#allocation12 + $0x81]]
        %v1980 = vstv %s1979
        %v1981 = vmul.f32 %v1980, %v1875
        %v1982 = vmul.f32 %v1980, %v1876
        %v1983 = vmul.f32 %v1980, %v1877
        %v1984 = vmul.f32 %v1980, %v1878
        %v1985 = vadd.f32 %v1975, %v1981
        %v1986 = vadd.f32 %v1976, %v1982
        %v1987 = vadd.f32 %v1977, %v1983
        %v1988 = vadd.f32 %v1978, %v1984
        %s1989 = sld [smem:[#allocation12 + $0x82]]
        %v1990 = vstv %s1989
        %v1991 = vmul.f32 %v1990, %v1883
        %v1992 = vmul.f32 %v1990, %v1884
        %v1993 = vmul.f32 %v1990, %v1885
        %v1994 = vmul.f32 %v1990, %v1886
        %v1995 = vadd.f32 %v1985, %v1991
        %v1996 = vadd.f32 %v1986, %v1992
        %v1997 = vadd.f32 %v1987, %v1993
        %v1998 = vadd.f32 %v1988, %v1994
        %s1999 = sld [smem:[#allocation12 + $0x83]]
        %v2000 = vstv %s1999
        %v2001 = vmul.f32 %v2000, %v1891
        %v2002 = vmul.f32 %v2000, %v1892
        %v2003 = vmul.f32 %v2000, %v1893
        %v2004 = vmul.f32 %v2000, %v1894
        %v2005 = vadd.f32 %v1995, %v2001
        %v2006 = vadd.f32 %v1996, %v2002
        %v2007 = vadd.f32 %v1997, %v2003
        %v2008 = vadd.f32 %v1998, %v2004
        %s2009 = sld [smem:[#allocation12 + $0x84]]
        %v2010 = vstv %s2009
        %v2011 = vmul.f32 %v2010, %v1899
        %v2012 = vmul.f32 %v2010, %v1900
        %v2013 = vmul.f32 %v2010, %v1901
        %v2014 = vmul.f32 %v2010, %v1902
        %v2015 = vadd.f32 %v2005, %v2011
        %v2016 = vadd.f32 %v2006, %v2012
        %v2017 = vadd.f32 %v2007, %v2013
        %v2018 = vadd.f32 %v2008, %v2014
        %s2019 = sld [smem:[#allocation12 + $0x85]]
        %v2020 = vstv %s2019
        %v2021 = vmul.f32 %v2020, %v1907
        %v2022 = vmul.f32 %v2020, %v1908
        %v2023 = vmul.f32 %v2020, %v1909
        %v2024 = vmul.f32 %v2020, %v1910
        %v2025 = vadd.f32 %v2015, %v2021
        %v2026 = vadd.f32 %v2016, %v2022
        %v2027 = vadd.f32 %v2017, %v2023
        %v2028 = vadd.f32 %v2018, %v2024
        %s2029 = sld [smem:[#allocation14 + $0x1]]
        %v2030 = vstv %s2029
        %v2031 = vadd.f32 %v2025, %v2030
        %v2032 = vadd.f32 %v2026, %v2030
        %v2033 = vadd.f32 %v2027, %v2030
        %v2034 = vadd.f32 %v2028, %v2030
        %s2035 = sld [smem:[#allocation12 + $0x100]]
        %v2036 = vstv %s2035
        %v2037 = vmul.f32 %v2036, %v1867
        %v2038 = vmul.f32 %v2036, %v1868
        %v2039 = vmul.f32 %v2036, %v1869
        %v2040 = vmul.f32 %v2036, %v1870
        %s2041 = sld [smem:[#allocation12 + $0x101]]
        %v2042 = vstv %s2041
        %v2043 = vmul.f32 %v2042, %v1875
        %v2044 = vmul.f32 %v2042, %v1876
        %v2045 = vmul.f32 %v2042, %v1877
        %v2046 = vmul.f32 %v2042, %v1878
        %v2047 = vadd.f32 %v2037, %v2043
        %v2048 = vadd.f32 %v2038, %v2044
        %v2049 = vadd.f32 %v2039, %v2045
        %v2050 = vadd.f32 %v2040, %v2046
        %s2051 = sld [smem:[#allocation12 + $0x102]]
        %v2052 = vstv %s2051
        %v2053 = vmul.f32 %v2052, %v1883
        %v2054 = vmul.f32 %v2052, %v1884
        %v2055 = vmul.f32 %v2052, %v1885
        %v2056 = vmul.f32 %v2052, %v1886
        %v2057 = vadd.f32 %v2047, %v2053
        %v2058 = vadd.f32 %v2048, %v2054
        %v2059 = vadd.f32 %v2049, %v2055
        %v2060 = vadd.f32 %v2050, %v2056
        %s2061 = sld [smem:[#allocation12 + $0x103]]
        %v2062 = vstv %s2061
        %v2063 = vmul.f32 %v2062, %v1891
        %v2064 = vmul.f32 %v2062, %v1892
        %v2065 = vmul.f32 %v2062, %v1893
        %v2066 = vmul.f32 %v2062, %v1894
        %v2067 = vadd.f32 %v2057, %v2063
        %v2068 = vadd.f32 %v2058, %v2064
        %v2069 = vadd.f32 %v2059, %v2065
        %v2070 = vadd.f32 %v2060, %v2066
        %s2071 = sld [smem:[#allocation12 + $0x104]]
        %v2072 = vstv %s2071
        %v2073 = vmul.f32 %v2072, %v1899
        %v2074 = vmul.f32 %v2072, %v1900
        %v2075 = vmul.f32 %v2072, %v1901
        %v2076 = vmul.f32 %v2072, %v1902
        %v2077 = vadd.f32 %v2067, %v2073
        %v2078 = vadd.f32 %v2068, %v2074
        %v2079 = vadd.f32 %v2069, %v2075
        %v2080 = vadd.f32 %v2070, %v2076
        %s2081 = sld [smem:[#allocation12 + $0x105]]
        %v2082 = vstv %s2081
        %v2083 = vmul.f32 %v2082, %v1907
        %v2084 = vmul.f32 %v2082, %v1908
        %v2085 = vmul.f32 %v2082, %v1909
        %v2086 = vmul.f32 %v2082, %v1910
        %v2087 = vadd.f32 %v2077, %v2083
        %v2088 = vadd.f32 %v2078, %v2084
        %v2089 = vadd.f32 %v2079, %v2085
        %v2090 = vadd.f32 %v2080, %v2086
        %s2091 = sld [smem:[#allocation14 + $0x2]]
        %v2092 = vstv %s2091
        %v2093 = vadd.f32 %v2087, %v2092
        %v2094 = vadd.f32 %v2088, %v2092
        %v2095 = vadd.f32 %v2089, %v2092
        %v2096 = vadd.f32 %v2090, %v2092
        %s2097 = sld [smem:[#allocation12 + $0x180]]
        %v2098 = vstv %s2097
        %v2099 = vmul.f32 %v2098, %v1867
        %v2100 = vmul.f32 %v2098, %v1868
        %v2101 = vmul.f32 %v2098, %v1869
        %v2102 = vmul.f32 %v2098, %v1870
        %s2103 = sld [smem:[#allocation12 + $0x181]]
        %v2104 = vstv %s2103
        %v2105 = vmul.f32 %v2104, %v1875
        %v2106 = vmul.f32 %v2104, %v1876
        %v2107 = vmul.f32 %v2104, %v1877
        %v2108 = vmul.f32 %v2104, %v1878
        %v2109 = vadd.f32 %v2099, %v2105
        %v2110 = vadd.f32 %v2100, %v2106
        %v2111 = vadd.f32 %v2101, %v2107
        %v2112 = vadd.f32 %v2102, %v2108
        %s2113 = sld [smem:[#allocation12 + $0x182]]
        %v2114 = vstv %s2113
        %v2115 = vmul.f32 %v2114, %v1883
        %v2116 = vmul.f32 %v2114, %v1884
        %v2117 = vmul.f32 %v2114, %v1885
        %v2118 = vmul.f32 %v2114, %v1886
        %v2119 = vadd.f32 %v2109, %v2115
        %v2120 = vadd.f32 %v2110, %v2116
        %v2121 = vadd.f32 %v2111, %v2117
        %v2122 = vadd.f32 %v2112, %v2118
        %s2123 = sld [smem:[#allocation12 + $0x183]]
        %v2124 = vstv %s2123
        %v2125 = vmul.f32 %v2124, %v1891
        %v2126 = vmul.f32 %v2124, %v1892
        %v2127 = vmul.f32 %v2124, %v1893
        %v2128 = vmul.f32 %v2124, %v1894
        %v2129 = vadd.f32 %v2119, %v2125
        %v2130 = vadd.f32 %v2120, %v2126
        %v2131 = vadd.f32 %v2121, %v2127
        %v2132 = vadd.f32 %v2122, %v2128
        %s2133 = sld [smem:[#allocation12 + $0x184]]
        %v2134 = vstv %s2133
        %v2135 = vmul.f32 %v2134, %v1899
        %v2136 = vmul.f32 %v2134, %v1900
        %v2137 = vmul.f32 %v2134, %v1901
        %v2138 = vmul.f32 %v2134, %v1902
        %v2139 = vadd.f32 %v2129, %v2135
        %v2140 = vadd.f32 %v2130, %v2136
        %v2141 = vadd.f32 %v2131, %v2137
        %v2142 = vadd.f32 %v2132, %v2138
        %s2143 = sld [smem:[#allocation12 + $0x185]]
        %v2144 = vstv %s2143
        %v2145 = vmul.f32 %v2144, %v1907
        %v2146 = vmul.f32 %v2144, %v1908
        %v2147 = vmul.f32 %v2144, %v1909
        %v2148 = vmul.f32 %v2144, %v1910
        %v2149 = vadd.f32 %v2139, %v2145
        %v2150 = vadd.f32 %v2140, %v2146
        %v2151 = vadd.f32 %v2141, %v2147
        %v2152 = vadd.f32 %v2142, %v2148
        %s2153 = sld [smem:[#allocation14 + $0x3]]
        %v2154 = vstv %s2153
        %v2155 = vadd.f32 %v2149, %v2154
        %v2156 = vadd.f32 %v2150, %v2154
        %v2157 = vadd.f32 %v2151, %v2154
        %v2158 = vadd.f32 %v2152, %v2154
        %s2159 = sld [smem:[#allocation12 + $0x200]]
        %v2160 = vstv %s2159
        %v2161 = vmul.f32 %v2160, %v1867
        %v2162 = vmul.f32 %v2160, %v1868
        %v2163 = vmul.f32 %v2160, %v1869
        %v2164 = vmul.f32 %v2160, %v1870
        %s2165 = sld [smem:[#allocation12 + $0x201]]
        %v2166 = vstv %s2165
        %v2167 = vmul.f32 %v2166, %v1875
        %v2168 = vmul.f32 %v2166, %v1876
        %v2169 = vmul.f32 %v2166, %v1877
        %v2170 = vmul.f32 %v2166, %v1878
        %v2171 = vadd.f32 %v2161, %v2167
        %v2172 = vadd.f32 %v2162, %v2168
        %v2173 = vadd.f32 %v2163, %v2169
        %v2174 = vadd.f32 %v2164, %v2170
        %s2175 = sld [smem:[#allocation12 + $0x202]]
        %v2176 = vstv %s2175
        %v2177 = vmul.f32 %v2176, %v1883
        %v2178 = vmul.f32 %v2176, %v1884
        %v2179 = vmul.f32 %v2176, %v1885
        %v2180 = vmul.f32 %v2176, %v1886
        %v2181 = vadd.f32 %v2171, %v2177
        %v2182 = vadd.f32 %v2172, %v2178
        %v2183 = vadd.f32 %v2173, %v2179
        %v2184 = vadd.f32 %v2174, %v2180
        %s2185 = sld [smem:[#allocation12 + $0x203]]
        %v2186 = vstv %s2185
        %v2187 = vmul.f32 %v2186, %v1891
        %v2188 = vmul.f32 %v2186, %v1892
        %v2189 = vmul.f32 %v2186, %v1893
        %v2190 = vmul.f32 %v2186, %v1894
        %v2191 = vadd.f32 %v2181, %v2187
        %v2192 = vadd.f32 %v2182, %v2188
        %v2193 = vadd.f32 %v2183, %v2189
        %v2194 = vadd.f32 %v2184, %v2190
        %s2195 = sld [smem:[#allocation12 + $0x204]]
        %v2196 = vstv %s2195
        %v2197 = vmul.f32 %v2196, %v1899
        %v2198 = vmul.f32 %v2196, %v1900
        %v2199 = vmul.f32 %v2196, %v1901
        %v2200 = vmul.f32 %v2196, %v1902
        %v2201 = vadd.f32 %v2191, %v2197
        %v2202 = vadd.f32 %v2192, %v2198
        %v2203 = vadd.f32 %v2193, %v2199
        %v2204 = vadd.f32 %v2194, %v2200
        %s2205 = sld [smem:[#allocation12 + $0x205]]
        %v2206 = vstv %s2205
        %v2207 = vmul.f32 %v2206, %v1907
        %v2208 = vmul.f32 %v2206, %v1908
        %v2209 = vmul.f32 %v2206, %v1909
        %v2210 = vmul.f32 %v2206, %v1910
        %v2211 = vadd.f32 %v2201, %v2207
        %v2212 = vadd.f32 %v2202, %v2208
        %v2213 = vadd.f32 %v2203, %v2209
        %v2214 = vadd.f32 %v2204, %v2210
        %s2215 = sld [smem:[#allocation14 + $0x4]]
        %v2216 = vstv %s2215
        %v2217 = vadd.f32 %v2211, %v2216
        %v2218 = vadd.f32 %v2212, %v2216
        %v2219 = vadd.f32 %v2213, %v2216
        %v2220 = vadd.f32 %v2214, %v2216
        %s2221 = sld [smem:[#allocation12 + $0x280]]
        %v2222 = vstv %s2221
        %v2223 = vmul.f32 %v2222, %v1867
        %v2224 = vmul.f32 %v2222, %v1868
        %v2225 = vmul.f32 %v2222, %v1869
        %v2226 = vmul.f32 %v2222, %v1870
        %s2227 = sld [smem:[#allocation12 + $0x281]]
        %v2228 = vstv %s2227
        %v2229 = vmul.f32 %v2228, %v1875
        %v2230 = vmul.f32 %v2228, %v1876
        %v2231 = vmul.f32 %v2228, %v1877
        %v2232 = vmul.f32 %v2228, %v1878
        %v2233 = vadd.f32 %v2223, %v2229
        %v2234 = vadd.f32 %v2224, %v2230
        %v2235 = vadd.f32 %v2225, %v2231
        %v2236 = vadd.f32 %v2226, %v2232
        %s2237 = sld [smem:[#allocation12 + $0x282]]
        %v2238 = vstv %s2237
        %v2239 = vmul.f32 %v2238, %v1883
        %v2240 = vmul.f32 %v2238, %v1884
        %v2241 = vmul.f32 %v2238, %v1885
        %v2242 = vmul.f32 %v2238, %v1886
        %v2243 = vadd.f32 %v2233, %v2239
        %v2244 = vadd.f32 %v2234, %v2240
        %v2245 = vadd.f32 %v2235, %v2241
        %v2246 = vadd.f32 %v2236, %v2242
        %s2247 = sld [smem:[#allocation12 + $0x283]]
        %v2248 = vstv %s2247
        %v2249 = vmul.f32 %v2248, %v1891
        %v2250 = vmul.f32 %v2248, %v1892
        %v2251 = vmul.f32 %v2248, %v1893
        %v2252 = vmul.f32 %v2248, %v1894
        %v2253 = vadd.f32 %v2243, %v2249
        %v2254 = vadd.f32 %v2244, %v2250
        %v2255 = vadd.f32 %v2245, %v2251
        %v2256 = vadd.f32 %v2246, %v2252
        %s2257 = sld [smem:[#allocation12 + $0x284]]
        %v2258 = vstv %s2257
        %v2259 = vmul.f32 %v2258, %v1899
        %v2260 = vmul.f32 %v2258, %v1900
        %v2261 = vmul.f32 %v2258, %v1901
        %v2262 = vmul.f32 %v2258, %v1902
        %v2263 = vadd.f32 %v2253, %v2259
        %v2264 = vadd.f32 %v2254, %v2260
        %v2265 = vadd.f32 %v2255, %v2261
        %v2266 = vadd.f32 %v2256, %v2262
        %s2267 = sld [smem:[#allocation12 + $0x285]]
        %v2268 = vstv %s2267
        %v2269 = vmul.f32 %v2268, %v1907
        %v2270 = vmul.f32 %v2268, %v1908
        %v2271 = vmul.f32 %v2268, %v1909
        %v2272 = vmul.f32 %v2268, %v1910
        %v2273 = vadd.f32 %v2263, %v2269
        %v2274 = vadd.f32 %v2264, %v2270
        %v2275 = vadd.f32 %v2265, %v2271
        %v2276 = vadd.f32 %v2266, %v2272
        %s2277 = sld [smem:[#allocation14 + $0x5]]
        %v2278 = vstv %s2277
        %v2279 = vadd.f32 %v2273, %v2278
        %v2280 = vadd.f32 %v2274, %v2278
        %v2281 = vadd.f32 %v2275, %v2278
        %v2282 = vadd.f32 %v2276, %v2278
        %vm2283 = vcmask 252928
        %v2284 = vsel %vm2283, %v1969, 0.0
        %v2285 = vsel %vm2283, %v1970, 0.0
        %v2286 = vadd.f32 %v2284, %v2285
        %v2287 = vsel %vm2283, %v1971, 0.0
        %v2288 = vadd.f32 %v2286, %v2287
        %vm2289 = vcmask 251904
        %v2290 = vsel %vm2289, %v1972, 0.0
        %v2291 = vadd.f32 %v2288, %v2290
        %2292 = vadd.xlane.f32.xlu0 %v2291
        %v2293 = vpop.xlane.xlu0 %2292
        %v2294 = vrot.slane %v2293, 4
        %v2295 = vadd.f32 %v2293, %v2294
        %v2296 = vrot.slane %v2295, 2
        %v2297 = vadd.f32 %v2295, %v2296
        %v2298 = vrot.slane %v2297, 1
        %v2299 = vadd.f32 %v2297, %v2298
        %s2300 = vtos %v2299
        %v2301 = vstv %s2300
        %v2302 = vmul.f32 %v2301, 0.0010405828
        %v2303 = vsel %vm2283, %v2031, 0.0
        %v2304 = vsel %vm2283, %v2032, 0.0
        %v2305 = vadd.f32 %v2303, %v2304
        %v2306 = vsel %vm2283, %v2033, 0.0
        %v2307 = vadd.f32 %v2305, %v2306
        %v2308 = vsel %vm2289, %v2034, 0.0
        %v2309 = vadd.f32 %v2307, %v2308
        %2310 = vadd.xlane.f32.xlu0 %v2309
        %v2311 = vpop.xlane.xlu0 %2310
        %v2312 = vrot.slane %v2311, 4
        %v2313 = vadd.f32 %v2311, %v2312
        %v2314 = vrot.slane %v2313, 2
        %v2315 = vadd.f32 %v2313, %v2314
        %v2316 = vrot.slane %v2315, 1
        %v2317 = vadd.f32 %v2315, %v2316
        %s2318 = vtos %v2317
        %v2319 = vstv %s2318
        %v2320 = vmul.f32 %v2319, 0.0010405828
        %v2321 = vsel %vm2283, %v2093, 0.0
        %v2322 = vsel %vm2283, %v2094, 0.0
        %v2323 = vadd.f32 %v2321, %v2322
        %v2324 = vsel %vm2283, %v2095, 0.0
        %v2325 = vadd.f32 %v2323, %v2324
        %v2326 = vsel %vm2289, %v2096, 0.0
        %v2327 = vadd.f32 %v2325, %v2326
        %2328 = vadd.xlane.f32.xlu0 %v2327
        %v2329 = vpop.xlane.xlu0 %2328
        %v2330 = vrot.slane %v2329, 4
        %v2331 = vadd.f32 %v2329, %v2330
        %v2332 = vrot.slane %v2331, 2
        %v2333 = vadd.f32 %v2331, %v2332
        %v2334 = vrot.slane %v2333, 1
        %v2335 = vadd.f32 %v2333, %v2334
        %s2336 = vtos %v2335
        %v2337 = vstv %s2336
        %v2338 = vmul.f32 %v2337, 0.0010405828
        %v2339 = vsel %vm2283, %v2155, 0.0
        %v2340 = vsel %vm2283, %v2156, 0.0
        %v2341 = vadd.f32 %v2339, %v2340
        %v2342 = vsel %vm2283, %v2157, 0.0
        %v2343 = vadd.f32 %v2341, %v2342
        %v2344 = vsel %vm2289, %v2158, 0.0
        %v2345 = vadd.f32 %v2343, %v2344
        %2346 = vadd.xlane.f32.xlu0 %v2345
        %v2347 = vpop.xlane.xlu0 %2346
        %v2348 = vrot.slane %v2347, 4
        %v2349 = vadd.f32 %v2347, %v2348
        %v2350 = vrot.slane %v2349, 2
        %v2351 = vadd.f32 %v2349, %v2350
        %v2352 = vrot.slane %v2351, 1
        %v2353 = vadd.f32 %v2351, %v2352
        %s2354 = vtos %v2353
        %v2355 = vstv %s2354
        %v2356 = vmul.f32 %v2355, 0.0010405828
        %v2357 = vsel %vm2283, %v2217, 0.0
        %v2358 = vsel %vm2283, %v2218, 0.0
        %v2359 = vadd.f32 %v2357, %v2358
        %v2360 = vsel %vm2283, %v2219, 0.0
        %v2361 = vadd.f32 %v2359, %v2360
        %v2362 = vsel %vm2289, %v2220, 0.0
        %v2363 = vadd.f32 %v2361, %v2362
        %2364 = vadd.xlane.f32.xlu0 %v2363
        %v2365 = vpop.xlane.xlu0 %2364
        %v2366 = vrot.slane %v2365, 4
        %v2367 = vadd.f32 %v2365, %v2366
        %v2368 = vrot.slane %v2367, 2
        %v2369 = vadd.f32 %v2367, %v2368
        %v2370 = vrot.slane %v2369, 1
        %v2371 = vadd.f32 %v2369, %v2370
        %s2372 = vtos %v2371
        %v2373 = vstv %s2372
        %v2374 = vmul.f32 %v2373, 0.0010405828
        %v2375 = vsel %vm2283, %v2279, 0.0
        %v2376 = vsel %vm2283, %v2280, 0.0
        %v2377 = vadd.f32 %v2375, %v2376
        %v2378 = vsel %vm2283, %v2281, 0.0
        %v2379 = vadd.f32 %v2377, %v2378
        %v2380 = vsel %vm2289, %v2282, 0.0
        %v2381 = vadd.f32 %v2379, %v2380
        %2382 = vadd.xlane.f32.xlu0 %v2381
        %v2383 = vpop.xlane.xlu0 %2382
        %v2384 = vrot.slane %v2383, 4
        %v2385 = vadd.f32 %v2383, %v2384
        %v2386 = vrot.slane %v2385, 2
        %v2387 = vadd.f32 %v2385, %v2386
        %v2388 = vrot.slane %v2387, 1
        %v2389 = vadd.f32 %v2387, %v2388
        %s2390 = vtos %v2389
        %v2391 = vstv %s2390
        %v2392 = vmul.f32 %v2391, 0.0010405828
        %s2393 = sld [smem:[#allocation16]]
        %v2394 = vstv %s2393
        %v2395 = vmul.f32 %v2394, %v2302
        %s2396 = sld [smem:[#allocation16 + $0x1]]
        %v2397 = vstv %s2396
        %v2398 = vmul.f32 %v2397, %v2320
        %v2399 = vadd.f32 %v2395, %v2398
        %s2400 = sld [smem:[#allocation16 + $0x2]]
        %v2401 = vstv %s2400
        %v2402 = vmul.f32 %v2401, %v2338
        %v2403 = vadd.f32 %v2399, %v2402
        %s2404 = sld [smem:[#allocation16 + $0x3]]
        %v2405 = vstv %s2404
        %v2406 = vmul.f32 %v2405, %v2356
        %v2407 = vadd.f32 %v2403, %v2406
        %s2408 = sld [smem:[#allocation16 + $0x4]]
        %v2409 = vstv %s2408
        %v2410 = vmul.f32 %v2409, %v2374
        %v2411 = vadd.f32 %v2407, %v2410
        %s2412 = sld [smem:[#allocation16 + $0x5]]
        %v2413 = vstv %s2412
        %v2414 = vmul.f32 %v2413, %v2392
        %v2415 = vadd.f32 %v2411, %v2414
        %s2416 = sld [smem:[#allocation17]]
        %v2417 = vstv %s2416
        %v2418 = vadd.f32 %v2415, %v2417
        %s2419 = sld [smem:[#allocation16 + $0x80]]
        %v2420 = vstv %s2419
        %v2421 = vmul.f32 %v2420, %v2302
        %s2422 = sld [smem:[#allocation16 + $0x81]]
        %v2423 = vstv %s2422
        %v2424 = vmul.f32 %v2423, %v2320
        %v2425 = vadd.f32 %v2421, %v2424
        %s2426 = sld [smem:[#allocation16 + $0x82]]
        %v2427 = vstv %s2426
        %v2428 = vmul.f32 %v2427, %v2338
        %v2429 = vadd.f32 %v2425, %v2428
        %s2430 = sld [smem:[#allocation16 + $0x83]]
        %v2431 = vstv %s2430
        %v2432 = vmul.f32 %v2431, %v2356
        %v2433 = vadd.f32 %v2429, %v2432
        %s2434 = sld [smem:[#allocation16 + $0x84]]
        %v2435 = vstv %s2434
        %v2436 = vmul.f32 %v2435, %v2374
        %v2437 = vadd.f32 %v2433, %v2436
        %s2438 = sld [smem:[#allocation16 + $0x85]]
        %v2439 = vstv %s2438
        %v2440 = vmul.f32 %v2439, %v2392
        %v2441 = vadd.f32 %v2437, %v2440
        %s2442 = sld [smem:[#allocation17 + $0x1]]
        %v2443 = vstv %s2442
        %v2444 = vadd.f32 %v2441, %v2443
        %s2445 = sld [smem:[#allocation16 + $0x100]]
        %v2446 = vstv %s2445
        %v2447 = vmul.f32 %v2446, %v2302
        %s2448 = sld [smem:[#allocation16 + $0x101]]
        %v2449 = vstv %s2448
        %v2450 = vmul.f32 %v2449, %v2320
        %v2451 = vadd.f32 %v2447, %v2450
        %s2452 = sld [smem:[#allocation16 + $0x102]]
        %v2453 = vstv %s2452
        %v2454 = vmul.f32 %v2453, %v2338
        %v2455 = vadd.f32 %v2451, %v2454
        %s2456 = sld [smem:[#allocation16 + $0x103]]
        %v2457 = vstv %s2456
        %v2458 = vmul.f32 %v2457, %v2356
        %v2459 = vadd.f32 %v2455, %v2458
        %s2460 = sld [smem:[#allocation16 + $0x104]]
        %v2461 = vstv %s2460
        %v2462 = vmul.f32 %v2461, %v2374
        %v2463 = vadd.f32 %v2459, %v2462
        %s2464 = sld [smem:[#allocation16 + $0x105]]
        %v2465 = vstv %s2464
        %v2466 = vmul.f32 %v2465, %v2392
        %v2467 = vadd.f32 %v2463, %v2466
        %s2468 = sld [smem:[#allocation17 + $0x2]]
        %v2469 = vstv %s2468
        %v2470 = vadd.f32 %v2467, %v2469
        %s2471 = sld [smem:[#allocation16 + $0x180]]
        %v2472 = vstv %s2471
        %v2473 = vmul.f32 %v2472, %v2302
        %s2474 = sld [smem:[#allocation16 + $0x181]]
        %v2475 = vstv %s2474
        %v2476 = vmul.f32 %v2475, %v2320
        %v2477 = vadd.f32 %v2473, %v2476
        %s2478 = sld [smem:[#allocation16 + $0x182]]
        %v2479 = vstv %s2478
        %v2480 = vmul.f32 %v2479, %v2338
        %v2481 = vadd.f32 %v2477, %v2480
        %s2482 = sld [smem:[#allocation16 + $0x183]]
        %v2483 = vstv %s2482
        %v2484 = vmul.f32 %v2483, %v2356
        %v2485 = vadd.f32 %v2481, %v2484
        %s2486 = sld [smem:[#allocation16 + $0x184]]
        %v2487 = vstv %s2486
        %v2488 = vmul.f32 %v2487, %v2374
        %v2489 = vadd.f32 %v2485, %v2488
        %s2490 = sld [smem:[#allocation16 + $0x185]]
        %v2491 = vstv %s2490
        %v2492 = vmul.f32 %v2491, %v2392
        %v2493 = vadd.f32 %v2489, %v2492
        %s2494 = sld [smem:[#allocation17 + $0x3]]
        %v2495 = vstv %s2494
        %v2496 = vadd.f32 %v2493, %v2495
        %s2497 = sld [smem:[#allocation16 + $0x200]]
        %v2498 = vstv %s2497
        %v2499 = vmul.f32 %v2498, %v2302
        %s2500 = sld [smem:[#allocation16 + $0x201]]
        %v2501 = vstv %s2500
        %v2502 = vmul.f32 %v2501, %v2320
        %v2503 = vadd.f32 %v2499, %v2502
        %s2504 = sld [smem:[#allocation16 + $0x202]]
        %v2505 = vstv %s2504
        %v2506 = vmul.f32 %v2505, %v2338
        %v2507 = vadd.f32 %v2503, %v2506
        %s2508 = sld [smem:[#allocation16 + $0x203]]
        %v2509 = vstv %s2508
        %v2510 = vmul.f32 %v2509, %v2356
        %v2511 = vadd.f32 %v2507, %v2510
        %s2512 = sld [smem:[#allocation16 + $0x204]]
        %v2513 = vstv %s2512
        %v2514 = vmul.f32 %v2513, %v2374
        %v2515 = vadd.f32 %v2511, %v2514
        %s2516 = sld [smem:[#allocation16 + $0x205]]
        %v2517 = vstv %s2516
        %v2518 = vmul.f32 %v2517, %v2392
        %v2519 = vadd.f32 %v2515, %v2518
        %s2520 = sld [smem:[#allocation17 + $0x4]]
        %v2521 = vstv %s2520
        %v2522 = vadd.f32 %v2519, %v2521
        %s2523 = sld [smem:[#allocation16 + $0x280]]
        %v2524 = vstv %s2523
        %v2525 = vmul.f32 %v2524, %v2302
        %s2526 = sld [smem:[#allocation16 + $0x281]]
        %v2527 = vstv %s2526
        %v2528 = vmul.f32 %v2527, %v2320
        %v2529 = vadd.f32 %v2525, %v2528
        %s2530 = sld [smem:[#allocation16 + $0x282]]
        %v2531 = vstv %s2530
        %v2532 = vmul.f32 %v2531, %v2338
        %v2533 = vadd.f32 %v2529, %v2532
        %s2534 = sld [smem:[#allocation16 + $0x283]]
        %v2535 = vstv %s2534
        %v2536 = vmul.f32 %v2535, %v2356
        %v2537 = vadd.f32 %v2533, %v2536
        %s2538 = sld [smem:[#allocation16 + $0x284]]
        %v2539 = vstv %s2538
        %v2540 = vmul.f32 %v2539, %v2374
        %v2541 = vadd.f32 %v2537, %v2540
        %s2542 = sld [smem:[#allocation16 + $0x285]]
        %v2543 = vstv %s2542
        %v2544 = vmul.f32 %v2543, %v2392
        %v2545 = vadd.f32 %v2541, %v2544
        %s2546 = sld [smem:[#allocation17 + $0x5]]
        %v2547 = vstv %s2546
        %v2548 = vadd.f32 %v2545, %v2547
        %v2549 = vmax.f32 %v2418, 0.0
        %v2550 = vmax.f32 %v2444, 0.0
        %v2551 = vmax.f32 %v2470, 0.0
        %v2552 = vmax.f32 %v2496, 0.0
        %v2553 = vmax.f32 %v2522, 0.0
        %v2554 = vmax.f32 %v2548, 0.0
        %s2555 = sld [smem:[#allocation18]]
        %v2556 = vstv %s2555
        %v2557 = vmul.f32 %v2556, %v2549
        %s2558 = sld [smem:[#allocation18 + $0x1]]
        %v2559 = vstv %s2558
        %v2560 = vmul.f32 %v2559, %v2550
        %v2561 = vadd.f32 %v2557, %v2560
        %s2562 = sld [smem:[#allocation18 + $0x2]]
        %v2563 = vstv %s2562
        %v2564 = vmul.f32 %v2563, %v2551
        %v2565 = vadd.f32 %v2561, %v2564
        %s2566 = sld [smem:[#allocation18 + $0x3]]
        %v2567 = vstv %s2566
        %v2568 = vmul.f32 %v2567, %v2552
        %v2569 = vadd.f32 %v2565, %v2568
        %s2570 = sld [smem:[#allocation18 + $0x4]]
        %v2571 = vstv %s2570
        %v2572 = vmul.f32 %v2571, %v2553
        %v2573 = vadd.f32 %v2569, %v2572
        %s2574 = sld [smem:[#allocation18 + $0x5]]
        %v2575 = vstv %s2574
        %v2576 = vmul.f32 %v2575, %v2554
        %v2577 = vadd.f32 %v2573, %v2576
        %s2578 = sld [smem:[#allocation20]]
        %v2579 = vstv %s2578
        %v2580 = vadd.f32 %v2577, %v2579
        %s2581 = sld [smem:[#allocation18 + $0x80]]
        %v2582 = vstv %s2581
        %v2583 = vmul.f32 %v2582, %v2549
        %s2584 = sld [smem:[#allocation18 + $0x81]]
        %v2585 = vstv %s2584
        %v2586 = vmul.f32 %v2585, %v2550
        %v2587 = vadd.f32 %v2583, %v2586
        %s2588 = sld [smem:[#allocation18 + $0x82]]
        %v2589 = vstv %s2588
        %v2590 = vmul.f32 %v2589, %v2551
        %v2591 = vadd.f32 %v2587, %v2590
        %s2592 = sld [smem:[#allocation18 + $0x83]]
        %v2593 = vstv %s2592
        %v2594 = vmul.f32 %v2593, %v2552
        %v2595 = vadd.f32 %v2591, %v2594
        %s2596 = sld [smem:[#allocation18 + $0x84]]
        %v2597 = vstv %s2596
        %v2598 = vmul.f32 %v2597, %v2553
        %v2599 = vadd.f32 %v2595, %v2598
        %s2600 = sld [smem:[#allocation18 + $0x85]]
        %v2601 = vstv %s2600
        %v2602 = vmul.f32 %v2601, %v2554
        %v2603 = vadd.f32 %v2599, %v2602
        %s2604 = sld [smem:[#allocation20 + $0x1]]
        %v2605 = vstv %s2604
        %v2606 = vadd.f32 %v2603, %v2605
        %s2607 = sld [smem:[#allocation18 + $0x100]]
        %v2608 = vstv %s2607
        %v2609 = vmul.f32 %v2608, %v2549
        %s2610 = sld [smem:[#allocation18 + $0x101]]
        %v2611 = vstv %s2610
        %v2612 = vmul.f32 %v2611, %v2550
        %v2613 = vadd.f32 %v2609, %v2612
        %s2614 = sld [smem:[#allocation18 + $0x102]]
        %v2615 = vstv %s2614
        %v2616 = vmul.f32 %v2615, %v2551
        %v2617 = vadd.f32 %v2613, %v2616
        %s2618 = sld [smem:[#allocation18 + $0x103]]
        %v2619 = vstv %s2618
        %v2620 = vmul.f32 %v2619, %v2552
        %v2621 = vadd.f32 %v2617, %v2620
        %s2622 = sld [smem:[#allocation18 + $0x104]]
        %v2623 = vstv %s2622
        %v2624 = vmul.f32 %v2623, %v2553
        %v2625 = vadd.f32 %v2621, %v2624
        %s2626 = sld [smem:[#allocation18 + $0x105]]
        %v2627 = vstv %s2626
        %v2628 = vmul.f32 %v2627, %v2554
        %v2629 = vadd.f32 %v2625, %v2628
        %s2630 = sld [smem:[#allocation20 + $0x2]]
        %v2631 = vstv %s2630
        %v2632 = vadd.f32 %v2629, %v2631
        %s2633 = sld [smem:[#allocation18 + $0x180]]
        %v2634 = vstv %s2633
        %v2635 = vmul.f32 %v2634, %v2549
        %s2636 = sld [smem:[#allocation18 + $0x181]]
        %v2637 = vstv %s2636
        %v2638 = vmul.f32 %v2637, %v2550
        %v2639 = vadd.f32 %v2635, %v2638
        %s2640 = sld [smem:[#allocation18 + $0x182]]
        %v2641 = vstv %s2640
        %v2642 = vmul.f32 %v2641, %v2551
        %v2643 = vadd.f32 %v2639, %v2642
        %s2644 = sld [smem:[#allocation18 + $0x183]]
        %v2645 = vstv %s2644
        %v2646 = vmul.f32 %v2645, %v2552
        %v2647 = vadd.f32 %v2643, %v2646
        %s2648 = sld [smem:[#allocation18 + $0x184]]
        %v2649 = vstv %s2648
        %v2650 = vmul.f32 %v2649, %v2553
        %v2651 = vadd.f32 %v2647, %v2650
        %s2652 = sld [smem:[#allocation18 + $0x185]]
        %v2653 = vstv %s2652
        %v2654 = vmul.f32 %v2653, %v2554
        %v2655 = vadd.f32 %v2651, %v2654
        %s2656 = sld [smem:[#allocation20 + $0x3]]
        %v2657 = vstv %s2656
        %v2658 = vadd.f32 %v2655, %v2657
        %s2659 = sld [smem:[#allocation18 + $0x200]]
        %v2660 = vstv %s2659
        %v2661 = vmul.f32 %v2660, %v2549
        %s2662 = sld [smem:[#allocation18 + $0x201]]
        %v2663 = vstv %s2662
        %v2664 = vmul.f32 %v2663, %v2550
        %v2665 = vadd.f32 %v2661, %v2664
        %s2666 = sld [smem:[#allocation18 + $0x202]]
        %v2667 = vstv %s2666
        %v2668 = vmul.f32 %v2667, %v2551
        %v2669 = vadd.f32 %v2665, %v2668
        %s2670 = sld [smem:[#allocation18 + $0x203]]
        %v2671 = vstv %s2670
        %v2672 = vmul.f32 %v2671, %v2552
        %v2673 = vadd.f32 %v2669, %v2672
        %s2674 = sld [smem:[#allocation18 + $0x204]]
        %v2675 = vstv %s2674
        %v2676 = vmul.f32 %v2675, %v2553
        %v2677 = vadd.f32 %v2673, %v2676
        %s2678 = sld [smem:[#allocation18 + $0x205]]
        %v2679 = vstv %s2678
        %v2680 = vmul.f32 %v2679, %v2554
        %v2681 = vadd.f32 %v2677, %v2680
        %s2682 = sld [smem:[#allocation20 + $0x4]]
        %v2683 = vstv %s2682
        %v2684 = vadd.f32 %v2681, %v2683
        %s2685 = sld [smem:[#allocation18 + $0x280]]
        %v2686 = vstv %s2685
        %v2687 = vmul.f32 %v2686, %v2549
        %s2688 = sld [smem:[#allocation18 + $0x281]]
        %v2689 = vstv %s2688
        %v2690 = vmul.f32 %v2689, %v2550
        %v2691 = vadd.f32 %v2687, %v2690
        %s2692 = sld [smem:[#allocation18 + $0x282]]
        %v2693 = vstv %s2692
        %v2694 = vmul.f32 %v2693, %v2551
        %v2695 = vadd.f32 %v2691, %v2694
        %s2696 = sld [smem:[#allocation18 + $0x283]]
        %v2697 = vstv %s2696
        %v2698 = vmul.f32 %v2697, %v2552
        %v2699 = vadd.f32 %v2695, %v2698
        %s2700 = sld [smem:[#allocation18 + $0x284]]
        %v2701 = vstv %s2700
        %v2702 = vmul.f32 %v2701, %v2553
        %v2703 = vadd.f32 %v2699, %v2702
        %s2704 = sld [smem:[#allocation18 + $0x285]]
        %v2705 = vstv %s2704
        %v2706 = vmul.f32 %v2705, %v2554
        %v2707 = vadd.f32 %v2703, %v2706
        %s2708 = sld [smem:[#allocation20 + $0x5]]
        %v2709 = vstv %s2708
        %v2710 = vadd.f32 %v2707, %v2709
        %v2711 = vxor.u32 %v2580, 2147483648
        %v2712 = vmul.f32 %v2711, 1.442695
        %v2713 = vpow.pop %v2712
        %v2714 = vadd.f32 %v2713, 1.0
        %v2715 = vrcp.pop %v2714
        %v2716 = vmul.f32 1.0, %v2715
        %v2717 = vxor.u32 %v2606, 2147483648
        %v2718 = vmul.f32 %v2717, 1.442695
        %v2719 = vpow.pop %v2718
        %v2720 = vadd.f32 %v2719, 1.0
        %v2721 = vrcp.pop %v2720
        %v2722 = vmul.f32 1.0, %v2721
        %v2723 = vxor.u32 %v2632, 2147483648
        %v2724 = vmul.f32 %v2723, 1.442695
        %v2725 = vpow.pop %v2724
        %v2726 = vadd.f32 %v2725, 1.0
        %v2727 = vrcp.pop %v2726
        %v2728 = vmul.f32 1.0, %v2727
        %v2729 = vxor.u32 %v2658, 2147483648
        %v2730 = vmul.f32 %v2729, 1.442695
        %v2731 = vpow.pop %v2730
        %v2732 = vadd.f32 %v2731, 1.0
        %v2733 = vrcp.pop %v2732
        %v2734 = vmul.f32 1.0, %v2733
        %v2735 = vxor.u32 %v2684, 2147483648
        %v2736 = vmul.f32 %v2735, 1.442695
        %v2737 = vpow.pop %v2736
        %v2738 = vadd.f32 %v2737, 1.0
        %v2739 = vrcp.pop %v2738
        %v2740 = vmul.f32 1.0, %v2739
        %v2741 = vxor.u32 %v2710, 2147483648
        %v2742 = vmul.f32 %v2741, 1.442695
        %v2743 = vpow.pop %v2742
        %v2744 = vadd.f32 %v2743, 1.0
        %v2745 = vrcp.pop %v2744
        %v2746 = vmul.f32 1.0, %v2745
        %v2747 = vmul.f32 %v1969, %v2716
        %v2748 = vmul.f32 %v1970, %v2716
        %v2749 = vmul.f32 %v1971, %v2716
        %v2750 = vmul.f32 %v1972, %v2716
        %v2751 = vmul.f32 %v2031, %v2722
        %v2752 = vmul.f32 %v2032, %v2722
        %v2753 = vmul.f32 %v2033, %v2722
        %v2754 = vmul.f32 %v2034, %v2722
        %v2755 = vmul.f32 %v2093, %v2728
        %v2756 = vmul.f32 %v2094, %v2728
        %v2757 = vmul.f32 %v2095, %v2728
        %v2758 = vmul.f32 %v2096, %v2728
        %v2759 = vmul.f32 %v2155, %v2734
        %v2760 = vmul.f32 %v2156, %v2734
        %v2761 = vmul.f32 %v2157, %v2734
        %v2762 = vmul.f32 %v2158, %v2734
        %v2763 = vmul.f32 %v2217, %v2740
        %v2764 = vmul.f32 %v2218, %v2740
        %v2765 = vmul.f32 %v2219, %v2740
        %v2766 = vmul.f32 %v2220, %v2740
        %v2767 = vmul.f32 %v2279, %v2746
        %v2768 = vmul.f32 %v2280, %v2746
        %v2769 = vmul.f32 %v2281, %v2746
        %v2770 = vmul.f32 %v2282, %v2746
        %s2771 = sld [smem:[#allocation21]]
        %v2772 = vstv %s2771
        %v2773 = vmul.f32 %v2772, %v2747
        %v2774 = vmul.f32 %v2772, %v2748
        %v2775 = vmul.f32 %v2772, %v2749
        %v2776 = vmul.f32 %v2772, %v2750
        %s2777 = sld [smem:[#allocation21 + $0x1]]
        %v2778 = vstv %s2777
        %v2779 = vmul.f32 %v2778, %v2751
        %v2780 = vmul.f32 %v2778, %v2752
        %v2781 = vmul.f32 %v2778, %v2753
        %v2782 = vmul.f32 %v2778, %v2754
        %v2783 = vadd.f32 %v2773, %v2779
        %v2784 = vadd.f32 %v2774, %v2780
        %v2785 = vadd.f32 %v2775, %v2781
        %v2786 = vadd.f32 %v2776, %v2782
        %s2787 = sld [smem:[#allocation21 + $0x2]]
        %v2788 = vstv %s2787
        %v2789 = vmul.f32 %v2788, %v2755
        %v2790 = vmul.f32 %v2788, %v2756
        %v2791 = vmul.f32 %v2788, %v2757
        %v2792 = vmul.f32 %v2788, %v2758
        %v2793 = vadd.f32 %v2783, %v2789
        %v2794 = vadd.f32 %v2784, %v2790
        %v2795 = vadd.f32 %v2785, %v2791
        %v2796 = vadd.f32 %v2786, %v2792
        %s2797 = sld [smem:[#allocation21 + $0x3]]
        %v2798 = vstv %s2797
        %v2799 = vmul.f32 %v2798, %v2759
        %v2800 = vmul.f32 %v2798, %v2760
        %v2801 = vmul.f32 %v2798, %v2761
        %v2802 = vmul.f32 %v2798, %v2762
        %v2803 = vadd.f32 %v2793, %v2799
        %v2804 = vadd.f32 %v2794, %v2800
        %v2805 = vadd.f32 %v2795, %v2801
        %v2806 = vadd.f32 %v2796, %v2802
        %s2807 = sld [smem:[#allocation21 + $0x4]]
        %v2808 = vstv %s2807
        %v2809 = vmul.f32 %v2808, %v2763
        %v2810 = vmul.f32 %v2808, %v2764
        %v2811 = vmul.f32 %v2808, %v2765
        %v2812 = vmul.f32 %v2808, %v2766
        %v2813 = vadd.f32 %v2803, %v2809
        %v2814 = vadd.f32 %v2804, %v2810
        %v2815 = vadd.f32 %v2805, %v2811
        %v2816 = vadd.f32 %v2806, %v2812
        %s2817 = sld [smem:[#allocation21 + $0x5]]
        %v2818 = vstv %s2817
        %v2819 = vmul.f32 %v2818, %v2767
        %v2820 = vmul.f32 %v2818, %v2768
        %v2821 = vmul.f32 %v2818, %v2769
        %v2822 = vmul.f32 %v2818, %v2770
        %v2823 = vadd.f32 %v2813, %v2819
        %v2824 = vadd.f32 %v2814, %v2820
        %v2825 = vadd.f32 %v2815, %v2821
        %v2826 = vadd.f32 %v2816, %v2822
        %s2827 = sld [smem:[#allocation23]]
        %v2828 = vstv %s2827
        %v2829 = vadd.f32 %v2823, %v2828
        %v2830 = vadd.f32 %v2824, %v2828
        %v2831 = vadd.f32 %v2825, %v2828
        %v2832 = vadd.f32 %v2826, %v2828
        %s2833 = sld [smem:[#allocation21 + $0x80]]
        %v2834 = vstv %s2833
        %v2835 = vmul.f32 %v2834, %v2747
        %v2836 = vmul.f32 %v2834, %v2748
        %v2837 = vmul.f32 %v2834, %v2749
        %v2838 = vmul.f32 %v2834, %v2750
        %s2839 = sld [smem:[#allocation21 + $0x81]]
        %v2840 = vstv %s2839
        %v2841 = vmul.f32 %v2840, %v2751
        %v2842 = vmul.f32 %v2840, %v2752
        %v2843 = vmul.f32 %v2840, %v2753
        %v2844 = vmul.f32 %v2840, %v2754
        %v2845 = vadd.f32 %v2835, %v2841
        %v2846 = vadd.f32 %v2836, %v2842
        %v2847 = vadd.f32 %v2837, %v2843
        %v2848 = vadd.f32 %v2838, %v2844
        %s2849 = sld [smem:[#allocation21 + $0x82]]
        %v2850 = vstv %s2849
        %v2851 = vmul.f32 %v2850, %v2755
        %v2852 = vmul.f32 %v2850, %v2756
        %v2853 = vmul.f32 %v2850, %v2757
        %v2854 = vmul.f32 %v2850, %v2758
        %v2855 = vadd.f32 %v2845, %v2851
        %v2856 = vadd.f32 %v2846, %v2852
        %v2857 = vadd.f32 %v2847, %v2853
        %v2858 = vadd.f32 %v2848, %v2854
        %s2859 = sld [smem:[#allocation21 + $0x83]]
        %v2860 = vstv %s2859
        %v2861 = vmul.f32 %v2860, %v2759
        %v2862 = vmul.f32 %v2860, %v2760
        %v2863 = vmul.f32 %v2860, %v2761
        %v2864 = vmul.f32 %v2860, %v2762
        %v2865 = vadd.f32 %v2855, %v2861
        %v2866 = vadd.f32 %v2856, %v2862
        %v2867 = vadd.f32 %v2857, %v2863
        %v2868 = vadd.f32 %v2858, %v2864
        %s2869 = sld [smem:[#allocation21 + $0x84]]
        %v2870 = vstv %s2869
        %v2871 = vmul.f32 %v2870, %v2763
        %v2872 = vmul.f32 %v2870, %v2764
        %v2873 = vmul.f32 %v2870, %v2765
        %v2874 = vmul.f32 %v2870, %v2766
        %v2875 = vadd.f32 %v2865, %v2871
        %v2876 = vadd.f32 %v2866, %v2872
        %v2877 = vadd.f32 %v2867, %v2873
        %v2878 = vadd.f32 %v2868, %v2874
        %s2879 = sld [smem:[#allocation21 + $0x85]]
        %v2880 = vstv %s2879
        %v2881 = vmul.f32 %v2880, %v2767
        %v2882 = vmul.f32 %v2880, %v2768
        %v2883 = vmul.f32 %v2880, %v2769
        %v2884 = vmul.f32 %v2880, %v2770
        %v2885 = vadd.f32 %v2875, %v2881
        %v2886 = vadd.f32 %v2876, %v2882
        %v2887 = vadd.f32 %v2877, %v2883
        %v2888 = vadd.f32 %v2878, %v2884
        %s2889 = sld [smem:[#allocation23 + $0x1]]
        %v2890 = vstv %s2889
        %v2891 = vadd.f32 %v2885, %v2890
        %v2892 = vadd.f32 %v2886, %v2890
        %v2893 = vadd.f32 %v2887, %v2890
        %v2894 = vadd.f32 %v2888, %v2890
        %s2895 = sld [smem:[#allocation21 + $0x100]]
        %v2896 = vstv %s2895
        %v2897 = vmul.f32 %v2896, %v2747
        %v2898 = vmul.f32 %v2896, %v2748
        %v2899 = vmul.f32 %v2896, %v2749
        %v2900 = vmul.f32 %v2896, %v2750
        %s2901 = sld [smem:[#allocation21 + $0x101]]
        %v2902 = vstv %s2901
        %v2903 = vmul.f32 %v2902, %v2751
        %v2904 = vmul.f32 %v2902, %v2752
        %v2905 = vmul.f32 %v2902, %v2753
        %v2906 = vmul.f32 %v2902, %v2754
        %v2907 = vadd.f32 %v2897, %v2903
        %v2908 = vadd.f32 %v2898, %v2904
        %v2909 = vadd.f32 %v2899, %v2905
        %v2910 = vadd.f32 %v2900, %v2906
        %s2911 = sld [smem:[#allocation21 + $0x102]]
        %v2912 = vstv %s2911
        %v2913 = vmul.f32 %v2912, %v2755
        %v2914 = vmul.f32 %v2912, %v2756
        %v2915 = vmul.f32 %v2912, %v2757
        %v2916 = vmul.f32 %v2912, %v2758
        %v2917 = vadd.f32 %v2907, %v2913
        %v2918 = vadd.f32 %v2908, %v2914
        %v2919 = vadd.f32 %v2909, %v2915
        %v2920 = vadd.f32 %v2910, %v2916
        %s2921 = sld [smem:[#allocation21 + $0x103]]
        %v2922 = vstv %s2921
        %v2923 = vmul.f32 %v2922, %v2759
        %v2924 = vmul.f32 %v2922, %v2760
        %v2925 = vmul.f32 %v2922, %v2761
        %v2926 = vmul.f32 %v2922, %v2762
        %v2927 = vadd.f32 %v2917, %v2923
        %v2928 = vadd.f32 %v2918, %v2924
        %v2929 = vadd.f32 %v2919, %v2925
        %v2930 = vadd.f32 %v2920, %v2926
        %s2931 = sld [smem:[#allocation21 + $0x104]]
        %v2932 = vstv %s2931
        %v2933 = vmul.f32 %v2932, %v2763
        %v2934 = vmul.f32 %v2932, %v2764
        %v2935 = vmul.f32 %v2932, %v2765
        %v2936 = vmul.f32 %v2932, %v2766
        %v2937 = vadd.f32 %v2927, %v2933
        %v2938 = vadd.f32 %v2928, %v2934
        %v2939 = vadd.f32 %v2929, %v2935
        %v2940 = vadd.f32 %v2930, %v2936
        %s2941 = sld [smem:[#allocation21 + $0x105]]
        %v2942 = vstv %s2941
        %v2943 = vmul.f32 %v2942, %v2767
        %v2944 = vmul.f32 %v2942, %v2768
        %v2945 = vmul.f32 %v2942, %v2769
        %v2946 = vmul.f32 %v2942, %v2770
        %v2947 = vadd.f32 %v2937, %v2943
        %v2948 = vadd.f32 %v2938, %v2944
        %v2949 = vadd.f32 %v2939, %v2945
        %v2950 = vadd.f32 %v2940, %v2946
        %s2951 = sld [smem:[#allocation23 + $0x2]]
        %v2952 = vstv %s2951
        %v2953 = vadd.f32 %v2947, %v2952
        %v2954 = vadd.f32 %v2948, %v2952
        %v2955 = vadd.f32 %v2949, %v2952
        %v2956 = vadd.f32 %v2950, %v2952
        %s2957 = sld [smem:[#allocation21 + $0x180]]
        %v2958 = vstv %s2957
        %v2959 = vmul.f32 %v2958, %v2747
        %v2960 = vmul.f32 %v2958, %v2748
        %v2961 = vmul.f32 %v2958, %v2749
        %v2962 = vmul.f32 %v2958, %v2750
        %s2963 = sld [smem:[#allocation21 + $0x181]]
        %v2964 = vstv %s2963
        %v2965 = vmul.f32 %v2964, %v2751
        %v2966 = vmul.f32 %v2964, %v2752
        %v2967 = vmul.f32 %v2964, %v2753
        %v2968 = vmul.f32 %v2964, %v2754
        %v2969 = vadd.f32 %v2959, %v2965
        %v2970 = vadd.f32 %v2960, %v2966
        %v2971 = vadd.f32 %v2961, %v2967
        %v2972 = vadd.f32 %v2962, %v2968
        %s2973 = sld [smem:[#allocation21 + $0x182]]
        %v2974 = vstv %s2973
        %v2975 = vmul.f32 %v2974, %v2755
        %v2976 = vmul.f32 %v2974, %v2756
        %v2977 = vmul.f32 %v2974, %v2757
        %v2978 = vmul.f32 %v2974, %v2758
        %v2979 = vadd.f32 %v2969, %v2975
        %v2980 = vadd.f32 %v2970, %v2976
        %v2981 = vadd.f32 %v2971, %v2977
        %v2982 = vadd.f32 %v2972, %v2978
        %s2983 = sld [smem:[#allocation21 + $0x183]]
        %v2984 = vstv %s2983
        %v2985 = vmul.f32 %v2984, %v2759
        %v2986 = vmul.f32 %v2984, %v2760
        %v2987 = vmul.f32 %v2984, %v2761
        %v2988 = vmul.f32 %v2984, %v2762
        %v2989 = vadd.f32 %v2979, %v2985
        %v2990 = vadd.f32 %v2980, %v2986
        %v2991 = vadd.f32 %v2981, %v2987
        %v2992 = vadd.f32 %v2982, %v2988
        %s2993 = sld [smem:[#allocation21 + $0x184]]
        %v2994 = vstv %s2993
        %v2995 = vmul.f32 %v2994, %v2763
        %v2996 = vmul.f32 %v2994, %v2764
        %v2997 = vmul.f32 %v2994, %v2765
        %v2998 = vmul.f32 %v2994, %v2766
        %v2999 = vadd.f32 %v2989, %v2995
        %v3000 = vadd.f32 %v2990, %v2996
        %v3001 = vadd.f32 %v2991, %v2997
        %v3002 = vadd.f32 %v2992, %v2998
        %s3003 = sld [smem:[#allocation21 + $0x185]]
        %v3004 = vstv %s3003
        %v3005 = vmul.f32 %v3004, %v2767
        %v3006 = vmul.f32 %v3004, %v2768
        %v3007 = vmul.f32 %v3004, %v2769
        %v3008 = vmul.f32 %v3004, %v2770
        %v3009 = vadd.f32 %v2999, %v3005
        %v3010 = vadd.f32 %v3000, %v3006
        %v3011 = vadd.f32 %v3001, %v3007
        %v3012 = vadd.f32 %v3002, %v3008
        %s3013 = sld [smem:[#allocation23 + $0x3]]
        %v3014 = vstv %s3013
        %v3015 = vadd.f32 %v3009, %v3014
        %v3016 = vadd.f32 %v3010, %v3014
        %v3017 = vadd.f32 %v3011, %v3014
        %v3018 = vadd.f32 %v3012, %v3014
        %s3019 = sld [smem:[#allocation21 + $0x200]]
        %v3020 = vstv %s3019
        %v3021 = vmul.f32 %v3020, %v2747
        %v3022 = vmul.f32 %v3020, %v2748
        %v3023 = vmul.f32 %v3020, %v2749
        %v3024 = vmul.f32 %v3020, %v2750
        %s3025 = sld [smem:[#allocation21 + $0x201]]
        %v3026 = vstv %s3025
        %v3027 = vmul.f32 %v3026, %v2751
        %v3028 = vmul.f32 %v3026, %v2752
        %v3029 = vmul.f32 %v3026, %v2753
        %v3030 = vmul.f32 %v3026, %v2754
        %v3031 = vadd.f32 %v3021, %v3027
        %v3032 = vadd.f32 %v3022, %v3028
        %v3033 = vadd.f32 %v3023, %v3029
        %v3034 = vadd.f32 %v3024, %v3030
        %s3035 = sld [smem:[#allocation21 + $0x202]]
        %v3036 = vstv %s3035
        %v3037 = vmul.f32 %v3036, %v2755
        %v3038 = vmul.f32 %v3036, %v2756
        %v3039 = vmul.f32 %v3036, %v2757
        %v3040 = vmul.f32 %v3036, %v2758
        %v3041 = vadd.f32 %v3031, %v3037
        %v3042 = vadd.f32 %v3032, %v3038
        %v3043 = vadd.f32 %v3033, %v3039
        %v3044 = vadd.f32 %v3034, %v3040
        %s3045 = sld [smem:[#allocation21 + $0x203]]
        %v3046 = vstv %s3045
        %v3047 = vmul.f32 %v3046, %v2759
        %v3048 = vmul.f32 %v3046, %v2760
        %v3049 = vmul.f32 %v3046, %v2761
        %v3050 = vmul.f32 %v3046, %v2762
        %v3051 = vadd.f32 %v3041, %v3047
        %v3052 = vadd.f32 %v3042, %v3048
        %v3053 = vadd.f32 %v3043, %v3049
        %v3054 = vadd.f32 %v3044, %v3050
        %s3055 = sld [smem:[#allocation21 + $0x204]]
        %v3056 = vstv %s3055
        %v3057 = vmul.f32 %v3056, %v2763
        %v3058 = vmul.f32 %v3056, %v2764
        %v3059 = vmul.f32 %v3056, %v2765
        %v3060 = vmul.f32 %v3056, %v2766
        %v3061 = vadd.f32 %v3051, %v3057
        %v3062 = vadd.f32 %v3052, %v3058
        %v3063 = vadd.f32 %v3053, %v3059
        %v3064 = vadd.f32 %v3054, %v3060
        %s3065 = sld [smem:[#allocation21 + $0x205]]
        %v3066 = vstv %s3065
        %v3067 = vmul.f32 %v3066, %v2767
        %v3068 = vmul.f32 %v3066, %v2768
        %v3069 = vmul.f32 %v3066, %v2769
        %v3070 = vmul.f32 %v3066, %v2770
        %v3071 = vadd.f32 %v3061, %v3067
        %v3072 = vadd.f32 %v3062, %v3068
        %v3073 = vadd.f32 %v3063, %v3069
        %v3074 = vadd.f32 %v3064, %v3070
        %s3075 = sld [smem:[#allocation23 + $0x4]]
        %v3076 = vstv %s3075
        %v3077 = vadd.f32 %v3071, %v3076
        %v3078 = vadd.f32 %v3072, %v3076
        %v3079 = vadd.f32 %v3073, %v3076
        %v3080 = vadd.f32 %v3074, %v3076
        %s3081 = sld [smem:[#allocation21 + $0x280]]
        %v3082 = vstv %s3081
        %v3083 = vmul.f32 %v3082, %v2747
        %v3084 = vmul.f32 %v3082, %v2748
        %v3085 = vmul.f32 %v3082, %v2749
        %v3086 = vmul.f32 %v3082, %v2750
        %s3087 = sld [smem:[#allocation21 + $0x281]]
        %v3088 = vstv %s3087
        %v3089 = vmul.f32 %v3088, %v2751
        %v3090 = vmul.f32 %v3088, %v2752
        %v3091 = vmul.f32 %v3088, %v2753
        %v3092 = vmul.f32 %v3088, %v2754
        %v3093 = vadd.f32 %v3083, %v3089
        %v3094 = vadd.f32 %v3084, %v3090
        %v3095 = vadd.f32 %v3085, %v3091
        %v3096 = vadd.f32 %v3086, %v3092
        %s3097 = sld [smem:[#allocation21 + $0x282]]
        %v3098 = vstv %s3097
        %v3099 = vmul.f32 %v3098, %v2755
        %v3100 = vmul.f32 %v3098, %v2756
        %v3101 = vmul.f32 %v3098, %v2757
        %v3102 = vmul.f32 %v3098, %v2758
        %v3103 = vadd.f32 %v3093, %v3099
        %v3104 = vadd.f32 %v3094, %v3100
        %v3105 = vadd.f32 %v3095, %v3101
        %v3106 = vadd.f32 %v3096, %v3102
        %s3107 = sld [smem:[#allocation21 + $0x283]]
        %v3108 = vstv %s3107
        %v3109 = vmul.f32 %v3108, %v2759
        %v3110 = vmul.f32 %v3108, %v2760
        %v3111 = vmul.f32 %v3108, %v2761
        %v3112 = vmul.f32 %v3108, %v2762
        %v3113 = vadd.f32 %v3103, %v3109
        %v3114 = vadd.f32 %v3104, %v3110
        %v3115 = vadd.f32 %v3105, %v3111
        %v3116 = vadd.f32 %v3106, %v3112
        %s3117 = sld [smem:[#allocation21 + $0x284]]
        %v3118 = vstv %s3117
        %v3119 = vmul.f32 %v3118, %v2763
        %v3120 = vmul.f32 %v3118, %v2764
        %v3121 = vmul.f32 %v3118, %v2765
        %v3122 = vmul.f32 %v3118, %v2766
        %v3123 = vadd.f32 %v3113, %v3119
        %v3124 = vadd.f32 %v3114, %v3120
        %v3125 = vadd.f32 %v3115, %v3121
        %v3126 = vadd.f32 %v3116, %v3122
        %s3127 = sld [smem:[#allocation21 + $0x285]]
        %v3128 = vstv %s3127
        %v3129 = vmul.f32 %v3128, %v2767
        %v3130 = vmul.f32 %v3128, %v2768
        %v3131 = vmul.f32 %v3128, %v2769
        %v3132 = vmul.f32 %v3128, %v2770
        %v3133 = vadd.f32 %v3123, %v3129
        %v3134 = vadd.f32 %v3124, %v3130
        %v3135 = vadd.f32 %v3125, %v3131
        %v3136 = vadd.f32 %v3126, %v3132
        %s3137 = sld [smem:[#allocation23 + $0x5]]
        %v3138 = vstv %s3137
        %v3139 = vadd.f32 %v3133, %v3138
        %v3140 = vadd.f32 %v3134, %v3138
        %v3141 = vadd.f32 %v3135, %v3138
        %v3142 = vadd.f32 %v3136, %v3138
        %v3143 = vmax.f32 %v2829, 0.0
        %v3144 = vmax.f32 %v2830, 0.0
        %v3145 = vmax.f32 %v2831, 0.0
        %v3146 = vmax.f32 %v2832, 0.0
        %v3147 = vmax.f32 %v2891, 0.0
        %v3148 = vmax.f32 %v2892, 0.0
        %v3149 = vmax.f32 %v2893, 0.0
        %v3150 = vmax.f32 %v2894, 0.0
        %v3151 = vmax.f32 %v2953, 0.0
        %v3152 = vmax.f32 %v2954, 0.0
        %v3153 = vmax.f32 %v2955, 0.0
        %v3154 = vmax.f32 %v2956, 0.0
        %v3155 = vmax.f32 %v3015, 0.0
        %v3156 = vmax.f32 %v3016, 0.0
        %v3157 = vmax.f32 %v3017, 0.0
        %v3158 = vmax.f32 %v3018, 0.0
        %v3159 = vmax.f32 %v3077, 0.0
        %v3160 = vmax.f32 %v3078, 0.0
        %v3161 = vmax.f32 %v3079, 0.0
        %v3162 = vmax.f32 %v3080, 0.0
        %v3163 = vmax.f32 %v3139, 0.0
        %v3164 = vmax.f32 %v3140, 0.0
        %v3165 = vmax.f32 %v3141, 0.0
        %v3166 = vmax.f32 %v3142, 0.0
        %s3167 = sld [smem:[#allocation24]]
        %v3168 = vstv %s3167
        %v3169 = vmul.f32 %v3168, %v3143
        %v3170 = vmul.f32 %v3168, %v3144
        %v3171 = vmul.f32 %v3168, %v3145
        %v3172 = vmul.f32 %v3168, %v3146
        %s3173 = sld [smem:[#allocation24 + $0x1]]
        %v3174 = vstv %s3173
        %v3175 = vmul.f32 %v3174, %v3147
        %v3176 = vmul.f32 %v3174, %v3148
        %v3177 = vmul.f32 %v3174, %v3149
        %v3178 = vmul.f32 %v3174, %v3150
        %v3179 = vadd.f32 %v3169, %v3175
        %v3180 = vadd.f32 %v3170, %v3176
        %v3181 = vadd.f32 %v3171, %v3177
        %v3182 = vadd.f32 %v3172, %v3178
        %s3183 = sld [smem:[#allocation24 + $0x2]]
        %v3184 = vstv %s3183
        %v3185 = vmul.f32 %v3184, %v3151
        %v3186 = vmul.f32 %v3184, %v3152
        %v3187 = vmul.f32 %v3184, %v3153
        %v3188 = vmul.f32 %v3184, %v3154
        %v3189 = vadd.f32 %v3179, %v3185
        %v3190 = vadd.f32 %v3180, %v3186
        %v3191 = vadd.f32 %v3181, %v3187
        %v3192 = vadd.f32 %v3182, %v3188
        %s3193 = sld [smem:[#allocation24 + $0x3]]
        %v3194 = vstv %s3193
        %v3195 = vmul.f32 %v3194, %v3155
        %v3196 = vmul.f32 %v3194, %v3156
        %v3197 = vmul.f32 %v3194, %v3157
        %v3198 = vmul.f32 %v3194, %v3158
        %v3199 = vadd.f32 %v3189, %v3195
        %v3200 = vadd.f32 %v3190, %v3196
        %v3201 = vadd.f32 %v3191, %v3197
        %v3202 = vadd.f32 %v3192, %v3198
        %s3203 = sld [smem:[#allocation24 + $0x4]]
        %v3204 = vstv %s3203
        %v3205 = vmul.f32 %v3204, %v3159
        %v3206 = vmul.f32 %v3204, %v3160
        %v3207 = vmul.f32 %v3204, %v3161
        %v3208 = vmul.f32 %v3204, %v3162
        %v3209 = vadd.f32 %v3199, %v3205
        %v3210 = vadd.f32 %v3200, %v3206
        %v3211 = vadd.f32 %v3201, %v3207
        %v3212 = vadd.f32 %v3202, %v3208
        %s3213 = sld [smem:[#allocation24 + $0x5]]
        %v3214 = vstv %s3213
        %v3215 = vmul.f32 %v3214, %v3163
        %v3216 = vmul.f32 %v3214, %v3164
        %v3217 = vmul.f32 %v3214, %v3165
        %v3218 = vmul.f32 %v3214, %v3166
        %v3219 = vadd.f32 %v3209, %v3215
        %v3220 = vadd.f32 %v3210, %v3216
        %v3221 = vadd.f32 %v3211, %v3217
        %v3222 = vadd.f32 %v3212, %v3218
        %s3223 = sld [smem:[#allocation2]]
        %v3224 = vstv %s3223
        %v3225 = vadd.f32 %v3219, %v3224
        %v3226 = vadd.f32 %v3220, %v3224
        %v3227 = vadd.f32 %v3221, %v3224
        %v3228 = vadd.f32 %v3222, %v3224
        %v3229 = vxor.u32 %v3225, 2147483648
        %v3230 = vxor.u32 %v3226, 2147483648
        %v3231 = vxor.u32 %v3227, 2147483648
        %v3232 = vxor.u32 %v3228, 2147483648
        %v3233 = vmul.f32 %v3229, 1.442695
        %v3234 = vpow.pop %v3233
        %v3235 = vmul.f32 %v3230, 1.442695
        %v3236 = vpow.pop %v3235
        %v3237 = vmul.f32 %v3231, 1.442695
        %v3238 = vpow.pop %v3237
        %v3239 = vmul.f32 %v3232, 1.442695
        %v3240 = vpow.pop %v3239
        %v3241 = vadd.f32 %v3234, 1.0
        %v3242 = vadd.f32 %v3236, 1.0
        %v3243 = vadd.f32 %v3238, 1.0
        %v3244 = vadd.f32 %v3240, 1.0
        %v3245 = vrcp.pop %v3241
        %v3246 = vmul.f32 1.0, %v3245
        %v3247 = vrcp.pop %v3242
        %v3248 = vmul.f32 1.0, %v3247
        %v3249 = vrcp.pop %v3243
        %v3250 = vmul.f32 1.0, %v3249
        %v3251 = vrcp.pop %v3244
        %v3252 = vmul.f32 1.0, %v3251
        %v3253 = vmul.f32 %v2747, %v3246
        %v3254 = vmul.f32 %v2748, %v3248
        %v3255 = vmul.f32 %v2749, %v3250
        %v3256 = vmul.f32 %v2750, %v3252
        %v3257 = vmul.f32 %v2751, %v3246
        %v3258 = vmul.f32 %v2752, %v3248
        %v3259 = vmul.f32 %v2753, %v3250
        %v3260 = vmul.f32 %v2754, %v3252
        %v3261 = vmul.f32 %v2755, %v3246
        %v3262 = vmul.f32 %v2756, %v3248
        %v3263 = vmul.f32 %v2757, %v3250
        %v3264 = vmul.f32 %v2758, %v3252
        %v3265 = vmul.f32 %v2759, %v3246
        %v3266 = vmul.f32 %v2760, %v3248
        %v3267 = vmul.f32 %v2761, %v3250
        %v3268 = vmul.f32 %v2762, %v3252
        %v3269 = vmul.f32 %v2763, %v3246
        %v3270 = vmul.f32 %v2764, %v3248
        %v3271 = vmul.f32 %v2765, %v3250
        %v3272 = vmul.f32 %v2766, %v3252
        %v3273 = vmul.f32 %v2767, %v3246
        %v3274 = vmul.f32 %v2768, %v3248
        %v3275 = vmul.f32 %v2769, %v3250
        %v3276 = vmul.f32 %v2770, %v3252
        %v3277 = vadd.f32 %v3253, %v987
        %v3278 = vadd.f32 %v3254, %v988
        %v3279 = vadd.f32 %v3255, %v989
        %v3280 = vadd.f32 %v3256, %v990
        %v3281 = vmax.f32 %v3277, 0.0
        %v3282 = vmax.f32 %v3278, 0.0
        %v3283 = vmax.f32 %v3279, 0.0
        %v3284 = vmax.f32 %v3280, 0.0
        %v3285 = vadd.f32 %v3257, %v1087
        %v3286 = vadd.f32 %v3258, %v1088
        %v3287 = vadd.f32 %v3259, %v1089
        %v3288 = vadd.f32 %v3260, %v1090
        %v3289 = vmax.f32 %v3285, 0.0
        %v3290 = vmax.f32 %v3286, 0.0
        %v3291 = vmax.f32 %v3287, 0.0
        %v3292 = vmax.f32 %v3288, 0.0
        %v3293 = vadd.f32 %v3261, %v1187
        %v3294 = vadd.f32 %v3262, %v1188
        %v3295 = vadd.f32 %v3263, %v1189
        %v3296 = vadd.f32 %v3264, %v1190
        %v3297 = vmax.f32 %v3293, 0.0
        %v3298 = vmax.f32 %v3294, 0.0
        %v3299 = vmax.f32 %v3295, 0.0
        %v3300 = vmax.f32 %v3296, 0.0
        %v3301 = vadd.f32 %v3265, %v1287
        %v3302 = vadd.f32 %v3266, %v1288
        %v3303 = vadd.f32 %v3267, %v1289
        %v3304 = vadd.f32 %v3268, %v1290
        %v3305 = vmax.f32 %v3301, 0.0
        %v3306 = vmax.f32 %v3302, 0.0
        %v3307 = vmax.f32 %v3303, 0.0
        %v3308 = vmax.f32 %v3304, 0.0
        %v3309 = vadd.f32 %v3269, %v1387
        %v3310 = vadd.f32 %v3270, %v1388
        %v3311 = vadd.f32 %v3271, %v1389
        %v3312 = vadd.f32 %v3272, %v1390
        %v3313 = vmax.f32 %v3309, 0.0
        %v3314 = vmax.f32 %v3310, 0.0
        %v3315 = vmax.f32 %v3311, 0.0
        %v3316 = vmax.f32 %v3312, 0.0
        %v3317 = vadd.f32 %v3273, %v1487
        %v3318 = vadd.f32 %v3274, %v1488
        %v3319 = vadd.f32 %v3275, %v1489
        %v3320 = vadd.f32 %v3276, %v1490
        %v3321 = vmax.f32 %v3317, 0.0
        %v3322 = vmax.f32 %v3318, 0.0
        %v3323 = vmax.f32 %v3319, 0.0
        %v3324 = vmax.f32 %v3320, 0.0
        %s3325 = sld [smem:[#allocation26]]
        %v3326 = vstv %s3325
        %v3327 = vmul.f32 %v3326, %v3281
        %v3328 = vmul.f32 %v3326, %v3282
        %v3329 = vmul.f32 %v3326, %v3283
        %v3330 = vmul.f32 %v3326, %v3284
        %s3331 = sld [smem:[#allocation26 + $0x1]]
        %v3332 = vstv %s3331
        %v3333 = vmul.f32 %v3332, %v3289
        %v3334 = vmul.f32 %v3332, %v3290
        %v3335 = vmul.f32 %v3332, %v3291
        %v3336 = vmul.f32 %v3332, %v3292
        %v3337 = vadd.f32 %v3327, %v3333
        %v3338 = vadd.f32 %v3328, %v3334
        %v3339 = vadd.f32 %v3329, %v3335
        %v3340 = vadd.f32 %v3330, %v3336
        %s3341 = sld [smem:[#allocation26 + $0x2]]
        %v3342 = vstv %s3341
        %v3343 = vmul.f32 %v3342, %v3297
        %v3344 = vmul.f32 %v3342, %v3298
        %v3345 = vmul.f32 %v3342, %v3299
        %v3346 = vmul.f32 %v3342, %v3300
        %v3347 = vadd.f32 %v3337, %v3343
        %v3348 = vadd.f32 %v3338, %v3344
        %v3349 = vadd.f32 %v3339, %v3345
        %v3350 = vadd.f32 %v3340, %v3346
        %s3351 = sld [smem:[#allocation26 + $0x3]]
        %v3352 = vstv %s3351
        %v3353 = vmul.f32 %v3352, %v3305
        %v3354 = vmul.f32 %v3352, %v3306
        %v3355 = vmul.f32 %v3352, %v3307
        %v3356 = vmul.f32 %v3352, %v3308
        %v3357 = vadd.f32 %v3347, %v3353
        %v3358 = vadd.f32 %v3348, %v3354
        %v3359 = vadd.f32 %v3349, %v3355
        %v3360 = vadd.f32 %v3350, %v3356
        %s3361 = sld [smem:[#allocation26 + $0x4]]
        %v3362 = vstv %s3361
        %v3363 = vmul.f32 %v3362, %v3313
        %v3364 = vmul.f32 %v3362, %v3314
        %v3365 = vmul.f32 %v3362, %v3315
        %v3366 = vmul.f32 %v3362, %v3316
        %v3367 = vadd.f32 %v3357, %v3363
        %v3368 = vadd.f32 %v3358, %v3364
        %v3369 = vadd.f32 %v3359, %v3365
        %v3370 = vadd.f32 %v3360, %v3366
        %s3371 = sld [smem:[#allocation26 + $0x5]]
        %v3372 = vstv %s3371
        %v3373 = vmul.f32 %v3372, %v3321
        %v3374 = vmul.f32 %v3372, %v3322
        %v3375 = vmul.f32 %v3372, %v3323
        %v3376 = vmul.f32 %v3372, %v3324
        %v3377 = vadd.f32 %v3367, %v3373
        %v3378 = vadd.f32 %v3368, %v3374
        %v3379 = vadd.f32 %v3369, %v3375
        %v3380 = vadd.f32 %v3370, %v3376
        %s3381 = sld [smem:[#allocation3]]
        %v3382 = vstv %s3381
        %v3383 = vadd.f32 %v3377, %v3382
        %v3384 = vadd.f32 %v3378, %v3382
        %v3385 = vadd.f32 %v3379, %v3382
        %v3386 = vadd.f32 %v3380, %v3382
        %v3387 = vmax.f32 %v3383, 0.0
        %v3388 = vmax.f32 %v3384, 0.0
        %v3389 = vmax.f32 %v3385, 0.0
        %v3390 = vmax.f32 %v3386, 0.0
        %v3391 = vld [vmem:[%s17] sm:$0xff]
        %v3392 = vld [vmem:[%s17 + $0x8] sm:$0xff]
        %v3393 = vld [vmem:[%s17 + $0x10] sm:$0xff]
        %v3394 = vld [vmem:[%s17 + $0x18] sm:$0x7f]
        %v3395 = vld [vmem:[%s18] sm:$0x1]
        %v3397 = vlaneseq
        %v3398 = vshrl.u32 %v3397, 7
        %v3399 = vsub.s32 0, %v3398
        %v3400 = vrot.slane %v3395, %v3399
        %v3403 = vsel %vm2283, %v3387, 0
        %v3406 = vsel %vm2283, %v3388, 0
        %v3409 = vsel %vm2283, %v3389, 0
        %v3412 = vsel %vm2283, %v3390, 0
        %v3415 = vsel %vm932, %v3394, 0
        %3417 = vmatprep.subr.mxu0 0.0
        %3418 = vmatpush1.msra.mxu0 %v3391
        %3419 = vmatprep.subr.mxu0 0.0
        %3420 = vmatpush1.msra.mxu0 %v3392
        %3421 = vmatprep.subr.mxu0 0.0
        %3422 = vmatpush1.msra.mxu0 %v3393
        %3423 = vmatprep.subr.mxu0 0.0
        %3424 = vmatpush1.msra.mxu0 %v3415
        %3425 = vmatprep.subr.mxu0 0.0
        %3426 = vmatpush1.msra.mxu0 0.0
        %3427 = vmatprep.subr.mxu0 0.0
        %3428 = vmatpush1.msra.mxu0 0.0
        %3429 = vmatprep.subr.mxu0 0.0
        %3430 = vmatpush1.msra.mxu0 0.0
        %3431 = vmatprep.subr.mxu0 0.0
        %3432 = vmatpush1.msra.mxu0 0.0
        %3433 = vmatprep.subr.mxu0 0.0
        %3434 = vmatpush1.msra.mxu0 0.0
        %3435 = vmatprep.subr.mxu0 0.0
        %3436 = vmatpush1.msra.mxu0 0.0
        %3437 = vmatprep.subr.mxu0 0.0
        %3438 = vmatpush1.msra.mxu0 0.0
        %3439 = vmatprep.subr.mxu0 0.0
        %3440 = vmatpush1.msra.mxu0 0.0
        %3441 = vmatprep.subr.mxu0 0.0
        %3442 = vmatpush1.msra.mxu0 0.0
        %3443 = vmatprep.subr.mxu0 0.0
        %3444 = vmatpush1.msra.mxu0 0.0
        %3445 = vmatprep.subr.mxu0 0.0
        %3446 = vmatpush1.msra.mxu0 0.0
        %3447 = vmatprep.subr.mxu0 0.0
        %3448 = vmatpush1.msra.mxu0 0.0
        %3449 = vmatprep.subr.mxu0 0.0
        %3450 = vmatpush1.msra.mxu0 0.0
        %3451 = vmatprep.subr.mxu0 0.0
        %3452 = vmatpush1.msra.mxu0 0.0
        %3453 = vmatprep.subr.mxu0 0.0
        %3454 = vmatpush1.msra.mxu0 0.0
        %3455 = vmatprep.subr.mxu0 0.0
        %3456 = vmatpush1.msra.mxu0 0.0
        %3457 = vmatprep.subr.mxu0 0.0
        %3458 = vmatpush1.msra.mxu0 0.0
        %3459 = vmatprep.subr.mxu0 0.0
        %3460 = vmatpush1.msra.mxu0 0.0
        %3461 = vmatprep.subr.mxu0 0.0
        %3462 = vmatpush1.msra.mxu0 0.0
        %3463 = vmatprep.subr.mxu0 0.0
        %3464 = vmatpush1.msra.mxu0 0.0
        %3465 = vmatprep.subr.mxu0 0.0
        %3466 = vmatpush1.msra.mxu0 0.0
        %3467 = vmatprep.subr.mxu0 0.0
        %3468 = vmatpush1.msra.mxu0 0.0
        %3469 = vmatprep.subr.mxu0 0.0
        %3470 = vmatpush1.msra.mxu0 0.0
        %3471 = vmatprep.subr.mxu0 0.0
        %3472 = vmatpush1.msra.mxu0 0.0
        %3473 = vmatprep.subr.mxu0 0.0
        %3474 = vmatpush1.msra.mxu0 0.0
        %3475 = vmatprep.subr.mxu0 0.0
        %3476 = vmatpush1.msra.mxu0 0.0
        %3477 = vmatprep.subr.mxu0 0.0
        %3478 = vmatpush1.msra.mxu0 0.0
        %3479 = vmatprep.subr.mxu0 0.0
        %3480 = vmatpush1.msra.mxu0 0.0
        %3481 = vmatprep.mubr.f32.mxu0 0.0
        %3482 = vmatmul.mubr.f32.gmra.mrb[0].mxu0 %v3403
        %v3483 = vpop.f32.mrb[0].mxu0
        %v3484 = vadd.f32 %v3400, %v3483
        %v3485 = vpop.f32.mrb[0].mxu0
        %3486 = vmatprep.mubr.f32.mxu0 0.0
        %3487 = vmatmul.mubr.f32.gmra.mrb[0].mxu0 %v3406
        %v3488 = vpop.f32.mrb[0].mxu0
        %v3489 = vadd.f32 %v3400, %v3488
        %v3490 = vpop.f32.mrb[0].mxu0
        %3491 = vmatprep.mubr.f32.mxu0 0.0
        %3492 = vmatmul.mubr.f32.gmra.mrb[0].mxu0 %v3409
        %v3493 = vpop.f32.mrb[0].mxu0
        %v3494 = vadd.f32 %v3400, %v3493
        %v3495 = vpop.f32.mrb[0].mxu0
        %3496 = vmatprep.mubr.f32.mxu0 0.0
        %3497 = vmatmul.mubr.f32.gmra.mrb[0].mxu0 %v3412
        %v3498 = vpop.f32.mrb[0].mxu0
        %v3499 = vadd.f32 %v3400, %v3498
        %v3500 = vpop.f32.mrb[0].mxu0
        %3501 = vdwg.mxu0
        %v3502 = vld [vmem:[%s19] sm:$0xff]
        %v3503 = vld [vmem:[%s19 + $0x8] sm:$0xff]
        %v3504 = vld [vmem:[%s20] sm:$0x1]
        %v3506 = vlaneseq
        %v3507 = vshrl.u32 %v3506, 7
        %v3508 = vsub.s32 0, %v3507
        %v3509 = vrot.slane %v3504, %v3508
        %vm3511 = vcmask 130048
        %v3513 = vsel %vm3511, %v3484, 0
        %v3516 = vsel %vm3511, %v3489, 0
        %v3519 = vsel %vm3511, %v3494, 0
        %v3522 = vsel %vm3511, %v3499, 0
        %3524 = vmatprep.subr.mxu0 0.0
        %3525 = vmatpush1.msra.mxu0 %v3502
        %3526 = vmatprep.subr.mxu0 0.0
        %3527 = vmatpush1.msra.mxu0 %v3503
        %3528 = vmatprep.subr.mxu0 0.0
        %3529 = vmatpush1.msra.mxu0 0.0
        %3530 = vmatprep.subr.mxu0 0.0
        %3531 = vmatpush1.msra.mxu0 0.0
        %3532 = vmatprep.subr.mxu0 0.0
        %3533 = vmatpush1.msra.mxu0 0.0
        %3534 = vmatprep.subr.mxu0 0.0
        %3535 = vmatpush1.msra.mxu0 0.0
        %3536 = vmatprep.subr.mxu0 0.0
        %3537 = vmatpush1.msra.mxu0 0.0
        %3538 = vmatprep.subr.mxu0 0.0
        %3539 = vmatpush1.msra.mxu0 0.0
        %3540 = vmatprep.subr.mxu0 0.0
        %3541 = vmatpush1.msra.mxu0 0.0
        %3542 = vmatprep.subr.mxu0 0.0
        %3543 = vmatpush1.msra.mxu0 0.0
        %3544 = vmatprep.subr.mxu0 0.0
        %3545 = vmatpush1.msra.mxu0 0.0
        %3546 = vmatprep.subr.mxu0 0.0
        %3547 = vmatpush1.msra.mxu0 0.0
        %3548 = vmatprep.subr.mxu0 0.0
        %3549 = vmatpush1.msra.mxu0 0.0
        %3550 = vmatprep.subr.mxu0 0.0
        %3551 = vmatpush1.msra.mxu0 0.0
        %3552 = vmatprep.subr.mxu0 0.0
        %3553 = vmatpush1.msra.mxu0 0.0
        %3554 = vmatprep.subr.mxu0 0.0
        %3555 = vmatpush1.msra.mxu0 0.0
        %3556 = vmatprep.subr.mxu0 0.0
        %3557 = vmatpush1.msra.mxu0 0.0
        %3558 = vmatprep.subr.mxu0 0.0
        %3559 = vmatpush1.msra.mxu0 0.0
        %3560 = vmatprep.subr.mxu0 0.0
        %3561 = vmatpush1.msra.mxu0 0.0
        %3562 = vmatprep.subr.mxu0 0.0
        %3563 = vmatpush1.msra.mxu0 0.0
        %3564 = vmatprep.subr.mxu0 0.0
        %3565 = vmatpush1.msra.mxu0 0.0
        %3566 = vmatprep.subr.mxu0 0.0
        %3567 = vmatpush1.msra.mxu0 0.0
        %3568 = vmatprep.subr.mxu0 0.0
        %3569 = vmatpush1.msra.mxu0 0.0
        %3570 = vmatprep.subr.mxu0 0.0
        %3571 = vmatpush1.msra.mxu0 0.0
        %3572 = vmatprep.subr.mxu0 0.0
        %3573 = vmatpush1.msra.mxu0 0.0
        %3574 = vmatprep.subr.mxu0 0.0
        %3575 = vmatpush1.msra.mxu0 0.0
        %3576 = vmatprep.subr.mxu0 0.0
        %3577 = vmatpush1.msra.mxu0 0.0
        %3578 = vmatprep.subr.mxu0 0.0
        %3579 = vmatpush1.msra.mxu0 0.0
        %3580 = vmatprep.subr.mxu0 0.0
        %3581 = vmatpush1.msra.mxu0 0.0
        %3582 = vmatprep.subr.mxu0 0.0
        %3583 = vmatpush1.msra.mxu0 0.0
        %3584 = vmatprep.subr.mxu0 0.0
        %3585 = vmatpush1.msra.mxu0 0.0
        %3586 = vmatprep.subr.mxu0 0.0
        %3587 = vmatpush1.msra.mxu0 0.0
        %3588 = vmatprep.mubr.f32.mxu0 0.0
        %3589 = vmatmul.mubr.f32.gmra.mrb[0].mxu0 %v3513
        %v3590 = vpop.f32.mrb[0].mxu0
        %v3591 = vadd.f32 %v3509, %v3590
        %v3592 = vpop.f32.mrb[0].mxu0
        %3593 = vmatprep.mubr.f32.mxu0 0.0
        %3594 = vmatmul.mubr.f32.gmra.mrb[0].mxu0 %v3516
        %v3595 = vpop.f32.mrb[0].mxu0
        %v3596 = vadd.f32 %v3509, %v3595
        %v3597 = vpop.f32.mrb[0].mxu0
        %3598 = vmatprep.mubr.f32.mxu0 0.0
        %3599 = vmatmul.mubr.f32.gmra.mrb[0].mxu0 %v3519
        %v3600 = vpop.f32.mrb[0].mxu0
        %v3601 = vadd.f32 %v3509, %v3600
        %v3602 = vpop.f32.mrb[0].mxu0
        %3603 = vmatprep.mubr.f32.mxu0 0.0
        %3604 = vmatmul.mubr.f32.gmra.mrb[0].mxu0 %v3522
        %v3605 = vpop.f32.mrb[0].mxu0
        %v3606 = vadd.f32 %v3509, %v3605
        %v3607 = vpop.f32.mrb[0].mxu0
        %3608 = vdwg.mxu0
        %v3609 = vld [vmem:[%s21] sm:$0x1]
        %v3611 = vlaneseq
        %v3612 = vshrl.u32 %v3611, 7
        %v3613 = vsub.s32 0, %v3612
        %v3614 = vrot.slane %v3609, %v3613
        %v3616 = vmul.f32 %v3591, %v3614
        %v3617 = vmul.f32 %v3596, %v3614
        %v3618 = vmul.f32 %v3601, %v3614
        %v3619 = vmul.f32 %v3606, %v3614
        %vm3620 = vcmask 48128
        %v3621 = vsel %vm3620, %v3616, 0.0
        %3622 = vadd.xlane.f32.xlu0 %v3621
        %v3623 = vpop.xlane.xlu0 %3622
        %v3624 = vsel %vm3620, %v3617, 0.0
        %3625 = vadd.xlane.f32.xlu0 %v3624
        %v3626 = vpop.xlane.xlu0 %3625
        %v3627 = vsel %vm3620, %v3618, 0.0
        %3628 = vadd.xlane.f32.xlu0 %v3627
        %v3629 = vpop.xlane.xlu0 %3628
        %vm3630 = vcmask 47104
        %v3631 = vsel %vm3630, %v3619, 0.0
        %3632 = vadd.xlane.f32.xlu0 %v3631
        %v3633 = vpop.xlane.xlu0 %3632
        %v3634 = vld [vmem:[#allocation4] sm:$0x1]
        %v3636 = vlaneseq
        %v3637 = vshrl.u32 %v3636, 7
        %v3638 = vsub.s32 0, %v3637
        %v3639 = vrot.slane %v3634, %v3638
        %v3641 = vadd.f32 %v3623, %v3639
        %v3642 = vadd.f32 %v3626, %v3639
        %v3643 = vadd.f32 %v3629, %v3639
        %v3644 = vadd.f32 %v3633, %v3639
        %v3645 = vxor.u32 %v3641, 2147483648
        %v3646 = vxor.u32 %v3642, 2147483648
        %v3647 = vxor.u32 %v3643, 2147483648
        %v3648 = vxor.u32 %v3644, 2147483648
        %v3649 = vmul.f32 %v3645, 1.442695
        %v3650 = vpow.pop %v3649
        %v3651 = vmul.f32 %v3646, 1.442695
        %v3652 = vpow.pop %v3651
        %v3653 = vmul.f32 %v3647, 1.442695
        %v3654 = vpow.pop %v3653
        %v3655 = vmul.f32 %v3648, 1.442695
        %v3656 = vpow.pop %v3655
        %v3657 = vadd.f32 %v3650, 1.0
        %v3658 = vadd.f32 %v3652, 1.0
        %v3659 = vadd.f32 %v3654, 1.0
        %v3660 = vadd.f32 %v3656, 1.0
        %v3661 = vrcp.pop %v3657
        %v3662 = vmul.f32 1.0, %v3661
        %v3663 = vrcp.pop %v3658
        %v3664 = vmul.f32 1.0, %v3663
        %v3665 = vrcp.pop %v3659
        %v3666 = vmul.f32 1.0, %v3665
        %v3667 = vrcp.pop %v3660
        %v3668 = vmul.f32 1.0, %v3667
        %vm3669 = vcmask 7168
        %3670 = vst.msk [vmem:[%s885] sm:$0xff] %vm3669, %v3662
        %3671 = vst.msk [vmem:[%s885 + $0x8] sm:$0xff] %vm3669, %v3664
        %3672 = vst.msk [vmem:[%s885 + $0x10] sm:$0xff] %vm3669, %v3666
        %vm3673 = vcmask 6144
        %3674 = vst.msk [vmem:[%s885 + $0x18] sm:$0x7f] %vm3673, %v3668
        %p3675 = scmp.lt.s32.totalorder %s46, 1
        %s3676 = scalar_select %p3675, %s46, 1
        %s3677 = smul.addr %s3676, 4
        %s3678 = smul.addr %s3677, 8
        %s3679 = scalar_lea.vmem %s23, %s3678
        // Predicated region
        $region169: #{tpu_custom_call.1} parent=111 // pred_check
          %p3680 = pneg %p552
        $region170: #{tpu_custom_call.1} parent=111 // pred_check_branch
          %3682 = sbr.rel (%p3680) target = $region172
        $region171: #{tpu_custom_call.1} parent=111 // pred_region
          _
        $region172: #{tpu_custom_call.1} parent=111 // pred_fallthru
          _
      $region112: #{tpu_custom_call.1} parent=5 // pred_fallthru
        _
      %p3683 = scmp.le.s32.totalorder 2, %s41
      // Predicated region
      $region173: #{tpu_custom_call.1} parent=5 // pred_check
        %p3684 = pneg %p3683
      $region174: #{tpu_custom_call.1} parent=5 // pred_check_branch
        %3686 = sbr.rel (%p3684) target = $region176
      $region175: #{tpu_custom_call.1} parent=5 // pred_region
        %s3687 = ssub.s32 %s41, 2
        // Predicated region
        $region177: #{tpu_custom_call.1} parent=175 // pred_check
          %p3688 = pneg %p558
        $region178: #{tpu_custom_call.1} parent=175 // pred_check_branch
          %3690 = sbr.rel (%p3688) target = $region180
        $region179: #{tpu_custom_call.1} parent=175 // pred_region
          %p3691 = scmp.lt.s32.totalorder %s47, 1
          %s3692 = scalar_select %p3691, %s47, 1
          %s3693 = smul.addr %s3692, 4
          %s3694 = smul.addr %s3693, 8
          %s3695 = scalar_lea.vmem %s23, %s3694
        $region180: #{tpu_custom_call.1} parent=175 // pred_fallthru
          _
      $region176: #{tpu_custom_call.1} parent=5 // pred_fallthru
        _
    $region6: #{tpu_custom_call.1} parent=1 // loop_footer
      %s45 = sadd.s32 1, %s41
    $region7: #{tpu_custom_call.1} parent=1 // loop_footer_branch
      %40 = sbr.rel target = $region3
    $region8: #{tpu_custom_call.1} parent=1 // loop_exit
      _
    %3696 = vsyncpa [#allocation6], 1
    %s3697 = scalar_lea.sflag [#allocation6], 1
    %3698 = vsyncpa %s3697, 1
    %3699 = vsyncpa [#allocation15], 1
    %3700 = vsyncpa [#allocation7], 1
    %s3701 = scalar_lea.sflag [#allocation7], 1
    %3702 = vsyncpa %s3701, 1
    %3703 = vsyncpa [#allocation9], 1
    %3704 = vsyncpa [#allocation13], 1
    %3705 = vsyncpa [#allocation19], 1
    %3706 = vsyncpa [#allocation22], 1
    %3707 = vsyncpa [#allocation25], 1

</llo_original>
